<compile_context>
chip_gen: v7x
topology: tpu7x:2x2x1
jax: 0.10.0
libtpu: 0.0.40
codegen_flags: <defaults>
</compile_context>

<pallas_src>
import jax
import jax.numpy as jnp
from jax.experimental import pallas as pl
from jax.experimental.pallas import tpu as pltpu

EPS = 1e-5
LANE = 128
B_TILE = 1   # images per grid step (see header; keep grid steps >= num TCs)


# --------------------------------------------------------------------------
# Pallas kernel: 3x3 'same' conv + fused per-image BN partial statistics.
# Used for both conv1 and conv2.
# --------------------------------------------------------------------------
def conv3x3_stats_kernel(xp_ref, w_ref, y_ref, sum_ref, sq_ref):
    """xp_ref : (B, H+2, W+2, CP) bf16 spatially pre-padded activation block
       w_ref  : (9, CP, CP)       bf16 (kh*3+kw, Cin, Cout) weight taps
       y_ref  : (B, H, W, CP)     bf16 conv output (bf16 inter-pass stream)
       sum_ref/sq_ref : (B, 1, CP) f32 per-image sum / sum-of-squares
    """
    B, Hp, Wp, CP = xp_ref.shape
    H, W = Hp - 2, Wp - 2
    for b in range(B):
        acc = jnp.zeros((H * W, CP), jnp.float32)
        for kh in range(3):
            for kw in range(3):
                # Direct window load of the pre-padded block; no concat, no
                # big SSA taps value.  bf16 operands, f32 MXU accumulation.
                tap = xp_ref[b, kh:kh + H, kw:kw + W, :].reshape(H * W, CP)
                acc = acc + jnp.dot(tap, w_ref[kh * 3 + kw],
                                    preferred_element_type=jnp.float32)
        # bf16 inter-pass activation; BN stats from the exact f32 accumulator.
        y_ref[b] = acc.reshape(H, W, CP).astype(y_ref.dtype)
        sum_ref[b] = jnp.sum(acc, axis=0, keepdims=True)
        sq_ref[b] = jnp.sum(acc * acc, axis=0, keepdims=True)


# --------------------------------------------------------------------------
# Host-side glue
# --------------------------------------------------------------------------
def _conv_pass(xp, w9, H, W, CP):
    """One pallas_call: conv3x3 + per-image BN partial stats over the batch."""
    N = xp.shape[0]
    return pl.pallas_call(
        conv3x3_stats_kernel,
        grid=(N // B_TILE,),
        in_specs=[
            pl.BlockSpec((B_TILE, H + 2, W + 2, CP), lambda n: (n, 0, 0, 0)),
            pl.BlockSpec((9, CP, CP), lambda n: (0, 0, 0)),
        ],
        out_specs=(
            pl.BlockSpec((B_TILE, H, W, CP), lambda n: (n, 0, 0, 0)),
            pl.BlockSpec((B_TILE, 1, CP), lambda n: (n, 0, 0)),
            pl.BlockSpec((B_TILE, 1, CP), lambda n: (n, 0, 0)),
        ),
        out_shape=(
            jax.ShapeDtypeStruct((N, H, W, CP), jnp.bfloat16),
            jax.ShapeDtypeStruct((N, 1, CP), jnp.float32),
            jax.ShapeDtypeStruct((N, 1, CP), jnp.float32),
        ),
        compiler_params=pltpu.CompilerParams(
            dimension_semantics=("parallel",),   # shard batch across TCs
            vmem_limit_bytes=32 * 1024 * 1024,   # ~1 MiB actually used; v7x-safe
        ),
    )(xp, w9)


def _fold_bn(ssum, ssq, gamma, beta, count, C, CP):
    """Reduce per-image partial stats and fold BN into one scale/bias pair."""
    mean = jnp.sum(ssum, axis=(0, 1)) / count                  # (CP,)
    ex2 = jnp.sum(ssq, axis=(0, 1)) / count
    var = jnp.maximum(ex2 - mean * mean, 0.0)
    g = jnp.pad(gamma.astype(jnp.float32), (0, CP - C))
    b = jnp.pad(beta.astype(jnp.float32), (0, CP - C))
    scale = g * jax.lax.rsqrt(var + EPS)
    bias = b - mean * scale
    return scale, bias                                          # (CP,), (CP,)


@jax.jit
def resnet_block(x_nchw, w1, g1, b1, w2, g2, b2):
    """PyTorch NCHW/OIHW layouts in, NCHW out (training-mode BatchNorm)."""
    N, C, H, W = x_nchw.shape
    assert w1.shape[0] == C, "stride=1 / no identity_downsample => Cin == Cout"
    assert N % B_TILE == 0
    CP = ((C + LANE - 1) // LANE) * LANE                        # lane-dense channels

    x_nhwc = jnp.transpose(x_nchw.astype(jnp.float32), (0, 2, 3, 1))   # (N,H,W,C)

    def prep_w(w):
        # torch OIHW (Cout, Cin, 3, 3) -> (kh*3+kw, CinP, CoutP), bf16 for MXU.
        wt = jnp.transpose(w.astype(jnp.float32), (2, 3, 1, 0))         # (kh,kw,Ci,Co)
        wt = jnp.pad(wt, ((0, 0), (0, 0), (0, CP - C), (0, CP - C)))
        return wt.reshape(9, CP, CP).astype(jnp.bfloat16)

    w1r, w2r = prep_w(w1), prep_w(w2)
    count = float(N * H * W)

    # conv1 input: NHWC, channel-padded to CP, spatial halo pre-padded, bf16.
    # (One fused XLA transpose+pad+cast; no in-kernel halo handling needed.)
    xp = jnp.pad(x_nhwc.astype(jnp.bfloat16),
                 ((0, 0), (1, 1), (1, 1), (0, CP - C)))          # (N,H+2,W+2,CP)

    # ---- pass 1: conv1 + per-image BN1 partial stats ----------------------
    y1, s1, q1 = _conv_pass(xp, w1r, H, W, CP)
    scale1, bias1 = _fold_bn(s1, q1, g1, b1, count, C, CP)

    # BN1-FMA + ReLU + conv2's spatial halo pad: one fused XLA elementwise+pad
    # (halo must be exactly zero, so pad AFTER the FMA/ReLU).
    z1 = jnp.maximum(y1.astype(jnp.float32) * scale1.reshape(1, 1, 1, CP)
                     + bias1.reshape(1, 1, 1, CP), 0.0).astype(jnp.bfloat16)
    z1p = jnp.pad(z1, ((0, 0), (1, 1), (1, 1), (0, 0)))          # (N,H+2,W+2,CP)

    # ---- pass 2: conv2 + per-image BN2 partial stats ----------------------
    y2, s2, q2 = _conv_pass(z1p, w2r, H, W, CP)
    scale2, bias2 = _fold_bn(s2, q2, g2, b2, count, C, CP)

    # ---- epilogue: BN2-FMA + residual + ReLU, fused by XLA with the :C
    # un-pad slice and the NHWC->NCHW transpose (no extra f32 round trip).
    y2c = y2[..., :C].astype(jnp.float32)
    out_nhwc = jnp.maximum(
        y2c * scale2[:C].reshape(1, 1, 1, C) + bias2[:C].reshape(1, 1, 1, C)
        + x_nhwc, 0.0)
    return jnp.transpose(out_nhwc, (0, 3, 1, 2))                 # NCHW out


# --------------------------------------------------------------------------
# Pure-JAX reference matching the kernel's precision model:
# bf16 conv operands + bf16 inter-pass activations, f32 accumulation and BN.
# --------------------------------------------------------------------------
def reference_block(x, w1, g1, b1, w2, g2, b2):
    def conv(z, w):
        y = jax.lax.conv_general_dilated(
            z.astype(jnp.bfloat16), w.astype(jnp.bfloat16), (1, 1), 'SAME',
            dimension_numbers=('NCHW', 'OIHW', 'NCHW'),
            preferred_element_type=jnp.float32)
        return y.astype(jnp.bfloat16).astype(jnp.float32)   # y1/y2 live in bf16

    def bn(y, g, b):
        mean = y.mean(axis=(0, 2, 3), keepdims=True)
        var = ((y - mean) ** 2).mean(axis=(0, 2, 3), keepdims=True)
        return ((y - mean) * jax.lax.rsqrt(var + EPS)
                * g.reshape(1, -1, 1, 1) + b.reshape(1, -1, 1, 1))

    z = jax.nn.relu(bn(conv(x, w1), g1, b1))
    z = z.astype(jnp.bfloat16).astype(jnp.float32)           # conv2 input is bf16
    y = bn(conv(z, w2), g2, b2)
    return jax.nn.relu(y + x)


if __name__ == "__main__":
    N, C, H, W = 2, 4, 16, 16   # in_channels = out_channels = 4, stride = 1
    key = jax.random.PRNGKey(0)
    kx, kw1, kw2 = jax.random.split(key, 3)

    x = jax.random.normal(kx, (N, C, H, W), dtype=jnp.float32)
    w1 = jax.random.normal(kw1, (C, C, 3, 3), jnp.float32) * (2.0 / (9 * C)) ** 0.5
    w2 = jax.random.normal(kw2, (C, C, 3, 3), jnp.float32) * (2.0 / (9 * C)) ** 0.5
    g1 = jnp.full((C,), 1.1, jnp.float32); b1 = jnp.full((C,), 0.05, jnp.float32)
    g2 = jnp.full((C,), 0.9, jnp.float32); b2 = jnp.full((C,), -0.05, jnp.float32)

    out = jax.block_until_ready(resnet_block(x, w1, g1, b1, w2, g2, b2))
    ref = reference_block(x, w1, g1, b1, w2, g2, b2)

    assert out.shape == (N, C, H, W)
    max_err = float(jnp.max(jnp.abs(out - ref)))
    # bf16 inter-pass activations (per the review) => slightly looser than the
    # f32-intermediate rev-1 tolerance; reference uses the same precision model.
    assert jnp.allclose(out, ref, atol=2e-2, rtol=2e-2), f"max abs err {max_err}"
    print("KERNEL_OK")
</pallas_src>

<mosaic_0001>
module attributes {stable_mosaic.version = 11 : i64} {
  func.func @conv3x3_stats_kernel(%arg0: i32, %arg1: memref<1x18x18x128xbf16, #tpu.memory_space<vmem>>, %arg2: memref<9x128x128xbf16, #tpu.memory_space<vmem>>, %arg3: memref<1x16x16x128xbf16, #tpu.memory_space<vmem>>, %arg4: memref<1x1x128xf32, #tpu.memory_space<vmem>>, %arg5: memref<1x1x128xf32, #tpu.memory_space<vmem>>) attributes {dimension_semantics = [#tpu.dimension_semantics<parallel>], iteration_bounds = array<i64: 2>, scalar_prefetch = 0 : i64, scratch_operands = 0 : i64, tpu.core_type = #tpu.core_type<tc>, window_params = [{transform_indices = @transform_0, window_bounds = array<i64: 1, 18, 18, 128>}, {pipeline_mode = #tpu.pipeline_mode<synchronous>, transform_indices = @transform_1, window_bounds = array<i64: 9, 128, 128>}, {transform_indices = @transform_2, window_bounds = array<i64: 1, 16, 16, 128>}, {transform_indices = @transform_3, window_bounds = array<i64: 1, 1, 128>}, {transform_indices = @transform_4, window_bounds = array<i64: 1, 1, 128>}]} {
    %cst = arith.constant 0.000000e+00 : f32
    %0 = vector.broadcast %cst : f32 to vector<256x128xf32>
    %c0 = arith.constant 0 : index
    %c0_0 = arith.constant 0 : index
    %c0_1 = arith.constant 0 : index
    %c0_2 = arith.constant 0 : index
    %1 = vector.load %arg1[%c0, %c0_0, %c0_1, %c0_2] : memref<1x18x18x128xbf16, #tpu.memory_space<vmem>>, vector<1x16x16x128xbf16>
    %2 = vector.shape_cast %1 : vector<1x16x16x128xbf16> to vector<16x16x128xbf16>
    %3 = vector.shape_cast %2 : vector<16x16x128xbf16> to vector<256x128xbf16>
    %c0_3 = arith.constant 0 : index
    %c0_4 = arith.constant 0 : index
    %c0_5 = arith.constant 0 : index
    %4 = vector.load %arg2[%c0_3, %c0_4, %c0_5] : memref<9x128x128xbf16, #tpu.memory_space<vmem>>, vector<1x128x128xbf16>
    %5 = vector.shape_cast %4 : vector<1x128x128xbf16> to vector<128x128xbf16>
    %cst_6 = arith.constant dense<0.000000e+00> : vector<256x128xf32>
    %6 = tpu.matmul %3, %5, %cst_6 {dimension_numbers = #tpu.dot_dimension_numbers<[1], [0], [0], [1], [0, 0, 1, 1], [], []>} : vector<256x128xbf16>, vector<128x128xbf16>, vector<256x128xf32> -> vector<256x128xf32>
    %7 = arith.addf %0, %6 : vector<256x128xf32>
    %c0_7 = arith.constant 0 : index
    %c0_8 = arith.constant 0 : index
    %c1 = arith.constant 1 : index
    %c0_9 = arith.constant 0 : index
    %8 = vector.load %arg1[%c0_7, %c0_8, %c1, %c0_9] : memref<1x18x18x128xbf16, #tpu.memory_space<vmem>>, vector<1x16x16x128xbf16>
    %9 = vector.shape_cast %8 : vector<1x16x16x128xbf16> to vector<16x16x128xbf16>
    %10 = vector.shape_cast %9 : vector<16x16x128xbf16> to vector<256x128xbf16>
    %c1_10 = arith.constant 1 : index
    %c0_11 = arith.constant 0 : index
    %c0_12 = arith.constant 0 : index
    %11 = vector.load %arg2[%c1_10, %c0_11, %c0_12] : memref<9x128x128xbf16, #tpu.memory_space<vmem>>, vector<1x128x128xbf16>
    %12 = vector.shape_cast %11 : vector<1x128x128xbf16> to vector<128x128xbf16>
    %cst_13 = arith.constant dense<0.000000e+00> : vector<256x128xf32>
    %13 = tpu.matmul %10, %12, %cst_13 {dimension_numbers = #tpu.dot_dimension_numbers<[1], [0], [0], [1], [0, 0, 1, 1], [], []>} : vector<256x128xbf16>, vector<128x128xbf16>, vector<256x128xf32> -> vector<256x128xf32>
    %14 = arith.addf %7, %13 : vector<256x128xf32>
    %c0_14 = arith.constant 0 : index
    %c0_15 = arith.constant 0 : index
    %c2 = arith.constant 2 : index
    %c0_16 = arith.constant 0 : index
    %15 = vector.load %arg1[%c0_14, %c0_15, %c2, %c0_16] : memref<1x18x18x128xbf16, #tpu.memory_space<vmem>>, vector<1x16x16x128xbf16>
    %16 = vector.shape_cast %15 : vector<1x16x16x128xbf16> to vector<16x16x128xbf16>
    %17 = vector.shape_cast %16 : vector<16x16x128xbf16> to vector<256x128xbf16>
    %c2_17 = arith.constant 2 : index
    %c0_18 = arith.constant 0 : index
    %c0_19 = arith.constant 0 : index
    %18 = vector.load %arg2[%c2_17, %c0_18, %c0_19] : memref<9x128x128xbf16, #tpu.memory_space<vmem>>, vector<1x128x128xbf16>
    %19 = vector.shape_cast %18 : vector<1x128x128xbf16> to vector<128x128xbf16>
    %cst_20 = arith.constant dense<0.000000e+00> : vector<256x128xf32>
    %20 = tpu.matmul %17, %19, %cst_20 {dimension_numbers = #tpu.dot_dimension_numbers<[1], [0], [0], [1], [0, 0, 1, 1], [], []>} : vector<256x128xbf16>, vector<128x128xbf16>, vector<256x128xf32> -> vector<256x128xf32>
    %21 = arith.addf %14, %20 : vector<256x128xf32>
    %c0_21 = arith.constant 0 : index
    %c1_22 = arith.constant 1 : index
    %c0_23 = arith.constant 0 : index
    %c0_24 = arith.constant 0 : index
    %22 = vector.load %arg1[%c0_21, %c1_22, %c0_23, %c0_24] : memref<1x18x18x128xbf16, #tpu.memory_space<vmem>>, vector<1x16x16x128xbf16>
    %23 = vector.shape_cast %22 : vector<1x16x16x128xbf16> to vector<16x16x128xbf16>
    %24 = vector.shape_cast %23 : vector<16x16x128xbf16> to vector<256x128xbf16>
    %c3 = arith.constant 3 : index
    %c0_25 = arith.constant 0 : index
    %c0_26 = arith.constant 0 : index
    %25 = vector.load %arg2[%c3, %c0_25, %c0_26] : memref<9x128x128xbf16, #tpu.memory_space<vmem>>, vector<1x128x128xbf16>
    %26 = vector.shape_cast %25 : vector<1x128x128xbf16> to vector<128x128xbf16>
    %cst_27 = arith.constant dense<0.000000e+00> : vector<256x128xf32>
    %27 = tpu.matmul %24, %26, %cst_27 {dimension_numbers = #tpu.dot_dimension_numbers<[1], [0], [0], [1], [0, 0, 1, 1], [], []>} : vector<256x128xbf16>, vector<128x128xbf16>, vector<256x128xf32> -> vector<256x128xf32>
    %28 = arith.addf %21, %27 : vector<256x128xf32>
    %c0_28 = arith.constant 0 : index
    %c1_29 = arith.constant 1 : index
    %c1_30 = arith.constant 1 : index
    %c0_31 = arith.constant 0 : index
    %29 = vector.load %arg1[%c0_28, %c1_29, %c1_30, %c0_31] : memref<1x18x18x128xbf16, #tpu.memory_space<vmem>>, vector<1x16x16x128xbf16>
    %30 = vector.shape_cast %29 : vector<1x16x16x128xbf16> to vector<16x16x128xbf16>
    %31 = vector.shape_cast %30 : vector<16x16x128xbf16> to vector<256x128xbf16>
    %c4 = arith.constant 4 : index
    %c0_32 = arith.constant 0 : index
    %c0_33 = arith.constant 0 : index
    %32 = vector.load %arg2[%c4, %c0_32, %c0_33] : memref<9x128x128xbf16, #tpu.memory_space<vmem>>, vector<1x128x128xbf16>
    %33 = vector.shape_cast %32 : vector<1x128x128xbf16> to vector<128x128xbf16>
    %cst_34 = arith.constant dense<0.000000e+00> : vector<256x128xf32>
    %34 = tpu.matmul %31, %33, %cst_34 {dimension_numbers = #tpu.dot_dimension_numbers<[1], [0], [0], [1], [0, 0, 1, 1], [], []>} : vector<256x128xbf16>, vector<128x128xbf16>, vector<256x128xf32> -> vector<256x128xf32>
    %35 = arith.addf %28, %34 : vector<256x128xf32>
    %c0_35 = arith.constant 0 : index
    %c1_36 = arith.constant 1 : index
    %c2_37 = arith.constant 2 : index
    %c0_38 = arith.constant 0 : index
    %36 = vector.load %arg1[%c0_35, %c1_36, %c2_37, %c0_38] : memref<1x18x18x128xbf16, #tpu.memory_space<vmem>>, vector<1x16x16x128xbf16>
    %37 = vector.shape_cast %36 : vector<1x16x16x128xbf16> to vector<16x16x128xbf16>
    %38 = vector.shape_cast %37 : vector<16x16x128xbf16> to vector<256x128xbf16>
    %c5 = arith.constant 5 : index
    %c0_39 = arith.constant 0 : index
    %c0_40 = arith.constant 0 : index
    %39 = vector.load %arg2[%c5, %c0_39, %c0_40] : memref<9x128x128xbf16, #tpu.memory_space<vmem>>, vector<1x128x128xbf16>
    %40 = vector.shape_cast %39 : vector<1x128x128xbf16> to vector<128x128xbf16>
    %cst_41 = arith.constant dense<0.000000e+00> : vector<256x128xf32>
    %41 = tpu.matmul %38, %40, %cst_41 {dimension_numbers = #tpu.dot_dimension_numbers<[1], [0], [0], [1], [0, 0, 1, 1], [], []>} : vector<256x128xbf16>, vector<128x128xbf16>, vector<256x128xf32> -> vector<256x128xf32>
    %42 = arith.addf %35, %41 : vector<256x128xf32>
    %c0_42 = arith.constant 0 : index
    %c2_43 = arith.constant 2 : index
    %c0_44 = arith.constant 0 : index
    %c0_45 = arith.constant 0 : index
    %43 = vector.load %arg1[%c0_42, %c2_43, %c0_44, %c0_45] : memref<1x18x18x128xbf16, #tpu.memory_space<vmem>>, vector<1x16x16x128xbf16>
    %44 = vector.shape_cast %43 : vector<1x16x16x128xbf16> to vector<16x16x128xbf16>
    %45 = vector.shape_cast %44 : vector<16x16x128xbf16> to vector<256x128xbf16>
    %c6 = arith.constant 6 : index
    %c0_46 = arith.constant 0 : index
    %c0_47 = arith.constant 0 : index
    %46 = vector.load %arg2[%c6, %c0_46, %c0_47] : memref<9x128x128xbf16, #tpu.memory_space<vmem>>, vector<1x128x128xbf16>
    %47 = vector.shape_cast %46 : vector<1x128x128xbf16> to vector<128x128xbf16>
    %cst_48 = arith.constant dense<0.000000e+00> : vector<256x128xf32>
    %48 = tpu.matmul %45, %47, %cst_48 {dimension_numbers = #tpu.dot_dimension_numbers<[1], [0], [0], [1], [0, 0, 1, 1], [], []>} : vector<256x128xbf16>, vector<128x128xbf16>, vector<256x128xf32> -> vector<256x128xf32>
    %49 = arith.addf %42, %48 : vector<256x128xf32>
    %c0_49 = arith.constant 0 : index
    %c2_50 = arith.constant 2 : index
    %c1_51 = arith.constant 1 : index
    %c0_52 = arith.constant 0 : index
    %50 = vector.load %arg1[%c0_49, %c2_50, %c1_51, %c0_52] : memref<1x18x18x128xbf16, #tpu.memory_space<vmem>>, vector<1x16x16x128xbf16>
    %51 = vector.shape_cast %50 : vector<1x16x16x128xbf16> to vector<16x16x128xbf16>
    %52 = vector.shape_cast %51 : vector<16x16x128xbf16> to vector<256x128xbf16>
    %c7 = arith.constant 7 : index
    %c0_53 = arith.constant 0 : index
    %c0_54 = arith.constant 0 : index
    %53 = vector.load %arg2[%c7, %c0_53, %c0_54] : memref<9x128x128xbf16, #tpu.memory_space<vmem>>, vector<1x128x128xbf16>
    %54 = vector.shape_cast %53 : vector<1x128x128xbf16> to vector<128x128xbf16>
    %cst_55 = arith.constant dense<0.000000e+00> : vector<256x128xf32>
    %55 = tpu.matmul %52, %54, %cst_55 {dimension_numbers = #tpu.dot_dimension_numbers<[1], [0], [0], [1], [0, 0, 1, 1], [], []>} : vector<256x128xbf16>, vector<128x128xbf16>, vector<256x128xf32> -> vector<256x128xf32>
    %56 = arith.addf %49, %55 : vector<256x128xf32>
    %c0_56 = arith.constant 0 : index
    %c2_57 = arith.constant 2 : index
    %c2_58 = arith.constant 2 : index
    %c0_59 = arith.constant 0 : index
    %57 = vector.load %arg1[%c0_56, %c2_57, %c2_58, %c0_59] : memref<1x18x18x128xbf16, #tpu.memory_space<vmem>>, vector<1x16x16x128xbf16>
    %58 = vector.shape_cast %57 : vector<1x16x16x128xbf16> to vector<16x16x128xbf16>
    %59 = vector.shape_cast %58 : vector<16x16x128xbf16> to vector<256x128xbf16>
    %c8 = arith.constant 8 : index
    %c0_60 = arith.constant 0 : index
    %c0_61 = arith.constant 0 : index
    %60 = vector.load %arg2[%c8, %c0_60, %c0_61] : memref<9x128x128xbf16, #tpu.memory_space<vmem>>, vector<1x128x128xbf16>
    %61 = vector.shape_cast %60 : vector<1x128x128xbf16> to vector<128x128xbf16>
    %cst_62 = arith.constant dense<0.000000e+00> : vector<256x128xf32>
    %62 = tpu.matmul %59, %61, %cst_62 {dimension_numbers = #tpu.dot_dimension_numbers<[1], [0], [0], [1], [0, 0, 1, 1], [], []>} : vector<256x128xbf16>, vector<128x128xbf16>, vector<256x128xf32> -> vector<256x128xf32>
    %63 = arith.addf %56, %62 : vector<256x128xf32>
    %64 = vector.shape_cast %63 : vector<256x128xf32> to vector<16x16x128xf32>
    %65 = arith.truncf %64 : vector<16x16x128xf32> to vector<16x16x128xbf16>
    %c0_63 = arith.constant 0 : index
    %c0_64 = arith.constant 0 : index
    %c0_65 = arith.constant 0 : index
    %c0_66 = arith.constant 0 : index
    %66 = vector.load %arg3[%c0_63, %c0_64, %c0_65, %c0_66] : memref<1x16x16x128xbf16, #tpu.memory_space<vmem>>, vector<1x16x16x128xbf16>
    %67 = vector.shape_cast %66 : vector<1x16x16x128xbf16> to vector<16x16x128xbf16>
    %68 = vector.shape_cast %65 : vector<16x16x128xbf16> to vector<1x16x16x128xbf16>
    tpu.vector_store %arg3[%c0_63, %c0_64, %c0_65, %c0_66], %68 {strides = array<i32>} : memref<1x16x16x128xbf16, #tpu.memory_space<vmem>>, vector<1x16x16x128xbf16>,
    %cst_67 = arith.constant dense<0.000000e+00> : vector<128xf32>
    %69 = vector.multi_reduction <add>, %63, %cst_67 [0] : vector<256x128xf32> to vector<128xf32>
    %70 = vector.shape_cast %69 : vector<128xf32> to vector<1x128xf32>
    %c0_68 = arith.constant 0 : index
    %c0_69 = arith.constant 0 : index
    %c0_70 = arith.constant 0 : index
    %71 = vector.load %arg4[%c0_68, %c0_69, %c0_70] : memref<1x1x128xf32, #tpu.memory_space<vmem>>, vector<1x1x128xf32>
    %72 = vector.shape_cast %71 : vector<1x1x128xf32> to vector<1x128xf32>
    %73 = vector.shape_cast %70 : vector<1x128xf32> to vector<1x1x128xf32>
    tpu.vector_store %arg4[%c0_68, %c0_69, %c0_70], %73 {strides = array<i32>} : memref<1x1x128xf32, #tpu.memory_space<vmem>>, vector<1x1x128xf32>,
    %74 = arith.mulf %63, %63 : vector<256x128xf32>
    %cst_71 = arith.constant dense<0.000000e+00> : vector<128xf32>
    %75 = vector.multi_reduction <add>, %74, %cst_71 [0] : vector<256x128xf32> to vector<128xf32>
    %76 = vector.shape_cast %75 : vector<128xf32> to vector<1x128xf32>
    %c0_72 = arith.constant 0 : index
    %c0_73 = arith.constant 0 : index
    %c0_74 = arith.constant 0 : index
    %77 = vector.load %arg5[%c0_72, %c0_73, %c0_74] : memref<1x1x128xf32, #tpu.memory_space<vmem>>, vector<1x1x128xf32>
    %78 = vector.shape_cast %77 : vector<1x1x128xf32> to vector<1x128xf32>
    %79 = vector.shape_cast %76 : vector<1x128xf32> to vector<1x1x128xf32>
    tpu.vector_store %arg5[%c0_72, %c0_73, %c0_74], %79 {strides = array<i32>} : memref<1x1x128xf32, #tpu.memory_space<vmem>>, vector<1x1x128xf32>,
    return
  }
  func.func @transform_0(%arg0: i32) -> (i32, i32, i32, i32) {
    %c0_i32 = arith.constant 0 : i32
    %c0_i32_0 = arith.constant 0 : i32
    %c0_i32_1 = arith.constant 0 : i32
    %c0_i32_2 = arith.constant 0 : i32
    return %arg0, %c0_i32, %c0_i32_0, %c0_i32_1 : i32, i32, i32, i32
  }
  func.func @transform_1(%arg0: i32) -> (i32, i32, i32) {
    %c0_i32 = arith.constant 0 : i32
    %c0_i32_0 = arith.constant 0 : i32
    %c0_i32_1 = arith.constant 0 : i32
    %c0_i32_2 = arith.constant 0 : i32
    return %c0_i32, %c0_i32_0, %c0_i32_1 : i32, i32, i32
  }
  func.func @transform_2(%arg0: i32) -> (i32, i32, i32, i32) {
    %c0_i32 = arith.constant 0 : i32
    %c0_i32_0 = arith.constant 0 : i32
    %c0_i32_1 = arith.constant 0 : i32
    %c0_i32_2 = arith.constant 0 : i32
    return %arg0, %c0_i32, %c0_i32_0, %c0_i32_1 : i32, i32, i32, i32
  }
  func.func @transform_3(%arg0: i32) -> (i32, i32, i32) {
    %c0_i32 = arith.constant 0 : i32
    %c0_i32_0 = arith.constant 0 : i32
    %c0_i32_1 = arith.constant 0 : i32
    return %arg0, %c0_i32, %c0_i32_0 : i32, i32, i32
  }
  func.func @transform_4(%arg0: i32) -> (i32, i32, i32) {
    %c0_i32 = arith.constant 0 : i32
    %c0_i32_0 = arith.constant 0 : i32
    %c0_i32_1 = arith.constant 0 : i32
    return %arg0, %c0_i32, %c0_i32_0 : i32, i32, i32
  }
}

</mosaic_0001>

<llo_original>
// kernel: resnet_block.2
$region0: #{resnet_block.2}
  #allocation0 [shape = 'u32[]', space=smem, size = 0x4, offset = 0x4, fixed_abs, tag = 'smem constant byte address 0x4 - core index']
  #allocation1 [shape = 'u32[144,128]{1,0:T(1,128)}', space=vmem, size = 0x12000, scoped, tag = 'internal scratch']
  %s0 = inlined_call_operand.vmem [shape: bf16[2,18,18,128], index: 0, kind: input, shape index: {}]
  %s1 = inlined_call_operand.vmem [shape: bf16[9,128,128], index: 1, kind: input, shape index: {}]
  %s2 = inlined_call_operand.vmem [shape: bf16[2,16,16,128], index: 2, kind: output, shape index: {0}]
  %s3 = inlined_call_operand.vmem [shape: f32[2,1,128], index: 3, kind: output, shape index: {1}]
  %s4 = inlined_call_operand.vmem [shape: f32[2,1,128], index: 4, kind: output, shape index: {2}]
  %5 = xla_tuple %s2, %s3, %s4
  %s6 = sld [smem:[#allocation0]]
  $region57: #{resnet_block.2} parent=0
    _
  %s8 = ssub.s32 1, %s6
  %s9 = scalar_select 0, %s8, %s6
  loop: start=0, step=1, limit=4
  $region2: #{resnet_block.2} parent=0 // loop_pre_header
    _
  $region3: #{resnet_block.2} parent=0 // loop_header
    %s11 = sphi 0, %s15
    %p12 = scmp.ge.s32.totalorder %s11, 4
    %s21 = sphi 0, %s23
    %s24 = sphi 0, %s21
    %s25 = sphi 0, %s24
    %s41 = sphi 0, %s25
    %s45 = sphi 0, %s45
    %s47 = sphi 0, %s45
    %s48 = sphi 0, %s47
    %s62 = sphi 0, %s48
    %s68 = sphi 0, %s70
    %s71 = sphi 0, %s68
    %s72 = sphi 0, %s71
    %s88 = sphi 0, %s72
    %s94 = sphi 0, %s96
    %s97 = sphi 0, %s94
    %s98 = sphi 0, %s97
    %s114 = sphi 0, %s98
    %s120 = sphi 0, %s122
    %s123 = sphi 0, %s120
    %s124 = sphi 0, %s123
    %s140 = sphi 0, %s124
  $region4: #{resnet_block.2} parent=0 // loop_header_branch
    %14 = sbr.rel (%p12) target = $region8
  $region5: #{resnet_block.2} parent=0 // loop_body
    %s16 = ssub.s32 %s11, 1
    %s17 = ssub.s32 %s11, 2
    %s18 = sadd.s32 %s11, 1
    %s19 = ssub.s32 %s11, %s18
    %p20 = scmp.eq.s32.totalorder %s19, 0
    %s22 = sadd.s32 %s21, 1
    %s23 = scalar_select %p20, %s21, %s22
    %p26 = pneg %p20
    %p27 = scmp.eq.s32.totalorder %s11, 1
    %p28 = por %p26, %p27
    %p29 = scmp.ne.s32.totalorder %s21, %s24
    %p30 = scmp.eq.s32.totalorder %s11, 0
    %p31 = por %p29, %p30
    %p32 = scmp.ne.s32.totalorder %s21, %s24
    %p33 = scmp.eq.s32.totalorder %s16, 1
    %p34 = por %p32, %p33
    %p35 = scmp.ne.s32.totalorder %s24, %s25
    %p36 = scmp.eq.s32.totalorder %s16, 0
    %p37 = por %p35, %p36
    %p38 = scmp.ne.s32.totalorder %s24, %s25
    %p39 = scmp.eq.s32.totalorder %s17, 1
    %p40 = por %p38, %p39
    %p42 = scmp.ne.s32.totalorder %s25, %s41
    %p43 = scmp.eq.s32.totalorder %s17, 0
    %p44 = por %p42, %p43
    %s46 = sadd.s32 %s45, 1
    %p49 = scmp.eq.s32.totalorder %s11, 1
    %p50 = scmp.ne.s32.totalorder %s45, %s47
    %p51 = scmp.eq.s32.totalorder %s11, 0
    %p52 = por %p50, %p51
    %p53 = scmp.ne.s32.totalorder %s45, %s47
    %p54 = scmp.eq.s32.totalorder %s16, 1
    %p55 = por %p53, %p54
    %p56 = scmp.ne.s32.totalorder %s47, %s48
    %p57 = scmp.eq.s32.totalorder %s16, 0
    %p58 = por %p56, %p57
    %p59 = scmp.ne.s32.totalorder %s47, %s48
    %p60 = scmp.eq.s32.totalorder %s17, 1
    %p61 = por %p59, %p60
    %p63 = scmp.ne.s32.totalorder %s48, %s62
    %p64 = scmp.eq.s32.totalorder %s17, 0
    %p65 = por %p63, %p64
    %s66 = ssub.s32 %s11, %s18
    %p67 = scmp.eq.s32.totalorder %s66, 0
    %s69 = sadd.s32 %s68, 1
    %s70 = scalar_select %p67, %s68, %s69
    %p73 = pneg %p67
    %p74 = scmp.eq.s32.totalorder %s11, 1
    %p75 = por %p73, %p74
    %p76 = scmp.ne.s32.totalorder %s68, %s71
    %p77 = scmp.eq.s32.totalorder %s11, 0
    %p78 = por %p76, %p77
    %p79 = scmp.ne.s32.totalorder %s68, %s71
    %p80 = scmp.eq.s32.totalorder %s16, 1
    %p81 = por %p79, %p80
    %p82 = scmp.ne.s32.totalorder %s71, %s72
    %p83 = scmp.eq.s32.totalorder %s16, 0
    %p84 = por %p82, %p83
    %p85 = scmp.ne.s32.totalorder %s71, %s72
    %p86 = scmp.eq.s32.totalorder %s17, 1
    %p87 = por %p85, %p86
    %p89 = scmp.ne.s32.totalorder %s72, %s88
    %p90 = scmp.eq.s32.totalorder %s17, 0
    %p91 = por %p89, %p90
    %s92 = ssub.s32 %s11, %s18
    %p93 = scmp.eq.s32.totalorder %s92, 0
    %s95 = sadd.s32 %s94, 1
    %s96 = scalar_select %p93, %s94, %s95
    %p99 = pneg %p93
    %p100 = scmp.eq.s32.totalorder %s11, 1
    %p101 = por %p99, %p100
    %p102 = scmp.ne.s32.totalorder %s94, %s97
    %p103 = scmp.eq.s32.totalorder %s11, 0
    %p104 = por %p102, %p103
    %p105 = scmp.ne.s32.totalorder %s94, %s97
    %p106 = scmp.eq.s32.totalorder %s16, 1
    %p107 = por %p105, %p106
    %p108 = scmp.ne.s32.totalorder %s97, %s98
    %p109 = scmp.eq.s32.totalorder %s16, 0
    %p110 = por %p108, %p109
    %p111 = scmp.ne.s32.totalorder %s97, %s98
    %p112 = scmp.eq.s32.totalorder %s17, 1
    %p113 = por %p111, %p112
    %p115 = scmp.ne.s32.totalorder %s98, %s114
    %p116 = scmp.eq.s32.totalorder %s17, 0
    %p117 = por %p115, %p116
    %s118 = ssub.s32 %s11, %s18
    %p119 = scmp.eq.s32.totalorder %s118, 0
    %s121 = sadd.s32 %s120, 1
    %s122 = scalar_select %p119, %s120, %s121
    %p125 = pneg %p119
    %p126 = scmp.eq.s32.totalorder %s11, 1
    %p127 = por %p125, %p126
    %p128 = scmp.ne.s32.totalorder %s120, %s123
    %p129 = scmp.eq.s32.totalorder %s11, 0
    %p130 = por %p128, %p129
    %p131 = scmp.ne.s32.totalorder %s120, %s123
    %p132 = scmp.eq.s32.totalorder %s16, 1
    %p133 = por %p131, %p132
    %p134 = scmp.ne.s32.totalorder %s123, %s124
    %p135 = scmp.eq.s32.totalorder %s16, 0
    %p136 = por %p134, %p135
    %p137 = scmp.ne.s32.totalorder %s123, %s124
    %p138 = scmp.eq.s32.totalorder %s17, 1
    %p139 = por %p137, %p138
    %p141 = scmp.ne.s32.totalorder %s124, %s140
    %p142 = scmp.eq.s32.totalorder %s17, 0
    %p143 = por %p141, %p142
    %p144 = scmp.le.s32.totalorder 1, %s11
    %p145 = scmp.lt.s32.totalorder %s11, 3
    %p146 = pnand %p144, %p145
    %p147 = pneg %p146
    // Predicated region
    $region9: #{resnet_block.2} parent=5 // pred_check
      _
    $region10: #{resnet_block.2} parent=5 // pred_check_branch
      %149 = sbr.rel (%p146) target = $region12
    $region11: #{resnet_block.2} parent=5 // pred_region
      %s150 = ssub.s32 %s11, 1
      // Predicated region
      $region13: #{resnet_block.2} parent=11 // pred_check
        %p151 = pneg %p58
      $region14: #{resnet_block.2} parent=11 // pred_check_branch
        %153 = sbr.rel (%p151) target = $region16
      $region15: #{resnet_block.2} parent=11 // pred_region
        _
      $region16: #{resnet_block.2} parent=11 // pred_fallthru
        _
    $region12: #{resnet_block.2} parent=5 // pred_fallthru
      _
    %p154 = scmp.lt.s32.totalorder %s11, 2
    // Predicated region
    $region17: #{resnet_block.2} parent=5 // pred_check
      %p155 = pneg %p154
    $region18: #{resnet_block.2} parent=5 // pred_check_branch
      %157 = sbr.rel (%p155) target = $region20
    $region19: #{resnet_block.2} parent=5 // pred_region
      // Predicated region
      $region21: #{resnet_block.2} parent=19 // pred_check
        %p158 = pneg %p31
      $region22: #{resnet_block.2} parent=19 // pred_check_branch
        %160 = sbr.rel (%p158) target = $region24
      $region23: #{resnet_block.2} parent=19 // pred_region
        %p161 = scmp.lt.s32.totalorder %s11, 1
        %s162 = scalar_select %p161, %s11, 1
        %s163 = smul.addr %s162, 54
        %s164 = smul.addr %s163, 4
        %s165 = scalar_lea.vmem %s0, %s164
      $region24: #{resnet_block.2} parent=19 // pred_fallthru
        _
    $region20: #{resnet_block.2} parent=5 // pred_fallthru
      _
    %p166 = scmp.le.s32.totalorder 1, %s11
    %p167 = scmp.lt.s32.totalorder %s11, 3
    %p168 = pnand %p166, %p167
    %p169 = pneg %p168
    // Predicated region
    $region25: #{resnet_block.2} parent=5 // pred_check
      _
    $region26: #{resnet_block.2} parent=5 // pred_check_branch
      %171 = sbr.rel (%p168) target = $region28
    $region27: #{resnet_block.2} parent=5 // pred_region
      %s172 = ssub.s32 %s11, 1
      %p173 = scmp.lt.s32.totalorder %s16, 1
      %s174 = scalar_select %p173, %s16, 1
      %s175 = smul.addr %s174, 54
      %s176 = smul.addr %s175, 4
      %s177 = scalar_lea.vmem %s0, %s176
      %p178 = pneg %p37
      %p179 = pneg %p34
      %p180 = pneg %p58
      %p181 = pneg %p55
      %p182 = pneg %p84
      %p183 = pneg %p81
      %p184 = scmp.lt.s32.totalorder %s16, 1
      %s185 = scalar_select %p184, %s16, 1
      %s186 = smul.addr %s185, 32
      %s187 = smul.addr %s186, 4
      %s188 = scalar_lea.vmem %s2, %s187
      %p189 = pneg %p110
      %p190 = pneg %p107
      %p191 = scmp.lt.s32.totalorder %s16, 1
      %s192 = scalar_select %p191, %s16, 1
      %s193 = scalar_lea.vmem %s3, %s192
      %p194 = pneg %p136
      %p195 = pneg %p133
      %p196 = scmp.lt.s32.totalorder %s16, 1
      %s197 = scalar_select %p196, %s16, 1
      %s198 = scalar_lea.vmem %s4, %s197
      %p199 = scmp.lt.s32.totalorder %s16, 1
      %s200 = scalar_select %p199, %s16, 1
      %s201 = smul.addr %s200, 54
      %s202 = smul.addr %s201, 4
      %s203 = scalar_lea.vmem %s0, %s202
      %p204 = scmp.lt.s32.totalorder %s16, 1
      %s205 = scalar_select %p204, %s16, 1
      %s206 = smul.addr %s205, 32
      %s207 = smul.addr %s206, 4
      %s208 = scalar_lea.vmem %s2, %s207
      %p209 = scmp.lt.s32.totalorder %s16, 1
      %s210 = scalar_select %p209, %s16, 1
      %s211 = scalar_lea.vmem %s3, %s210
      %p212 = scmp.lt.s32.totalorder %s16, 1
      %s213 = scalar_select %p212, %s16, 1
      %s214 = scalar_lea.vmem %s4, %s213
      %v216 = vld [vmem:[%s203] sm:$0xf]
      %v217 = vld [vmem:[%s203 + $0x4] sm:$0xf]
      %v218 = vld [vmem:[%s203 + $0xc] sm:$0xf]
      %v219 = vld [vmem:[%s203 + $0x10] sm:$0xf]
      %v220 = vld [vmem:[%s203 + $0x18] sm:$0xf]
      %v221 = vld [vmem:[%s203 + $0x1c] sm:$0xf]
      %v222 = vld [vmem:[%s203 + $0x24] sm:$0xf]
      %v223 = vld [vmem:[%s203 + $0x28] sm:$0xf]
      %v224 = vld [vmem:[%s203 + $0x30] sm:$0xf]
      %v225 = vld [vmem:[%s203 + $0x34] sm:$0xf]
      %v226 = vld [vmem:[%s203 + $0x3c] sm:$0xf]
      %v227 = vld [vmem:[%s203 + $0x40] sm:$0xf]
      %v228 = vld [vmem:[%s203 + $0x48] sm:$0xf]
      %v229 = vld [vmem:[%s203 + $0x4c] sm:$0xf]
      %v230 = vld [vmem:[%s203 + $0x54] sm:$0xf]
      %v231 = vld [vmem:[%s203 + $0x58] sm:$0xf]
      %v232 = vld [vmem:[%s203 + $0x60] sm:$0xf]
      %v233 = vld [vmem:[%s203 + $0x64] sm:$0xf]
      %v234 = vld [vmem:[%s203 + $0x6c] sm:$0xf]
      %v235 = vld [vmem:[%s203 + $0x70] sm:$0xf]
      %v236 = vld [vmem:[%s203 + $0x78] sm:$0xf]
      %v237 = vld [vmem:[%s203 + $0x7c] sm:$0xf]
      %v238 = vld [vmem:[%s203 + $0x84] sm:$0xf]
      %v239 = vld [vmem:[%s203 + $0x88] sm:$0xf]
      %v240 = vld [vmem:[%s203 + $0x90] sm:$0xf]
      %v241 = vld [vmem:[%s203 + $0x94] sm:$0xf]
      %v242 = vld [vmem:[%s203 + $0x9c] sm:$0xf]
      %v243 = vld [vmem:[%s203 + $0xa0] sm:$0xf]
      %v244 = vld [vmem:[%s203 + $0xa8] sm:$0xf]
      %v245 = vld [vmem:[%s203 + $0xac] sm:$0xf]
      %v246 = vld [vmem:[%s203 + $0xb4] sm:$0xf]
      %v247 = vld [vmem:[%s203 + $0xb8] sm:$0xf]
      %v248 = vld [vmem:[%s1] sm:$0xf]
      %v249 = vld [vmem:[%s1 + $0x4] sm:$0xf]
      %v250 = vld [vmem:[%s1 + $0x8] sm:$0xf]
      %v251 = vld [vmem:[%s1 + $0xc] sm:$0xf]
      %v252 = vld [vmem:[%s1 + $0x10] sm:$0xf]
      %v253 = vld [vmem:[%s1 + $0x14] sm:$0xf]
      %v254 = vld [vmem:[%s1 + $0x18] sm:$0xf]
      %v255 = vld [vmem:[%s1 + $0x1c] sm:$0xf]
      %v256 = vld [vmem:[%s1 + $0x20] sm:$0xf]
      %v257 = vld [vmem:[%s1 + $0x24] sm:$0xf]
      %v258 = vld [vmem:[%s1 + $0x28] sm:$0xf]
      %v259 = vld [vmem:[%s1 + $0x2c] sm:$0xf]
      %v260 = vld [vmem:[%s1 + $0x30] sm:$0xf]
      %v261 = vld [vmem:[%s1 + $0x34] sm:$0xf]
      %v262 = vld [vmem:[%s1 + $0x38] sm:$0xf]
      %v263 = vld [vmem:[%s1 + $0x3c] sm:$0xf]
      %v264 = vld [vmem:[%s203 + $0x8] sm:$0x1]
      %v265 = vld [vmem:[%s203 + $0x14] sm:$0x1]
      %v266 = vld [vmem:[%s203 + $0x20] sm:$0x1]
      %v267 = vld [vmem:[%s203 + $0x2c] sm:$0x1]
      %v268 = vld [vmem:[%s203 + $0x38] sm:$0x1]
      %v269 = vld [vmem:[%s203 + $0x44] sm:$0x1]
      %v270 = vld [vmem:[%s203 + $0x50] sm:$0x1]
      %v271 = vld [vmem:[%s203 + $0x5c] sm:$0x1]
      %v272 = vld [vmem:[%s203 + $0x68] sm:$0x1]
      %v273 = vld [vmem:[%s203 + $0x74] sm:$0x1]
      %v274 = vld [vmem:[%s203 + $0x80] sm:$0x1]
      %v275 = vld [vmem:[%s203 + $0x8c] sm:$0x1]
      %v276 = vld [vmem:[%s203 + $0x98] sm:$0x1]
      %v277 = vld [vmem:[%s203 + $0xa4] sm:$0x1]
      %v278 = vld [vmem:[%s203 + $0xb0] sm:$0x1]
      %v279 = vld [vmem:[%s203 + $0xbc] sm:$0x1]
      %vm280 = vsmask.f32 3328
      %vm281 = vsmask.f32 7440
      %vm282 = vmor %vm280, %vm281
      %v284 = vshrl.u32 %v216, 16
      %v286 = vrot.slane %v284, 4
      %v287 = vshll.u32 %v216, 16
      %v289 = vrot.slane %v287, 5
      %v290 = vor.u32 %v286, %v289
      %v291 = vrot.slane %v290, 4
      %v293 = vshll.u32 %v217, 16
      %v295 = vrot.slane %v293, 5
      %v296 = vsel %vm282, %v291, %v295
      %v297 = vshrl.u32 %v217, 16
      %v299 = vrot.slane %v297, 4
      %v300 = vor.u32 %v299, %v295
      %v301 = vrot.slane %v300, 4
      %v303 = vshll.u32 %v264, 16
      %v305 = vrot.slane %v303, 5
      %v306 = vsel %vm282, %v301, %v305
      %v308 = vshrl.u32 %v218, 16
      %v310 = vrot.slane %v308, 4
      %v311 = vshll.u32 %v218, 16
      %v313 = vrot.slane %v311, 5
      %v314 = vor.u32 %v310, %v313
      %v315 = vrot.slane %v314, 4
      %v317 = vshll.u32 %v219, 16
      %v319 = vrot.slane %v317, 5
      %v320 = vsel %vm282, %v315, %v319
      %v321 = vshrl.u32 %v219, 16
      %v323 = vrot.slane %v321, 4
      %v324 = vor.u32 %v323, %v319
      %v325 = vrot.slane %v324, 4
      %v327 = vshll.u32 %v265, 16
      %v329 = vrot.slane %v327, 5
      %v330 = vsel %vm282, %v325, %v329
      %v332 = vshrl.u32 %v220, 16
      %v334 = vrot.slane %v332, 4
      %v335 = vshll.u32 %v220, 16
      %v337 = vrot.slane %v335, 5
      %v338 = vor.u32 %v334, %v337
      %v339 = vrot.slane %v338, 4
      %v341 = vshll.u32 %v221, 16
      %v343 = vrot.slane %v341, 5
      %v344 = vsel %vm282, %v339, %v343
      %v345 = vshrl.u32 %v221, 16
      %v347 = vrot.slane %v345, 4
      %v348 = vor.u32 %v347, %v343
      %v349 = vrot.slane %v348, 4
      %v351 = vshll.u32 %v266, 16
      %v353 = vrot.slane %v351, 5
      %v354 = vsel %vm282, %v349, %v353
      %v356 = vshrl.u32 %v222, 16
      %v358 = vrot.slane %v356, 4
      %v359 = vshll.u32 %v222, 16
      %v361 = vrot.slane %v359, 5
      %v362 = vor.u32 %v358, %v361
      %v363 = vrot.slane %v362, 4
      %v365 = vshll.u32 %v223, 16
      %v367 = vrot.slane %v365, 5
      %v368 = vsel %vm282, %v363, %v367
      %v369 = vshrl.u32 %v223, 16
      %v371 = vrot.slane %v369, 4
      %v372 = vor.u32 %v371, %v367
      %v373 = vrot.slane %v372, 4
      %v375 = vshll.u32 %v267, 16
      %v377 = vrot.slane %v375, 5
      %v378 = vsel %vm282, %v373, %v377
      %v380 = vshrl.u32 %v224, 16
      %v382 = vrot.slane %v380, 4
      %v383 = vshll.u32 %v224, 16
      %v385 = vrot.slane %v383, 5
      %v386 = vor.u32 %v382, %v385
      %v387 = vrot.slane %v386, 4
      %v389 = vshll.u32 %v225, 16
      %v391 = vrot.slane %v389, 5
      %v392 = vsel %vm282, %v387, %v391
      %v393 = vshrl.u32 %v225, 16
      %v395 = vrot.slane %v393, 4
      %v396 = vor.u32 %v395, %v391
      %v397 = vrot.slane %v396, 4
      %v399 = vshll.u32 %v268, 16
      %v401 = vrot.slane %v399, 5
      %v402 = vsel %vm282, %v397, %v401
      %v404 = vshrl.u32 %v226, 16
      %v406 = vrot.slane %v404, 4
      %v407 = vshll.u32 %v226, 16
      %v409 = vrot.slane %v407, 5
      %v410 = vor.u32 %v406, %v409
      %v411 = vrot.slane %v410, 4
      %v413 = vshll.u32 %v227, 16
      %v415 = vrot.slane %v413, 5
      %v416 = vsel %vm282, %v411, %v415
      %v417 = vshrl.u32 %v227, 16
      %v419 = vrot.slane %v417, 4
      %v420 = vor.u32 %v419, %v415
      %v421 = vrot.slane %v420, 4
      %v423 = vshll.u32 %v269, 16
      %v425 = vrot.slane %v423, 5
      %v426 = vsel %vm282, %v421, %v425
      %v428 = vshrl.u32 %v228, 16
      %v430 = vrot.slane %v428, 4
      %v431 = vshll.u32 %v228, 16
      %v433 = vrot.slane %v431, 5
      %v434 = vor.u32 %v430, %v433
      %v435 = vrot.slane %v434, 4
      %v437 = vshll.u32 %v229, 16
      %v439 = vrot.slane %v437, 5
      %v440 = vsel %vm282, %v435, %v439
      %v441 = vshrl.u32 %v229, 16
      %v443 = vrot.slane %v441, 4
      %v444 = vor.u32 %v443, %v439
      %v445 = vrot.slane %v444, 4
      %v447 = vshll.u32 %v270, 16
      %v449 = vrot.slane %v447, 5
      %v450 = vsel %vm282, %v445, %v449
      %v452 = vshrl.u32 %v230, 16
      %v454 = vrot.slane %v452, 4
      %v455 = vshll.u32 %v230, 16
      %v457 = vrot.slane %v455, 5
      %v458 = vor.u32 %v454, %v457
      %v459 = vrot.slane %v458, 4
      %v461 = vshll.u32 %v231, 16
      %v463 = vrot.slane %v461, 5
      %v464 = vsel %vm282, %v459, %v463
      %v465 = vshrl.u32 %v231, 16
      %v467 = vrot.slane %v465, 4
      %v468 = vor.u32 %v467, %v463
      %v469 = vrot.slane %v468, 4
      %v471 = vshll.u32 %v271, 16
      %v473 = vrot.slane %v471, 5
      %v474 = vsel %vm282, %v469, %v473
      %v476 = vshrl.u32 %v232, 16
      %v478 = vrot.slane %v476, 4
      %v479 = vshll.u32 %v232, 16
      %v481 = vrot.slane %v479, 5
      %v482 = vor.u32 %v478, %v481
      %v483 = vrot.slane %v482, 4
      %v485 = vshll.u32 %v233, 16
      %v487 = vrot.slane %v485, 5
      %v488 = vsel %vm282, %v483, %v487
      %v489 = vshrl.u32 %v233, 16
      %v491 = vrot.slane %v489, 4
      %v492 = vor.u32 %v491, %v487
      %v493 = vrot.slane %v492, 4
      %v495 = vshll.u32 %v272, 16
      %v497 = vrot.slane %v495, 5
      %v498 = vsel %vm282, %v493, %v497
      %v500 = vshrl.u32 %v234, 16
      %v502 = vrot.slane %v500, 4
      %v503 = vshll.u32 %v234, 16
      %v505 = vrot.slane %v503, 5
      %v506 = vor.u32 %v502, %v505
      %v507 = vrot.slane %v506, 4
      %v509 = vshll.u32 %v235, 16
      %v511 = vrot.slane %v509, 5
      %v512 = vsel %vm282, %v507, %v511
      %v513 = vshrl.u32 %v235, 16
      %v515 = vrot.slane %v513, 4
      %v516 = vor.u32 %v515, %v511
      %v517 = vrot.slane %v516, 4
      %v519 = vshll.u32 %v273, 16
      %v521 = vrot.slane %v519, 5
      %v522 = vsel %vm282, %v517, %v521
      %v524 = vshrl.u32 %v236, 16
      %v526 = vrot.slane %v524, 4
      %v527 = vshll.u32 %v236, 16
      %v529 = vrot.slane %v527, 5
      %v530 = vor.u32 %v526, %v529
      %v531 = vrot.slane %v530, 4
      %v533 = vshll.u32 %v237, 16
      %v535 = vrot.slane %v533, 5
      %v536 = vsel %vm282, %v531, %v535
      %v537 = vshrl.u32 %v237, 16
      %v539 = vrot.slane %v537, 4
      %v540 = vor.u32 %v539, %v535
      %v541 = vrot.slane %v540, 4
      %v543 = vshll.u32 %v274, 16
      %v545 = vrot.slane %v543, 5
      %v546 = vsel %vm282, %v541, %v545
      %v548 = vshrl.u32 %v238, 16
      %v550 = vrot.slane %v548, 4
      %v551 = vshll.u32 %v238, 16
      %v553 = vrot.slane %v551, 5
      %v554 = vor.u32 %v550, %v553
      %v555 = vrot.slane %v554, 4
      %v557 = vshll.u32 %v239, 16
      %v559 = vrot.slane %v557, 5
      %v560 = vsel %vm282, %v555, %v559
      %v561 = vshrl.u32 %v239, 16
      %v563 = vrot.slane %v561, 4
      %v564 = vor.u32 %v563, %v559
      %v565 = vrot.slane %v564, 4
      %v567 = vshll.u32 %v275, 16
      %v569 = vrot.slane %v567, 5
      %v570 = vsel %vm282, %v565, %v569
      %v572 = vshrl.u32 %v240, 16
      %v574 = vrot.slane %v572, 4
      %v575 = vshll.u32 %v240, 16
      %v577 = vrot.slane %v575, 5
      %v578 = vor.u32 %v574, %v577
      %v579 = vrot.slane %v578, 4
      %v581 = vshll.u32 %v241, 16
      %v583 = vrot.slane %v581, 5
      %v584 = vsel %vm282, %v579, %v583
      %v585 = vshrl.u32 %v241, 16
      %v587 = vrot.slane %v585, 4
      %v588 = vor.u32 %v587, %v583
      %v589 = vrot.slane %v588, 4
      %v591 = vshll.u32 %v276, 16
      %v593 = vrot.slane %v591, 5
      %v594 = vsel %vm282, %v589, %v593
      %v596 = vshrl.u32 %v242, 16
      %v598 = vrot.slane %v596, 4
      %v599 = vshll.u32 %v242, 16
      %v601 = vrot.slane %v599, 5
      %v602 = vor.u32 %v598, %v601
      %v603 = vrot.slane %v602, 4
      %v605 = vshll.u32 %v243, 16
      %v607 = vrot.slane %v605, 5
      %v608 = vsel %vm282, %v603, %v607
      %v609 = vshrl.u32 %v243, 16
      %v611 = vrot.slane %v609, 4
      %v612 = vor.u32 %v611, %v607
      %v613 = vrot.slane %v612, 4
      %v615 = vshll.u32 %v277, 16
      %v617 = vrot.slane %v615, 5
      %v618 = vsel %vm282, %v613, %v617
      %v620 = vshrl.u32 %v244, 16
      %v622 = vrot.slane %v620, 4
      %v623 = vshll.u32 %v244, 16
      %v625 = vrot.slane %v623, 5
      %v626 = vor.u32 %v622, %v625
      %v627 = vrot.slane %v626, 4
      %v629 = vshll.u32 %v245, 16
      %v631 = vrot.slane %v629, 5
      %v632 = vsel %vm282, %v627, %v631
      %v633 = vshrl.u32 %v245, 16
      %v635 = vrot.slane %v633, 4
      %v636 = vor.u32 %v635, %v631
      %v637 = vrot.slane %v636, 4
      %v639 = vshll.u32 %v278, 16
      %v641 = vrot.slane %v639, 5
      %v642 = vsel %vm282, %v637, %v641
      %v644 = vshrl.u32 %v246, 16
      %v646 = vrot.slane %v644, 4
      %v647 = vshll.u32 %v246, 16
      %v649 = vrot.slane %v647, 5
      %v650 = vor.u32 %v646, %v649
      %v651 = vrot.slane %v650, 4
      %v653 = vshll.u32 %v247, 16
      %v655 = vrot.slane %v653, 5
      %v656 = vsel %vm282, %v651, %v655
      %v657 = vshrl.u32 %v247, 16
      %v659 = vrot.slane %v657, 4
      %v660 = vor.u32 %v659, %v655
      %v661 = vrot.slane %v660, 4
      %v663 = vshll.u32 %v279, 16
      %v665 = vrot.slane %v663, 5
      %v666 = vsel %vm282, %v661, %v665
      %s667 = scalar_lea.vmem %s1, 64
      %v668 = vld [vmem:[%s667] sm:$0xf]
      %v669 = vld [vmem:[%s667 + $0x4] sm:$0xf]
      %v670 = vld [vmem:[%s667 + $0x8] sm:$0xf]
      %v671 = vld [vmem:[%s667 + $0xc] sm:$0xf]
      %v672 = vld [vmem:[%s667 + $0x10] sm:$0xf]
      %v673 = vld [vmem:[%s667 + $0x14] sm:$0xf]
      %v674 = vld [vmem:[%s667 + $0x18] sm:$0xf]
      %v675 = vld [vmem:[%s667 + $0x1c] sm:$0xf]
      %v676 = vld [vmem:[%s667 + $0x20] sm:$0xf]
      %v677 = vld [vmem:[%s667 + $0x24] sm:$0xf]
      %v678 = vld [vmem:[%s667 + $0x28] sm:$0xf]
      %v679 = vld [vmem:[%s667 + $0x2c] sm:$0xf]
      %v680 = vld [vmem:[%s667 + $0x30] sm:$0xf]
      %v681 = vld [vmem:[%s667 + $0x34] sm:$0xf]
      %v682 = vld [vmem:[%s667 + $0x38] sm:$0xf]
      %v683 = vld [vmem:[%s667 + $0x3c] sm:$0xf]
      %v684 = vunpack.c.l.b16 %v296
      %v685 = vunpack.c.l.b16 %v306
      %v686 = vunpack.c.l.b16 %v320
      %v687 = vunpack.c.l.b16 %v330
      %v688 = vunpack.c.l.b16 %v344
      %v689 = vunpack.c.l.b16 %v354
      %v690 = vunpack.c.l.b16 %v368
      %v691 = vunpack.c.l.b16 %v378
      %v692 = vunpack.c.l.b16 %v392
      %v693 = vunpack.c.l.b16 %v402
      %v694 = vunpack.c.l.b16 %v416
      %v695 = vunpack.c.l.b16 %v426
      %v696 = vunpack.c.l.b16 %v440
      %v697 = vunpack.c.l.b16 %v450
      %v698 = vunpack.c.l.b16 %v464
      %v699 = vunpack.c.l.b16 %v474
      %v700 = vunpack.c.l.b16 %v488
      %v701 = vunpack.c.l.b16 %v498
      %v702 = vunpack.c.l.b16 %v512
      %v703 = vunpack.c.l.b16 %v522
      %v704 = vunpack.c.l.b16 %v536
      %v705 = vunpack.c.l.b16 %v546
      %v706 = vunpack.c.l.b16 %v560
      %v707 = vunpack.c.l.b16 %v570
      %v708 = vunpack.c.l.b16 %v584
      %v709 = vunpack.c.l.b16 %v594
      %v710 = vunpack.c.l.b16 %v608
      %v711 = vunpack.c.l.b16 %v618
      %v712 = vunpack.c.l.b16 %v632
      %v713 = vunpack.c.l.b16 %v642
      %v714 = vunpack.c.l.b16 %v656
      %v715 = vunpack.c.l.b16 %v666
      %v716 = vpack.c.b16 %v685, %v684
      %v717 = vpack.c.b16 %v687, %v686
      %v718 = vpack.c.b16 %v689, %v688
      %v719 = vpack.c.b16 %v691, %v690
      %v720 = vpack.c.b16 %v693, %v692
      %v721 = vpack.c.b16 %v695, %v694
      %v722 = vpack.c.b16 %v697, %v696
      %v723 = vpack.c.b16 %v699, %v698
      %v724 = vpack.c.b16 %v701, %v700
      %v725 = vpack.c.b16 %v703, %v702
      %v726 = vpack.c.b16 %v705, %v704
      %v727 = vpack.c.b16 %v707, %v706
      %v728 = vpack.c.b16 %v709, %v708
      %v729 = vpack.c.b16 %v711, %v710
      %v730 = vpack.c.b16 %v713, %v712
      %v731 = vpack.c.b16 %v715, %v714
      %v764 = vunpack.c.l.b16 %v668
      %v765 = vunpack.c.l.b16 %v669
      %v766 = vunpack.c.l.b16 %v670
      %v767 = vunpack.c.l.b16 %v671
      %v768 = vunpack.c.l.b16 %v672
      %v769 = vunpack.c.l.b16 %v673
      %v770 = vunpack.c.l.b16 %v674
      %v771 = vunpack.c.l.b16 %v675
      %v772 = vunpack.c.l.b16 %v676
      %v773 = vunpack.c.l.b16 %v677
      %v774 = vunpack.c.l.b16 %v678
      %v775 = vunpack.c.l.b16 %v679
      %v776 = vunpack.c.l.b16 %v680
      %v777 = vunpack.c.l.b16 %v681
      %v778 = vunpack.c.l.b16 %v682
      %v779 = vunpack.c.l.b16 %v683
      %v780 = vpack.c.b16 %v765, %v764
      %v781 = vpack.c.b16 %v767, %v766
      %v782 = vpack.c.b16 %v769, %v768
      %v783 = vpack.c.b16 %v771, %v770
      %v784 = vpack.c.b16 %v773, %v772
      %v785 = vpack.c.b16 %v775, %v774
      %v786 = vpack.c.b16 %v777, %v776
      %v787 = vpack.c.b16 %v779, %v778
      %796 = vmatprep.subr.bf16.mxu0 0
      %797 = vmatpush1.bf16.msra.mxu0 %v780
      %798 = vmatprep.subr.bf16.mxu0 0
      %799 = vmatpush1.bf16.msra.mxu0 %v781
      %800 = vmatprep.subr.bf16.mxu0 0
      %801 = vmatpush1.bf16.msra.mxu0 %v782
      %802 = vmatprep.subr.bf16.mxu0 0
      %803 = vmatpush1.bf16.msra.mxu0 %v783
      %804 = vmatprep.subr.bf16.mxu0 0
      %805 = vmatpush1.bf16.msra.mxu0 %v784
      %806 = vmatprep.subr.bf16.mxu0 0
      %807 = vmatpush1.bf16.msra.mxu0 %v785
      %808 = vmatprep.subr.bf16.mxu0 0
      %809 = vmatpush1.bf16.msra.mxu0 %v786
      %810 = vmatprep.subr.bf16.mxu0 0
      %811 = vmatpush1.bf16.msra.mxu0 %v787
      %812 = vmatprep.subr.bf16.mxu0 0
      %813 = vmatpush1.bf16.msra.mxu0 0
      %814 = vmatprep.subr.bf16.mxu0 0
      %815 = vmatpush1.bf16.msra.mxu0 0
      %816 = vmatprep.subr.bf16.mxu0 0
      %817 = vmatpush1.bf16.msra.mxu0 0
      %818 = vmatprep.subr.bf16.mxu0 0
      %819 = vmatpush1.bf16.msra.mxu0 0
      %820 = vmatprep.subr.bf16.mxu0 0
      %821 = vmatpush1.bf16.msra.mxu0 0
      %822 = vmatprep.subr.bf16.mxu0 0
      %823 = vmatpush1.bf16.msra.mxu0 0
      %824 = vmatprep.subr.bf16.mxu0 0
      %825 = vmatpush1.bf16.msra.mxu0 0
      %826 = vmatprep.subr.bf16.mxu0 0
      %827 = vmatpush1.bf16.msra.mxu0 0
      %828 = vmatprep.mubr.bf16.mxu0 0
      %829 = vmatmul.mubr.bf16.gmra.mrb[0].mxu0 %v716
      %v830 = vpop.f32.mrb[0].mxu0
      %v831 = vadd.f32 0.0, %v830
      %v832 = vpop.f32.mrb[0].mxu0
      %v833 = vpop.f32.mrb[0].mxu0
      %v834 = vadd.f32 0.0, %v833
      %v835 = vpop.f32.mrb[0].mxu0
      %836 = vmatprep.mubr.bf16.mxu0 0
      %837 = vmatmul.mubr.bf16.gmra.mrb[0].mxu0 %v717
      %v838 = vpop.f32.mrb[0].mxu0
      %v839 = vadd.f32 0.0, %v838
      %v840 = vpop.f32.mrb[0].mxu0
      %v841 = vpop.f32.mrb[0].mxu0
      %v842 = vadd.f32 0.0, %v841
      %v843 = vpop.f32.mrb[0].mxu0
      %844 = vmatprep.mubr.bf16.mxu0 0
      %845 = vmatmul.mubr.bf16.gmra.mrb[0].mxu0 %v718
      %v846 = vpop.f32.mrb[0].mxu0
      %v847 = vadd.f32 0.0, %v846
      %v848 = vpop.f32.mrb[0].mxu0
      %v849 = vpop.f32.mrb[0].mxu0
      %v850 = vadd.f32 0.0, %v849
      %v851 = vpop.f32.mrb[0].mxu0
      %852 = vmatprep.mubr.bf16.mxu0 0
      %853 = vmatmul.mubr.bf16.gmra.mrb[0].mxu0 %v719
      %v854 = vpop.f32.mrb[0].mxu0
      %v855 = vadd.f32 0.0, %v854
      %v856 = vpop.f32.mrb[0].mxu0
      %v857 = vpop.f32.mrb[0].mxu0
      %v858 = vadd.f32 0.0, %v857
      %v859 = vpop.f32.mrb[0].mxu0
      %860 = vmatprep.mubr.bf16.mxu0 0
      %861 = vmatmul.mubr.bf16.gmra.mrb[0].mxu0 %v720
      %v862 = vpop.f32.mrb[0].mxu0
      %v863 = vadd.f32 0.0, %v862
      %v864 = vpop.f32.mrb[0].mxu0
      %v865 = vpop.f32.mrb[0].mxu0
      %v866 = vadd.f32 0.0, %v865
      %v867 = vpop.f32.mrb[0].mxu0
      %868 = vmatprep.mubr.bf16.mxu0 0
      %869 = vmatmul.mubr.bf16.gmra.mrb[0].mxu0 %v721
      %v870 = vpop.f32.mrb[0].mxu0
      %v871 = vadd.f32 0.0, %v870
      %v872 = vpop.f32.mrb[0].mxu0
      %v873 = vpop.f32.mrb[0].mxu0
      %v874 = vadd.f32 0.0, %v873
      %v875 = vpop.f32.mrb[0].mxu0
      %876 = vmatprep.mubr.bf16.mxu0 0
      %877 = vmatmul.mubr.bf16.gmra.mrb[0].mxu0 %v722
      %v878 = vpop.f32.mrb[0].mxu0
      %v879 = vadd.f32 0.0, %v878
      %v880 = vpop.f32.mrb[0].mxu0
      %v881 = vpop.f32.mrb[0].mxu0
      %v882 = vadd.f32 0.0, %v881
      %v883 = vpop.f32.mrb[0].mxu0
      %884 = vmatprep.mubr.bf16.mxu0 0
      %885 = vmatmul.mubr.bf16.gmra.mrb[0].mxu0 %v723
      %v886 = vpop.f32.mrb[0].mxu0
      %v887 = vadd.f32 0.0, %v886
      %v888 = vpop.f32.mrb[0].mxu0
      %v889 = vpop.f32.mrb[0].mxu0
      %v890 = vadd.f32 0.0, %v889
      %v891 = vpop.f32.mrb[0].mxu0
      %892 = vmatprep.mubr.bf16.mxu0 0
      %893 = vmatmul.mubr.bf16.gmra.mrb[0].mxu0 %v724
      %v894 = vpop.f32.mrb[0].mxu0
      %v895 = vadd.f32 0.0, %v894
      %v896 = vpop.f32.mrb[0].mxu0
      %v897 = vpop.f32.mrb[0].mxu0
      %v898 = vadd.f32 0.0, %v897
      %v899 = vpop.f32.mrb[0].mxu0
      %900 = vmatprep.mubr.bf16.mxu0 0
      %901 = vmatmul.mubr.bf16.gmra.mrb[0].mxu0 %v725
      %v902 = vpop.f32.mrb[0].mxu0
      %v903 = vadd.f32 0.0, %v902
      %v904 = vpop.f32.mrb[0].mxu0
      %v905 = vpop.f32.mrb[0].mxu0
      %v906 = vadd.f32 0.0, %v905
      %v907 = vpop.f32.mrb[0].mxu0
      %908 = vmatprep.mubr.bf16.mxu0 0
      %909 = vmatmul.mubr.bf16.gmra.mrb[0].mxu0 %v726
      %v910 = vpop.f32.mrb[0].mxu0
      %v911 = vadd.f32 0.0, %v910
      %v912 = vpop.f32.mrb[0].mxu0
      %v913 = vpop.f32.mrb[0].mxu0
      %v914 = vadd.f32 0.0, %v913
      %v915 = vpop.f32.mrb[0].mxu0
      %916 = vmatprep.mubr.bf16.mxu0 0
      %917 = vmatmul.mubr.bf16.gmra.mrb[0].mxu0 %v727
      %v918 = vpop.f32.mrb[0].mxu0
      %v919 = vadd.f32 0.0, %v918
      %v920 = vpop.f32.mrb[0].mxu0
      %v921 = vpop.f32.mrb[0].mxu0
      %v922 = vadd.f32 0.0, %v921
      %v923 = vpop.f32.mrb[0].mxu0
      %924 = vmatprep.mubr.bf16.mxu0 0
      %925 = vmatmul.mubr.bf16.gmra.mrb[0].mxu0 %v728
      %v926 = vpop.f32.mrb[0].mxu0
      %v927 = vadd.f32 0.0, %v926
      %v928 = vpop.f32.mrb[0].mxu0
      %v929 = vpop.f32.mrb[0].mxu0
      %v930 = vadd.f32 0.0, %v929
      %v931 = vpop.f32.mrb[0].mxu0
      %932 = vmatprep.mubr.bf16.mxu0 0
      %933 = vmatmul.mubr.bf16.gmra.mrb[0].mxu0 %v729
      %v934 = vpop.f32.mrb[0].mxu0
      %v935 = vadd.f32 0.0, %v934
      %v936 = vpop.f32.mrb[0].mxu0
      %v937 = vpop.f32.mrb[0].mxu0
      %v938 = vadd.f32 0.0, %v937
      %v939 = vpop.f32.mrb[0].mxu0
      %940 = vmatprep.mubr.bf16.mxu0 0
      %941 = vmatmul.mubr.bf16.gmra.mrb[0].mxu0 %v730
      %v942 = vpop.f32.mrb[0].mxu0
      %v943 = vadd.f32 0.0, %v942
      %v944 = vpop.f32.mrb[0].mxu0
      %v945 = vpop.f32.mrb[0].mxu0
      %v946 = vadd.f32 0.0, %v945
      %v947 = vpop.f32.mrb[0].mxu0
      %948 = vmatprep.mubr.bf16.mxu0 0
      %949 = vmatmul.mubr.bf16.gmra.mrb[0].mxu0 %v731
      %v950 = vpop.f32.mrb[0].mxu0
      %v951 = vadd.f32 0.0, %v950
      %v952 = vpop.f32.mrb[0].mxu0
      %v953 = vpop.f32.mrb[0].mxu0
      %v954 = vadd.f32 0.0, %v953
      %v955 = vpop.f32.mrb[0].mxu0
      %956 = vdwg.mxu0
      %v989 = vunpack.c.l.b16 %v216
      %v990 = vunpack.c.l.b16 %v217
      %v991 = vunpack.c.l.b16 %v218
      %v992 = vunpack.c.l.b16 %v219
      %v993 = vunpack.c.l.b16 %v220
      %v994 = vunpack.c.l.b16 %v221
      %v995 = vunpack.c.l.b16 %v222
      %v996 = vunpack.c.l.b16 %v223
      %v997 = vunpack.c.l.b16 %v224
      %v998 = vunpack.c.l.b16 %v225
      %v999 = vunpack.c.l.b16 %v226
      %v1000 = vunpack.c.l.b16 %v227
      %v1001 = vunpack.c.l.b16 %v228
      %v1002 = vunpack.c.l.b16 %v229
      %v1003 = vunpack.c.l.b16 %v230
      %v1004 = vunpack.c.l.b16 %v231
      %v1005 = vunpack.c.l.b16 %v232
      %v1006 = vunpack.c.l.b16 %v233
      %v1007 = vunpack.c.l.b16 %v234
      %v1008 = vunpack.c.l.b16 %v235
      %v1009 = vunpack.c.l.b16 %v236
      %v1010 = vunpack.c.l.b16 %v237
      %v1011 = vunpack.c.l.b16 %v238
      %v1012 = vunpack.c.l.b16 %v239
      %v1013 = vunpack.c.l.b16 %v240
      %v1014 = vunpack.c.l.b16 %v241
      %v1015 = vunpack.c.l.b16 %v242
      %v1016 = vunpack.c.l.b16 %v243
      %v1017 = vunpack.c.l.b16 %v244
      %v1018 = vunpack.c.l.b16 %v245
      %v1019 = vunpack.c.l.b16 %v246
      %v1020 = vunpack.c.l.b16 %v247
      %v1021 = vpack.c.b16 %v990, %v989
      %v1022 = vpack.c.b16 %v992, %v991
      %v1023 = vpack.c.b16 %v994, %v993
      %v1024 = vpack.c.b16 %v996, %v995
      %v1025 = vpack.c.b16 %v998, %v997
      %v1026 = vpack.c.b16 %v1000, %v999
      %v1027 = vpack.c.b16 %v1002, %v1001
      %v1028 = vpack.c.b16 %v1004, %v1003
      %v1029 = vpack.c.b16 %v1006, %v1005
      %v1030 = vpack.c.b16 %v1008, %v1007
      %v1031 = vpack.c.b16 %v1010, %v1009
      %v1032 = vpack.c.b16 %v1012, %v1011
      %v1033 = vpack.c.b16 %v1014, %v1013
      %v1034 = vpack.c.b16 %v1016, %v1015
      %v1035 = vpack.c.b16 %v1018, %v1017
      %v1036 = vpack.c.b16 %v1020, %v1019
      %v1069 = vunpack.c.l.b16 %v248
      %v1070 = vunpack.c.l.b16 %v249
      %v1071 = vunpack.c.l.b16 %v250
      %v1072 = vunpack.c.l.b16 %v251
      %v1073 = vunpack.c.l.b16 %v252
      %v1074 = vunpack.c.l.b16 %v253
      %v1075 = vunpack.c.l.b16 %v254
      %v1076 = vunpack.c.l.b16 %v255
      %v1077 = vunpack.c.l.b16 %v256
      %v1078 = vunpack.c.l.b16 %v257
      %v1079 = vunpack.c.l.b16 %v258
      %v1080 = vunpack.c.l.b16 %v259
      %v1081 = vunpack.c.l.b16 %v260
      %v1082 = vunpack.c.l.b16 %v261
      %v1083 = vunpack.c.l.b16 %v262
      %v1084 = vunpack.c.l.b16 %v263
      %v1085 = vpack.c.b16 %v1070, %v1069
      %v1086 = vpack.c.b16 %v1072, %v1071
      %v1087 = vpack.c.b16 %v1074, %v1073
      %v1088 = vpack.c.b16 %v1076, %v1075
      %v1089 = vpack.c.b16 %v1078, %v1077
      %v1090 = vpack.c.b16 %v1080, %v1079
      %v1091 = vpack.c.b16 %v1082, %v1081
      %v1092 = vpack.c.b16 %v1084, %v1083
      %1101 = vmatprep.subr.bf16.mxu0 0
      %1102 = vmatpush1.bf16.msra.mxu0 %v1085
      %1103 = vmatprep.subr.bf16.mxu0 0
      %1104 = vmatpush1.bf16.msra.mxu0 %v1086
      %1105 = vmatprep.subr.bf16.mxu0 0
      %1106 = vmatpush1.bf16.msra.mxu0 %v1087
      %1107 = vmatprep.subr.bf16.mxu0 0
      %1108 = vmatpush1.bf16.msra.mxu0 %v1088
      %1109 = vmatprep.subr.bf16.mxu0 0
      %1110 = vmatpush1.bf16.msra.mxu0 %v1089
      %1111 = vmatprep.subr.bf16.mxu0 0
      %1112 = vmatpush1.bf16.msra.mxu0 %v1090
      %1113 = vmatprep.subr.bf16.mxu0 0
      %1114 = vmatpush1.bf16.msra.mxu0 %v1091
      %1115 = vmatprep.subr.bf16.mxu0 0
      %1116 = vmatpush1.bf16.msra.mxu0 %v1092
      %1117 = vmatprep.subr.bf16.mxu0 0
      %1118 = vmatpush1.bf16.msra.mxu0 0
      %1119 = vmatprep.subr.bf16.mxu0 0
      %1120 = vmatpush1.bf16.msra.mxu0 0
      %1121 = vmatprep.subr.bf16.mxu0 0
      %1122 = vmatpush1.bf16.msra.mxu0 0
      %1123 = vmatprep.subr.bf16.mxu0 0
      %1124 = vmatpush1.bf16.msra.mxu0 0
      %1125 = vmatprep.subr.bf16.mxu0 0
      %1126 = vmatpush1.bf16.msra.mxu0 0
      %1127 = vmatprep.subr.bf16.mxu0 0
      %1128 = vmatpush1.bf16.msra.mxu0 0
      %1129 = vmatprep.subr.bf16.mxu0 0
      %1130 = vmatpush1.bf16.msra.mxu0 0
      %1131 = vmatprep.subr.bf16.mxu0 0
      %1132 = vmatpush1.bf16.msra.mxu0 0
      %1133 = vmatprep.mubr.bf16.mxu0 0
      %1134 = vmatmul.mubr.bf16.gmra.mrb[0].mxu0 %v1021
      %v1135 = vpop.f32.mrb[0].mxu0
      %v1136 = vadd.f32 %v831, %v1135
      %v1137 = vpop.f32.mrb[0].mxu0
      %v1138 = vpop.f32.mrb[0].mxu0
      %v1139 = vadd.f32 %v834, %v1138
      %v1140 = vpop.f32.mrb[0].mxu0
      %1141 = vmatprep.mubr.bf16.mxu0 0
      %1142 = vmatmul.mubr.bf16.gmra.mrb[0].mxu0 %v1022
      %v1143 = vpop.f32.mrb[0].mxu0
      %v1144 = vadd.f32 %v839, %v1143
      %v1145 = vpop.f32.mrb[0].mxu0
      %v1146 = vpop.f32.mrb[0].mxu0
      %v1147 = vadd.f32 %v842, %v1146
      %v1148 = vpop.f32.mrb[0].mxu0
      %1149 = vmatprep.mubr.bf16.mxu0 0
      %1150 = vmatmul.mubr.bf16.gmra.mrb[0].mxu0 %v1023
      %v1151 = vpop.f32.mrb[0].mxu0
      %v1152 = vadd.f32 %v847, %v1151
      %v1153 = vpop.f32.mrb[0].mxu0
      %v1154 = vpop.f32.mrb[0].mxu0
      %v1155 = vadd.f32 %v850, %v1154
      %v1156 = vpop.f32.mrb[0].mxu0
      %1157 = vmatprep.mubr.bf16.mxu0 0
      %1158 = vmatmul.mubr.bf16.gmra.mrb[0].mxu0 %v1024
      %v1159 = vpop.f32.mrb[0].mxu0
      %v1160 = vadd.f32 %v855, %v1159
      %v1161 = vpop.f32.mrb[0].mxu0
      %v1162 = vpop.f32.mrb[0].mxu0
      %v1163 = vadd.f32 %v858, %v1162
      %v1164 = vpop.f32.mrb[0].mxu0
      %1165 = vmatprep.mubr.bf16.mxu0 0
      %1166 = vmatmul.mubr.bf16.gmra.mrb[0].mxu0 %v1025
      %v1167 = vpop.f32.mrb[0].mxu0
      %v1168 = vadd.f32 %v863, %v1167
      %v1169 = vpop.f32.mrb[0].mxu0
      %v1170 = vpop.f32.mrb[0].mxu0
      %v1171 = vadd.f32 %v866, %v1170
      %v1172 = vpop.f32.mrb[0].mxu0
      %1173 = vmatprep.mubr.bf16.mxu0 0
      %1174 = vmatmul.mubr.bf16.gmra.mrb[0].mxu0 %v1026
      %v1175 = vpop.f32.mrb[0].mxu0
      %v1176 = vadd.f32 %v871, %v1175
      %v1177 = vpop.f32.mrb[0].mxu0
      %v1178 = vpop.f32.mrb[0].mxu0
      %v1179 = vadd.f32 %v874, %v1178
      %v1180 = vpop.f32.mrb[0].mxu0
      %1181 = vmatprep.mubr.bf16.mxu0 0
      %1182 = vmatmul.mubr.bf16.gmra.mrb[0].mxu0 %v1027
      %v1183 = vpop.f32.mrb[0].mxu0
      %v1184 = vadd.f32 %v879, %v1183
      %v1185 = vpop.f32.mrb[0].mxu0
      %v1186 = vpop.f32.mrb[0].mxu0
      %v1187 = vadd.f32 %v882, %v1186
      %v1188 = vpop.f32.mrb[0].mxu0
      %1189 = vmatprep.mubr.bf16.mxu0 0
      %1190 = vmatmul.mubr.bf16.gmra.mrb[0].mxu0 %v1028
      %v1191 = vpop.f32.mrb[0].mxu0
      %v1192 = vadd.f32 %v887, %v1191
      %v1193 = vpop.f32.mrb[0].mxu0
      %v1194 = vpop.f32.mrb[0].mxu0
      %v1195 = vadd.f32 %v890, %v1194
      %v1196 = vpop.f32.mrb[0].mxu0
      %1197 = vmatprep.mubr.bf16.mxu0 0
      %1198 = vmatmul.mubr.bf16.gmra.mrb[0].mxu0 %v1029
      %v1199 = vpop.f32.mrb[0].mxu0
      %v1200 = vadd.f32 %v895, %v1199
      %v1201 = vpop.f32.mrb[0].mxu0
      %v1202 = vpop.f32.mrb[0].mxu0
      %v1203 = vadd.f32 %v898, %v1202
      %v1204 = vpop.f32.mrb[0].mxu0
      %1205 = vmatprep.mubr.bf16.mxu0 0
      %1206 = vmatmul.mubr.bf16.gmra.mrb[0].mxu0 %v1030
      %v1207 = vpop.f32.mrb[0].mxu0
      %v1208 = vadd.f32 %v903, %v1207
      %v1209 = vpop.f32.mrb[0].mxu0
      %v1210 = vpop.f32.mrb[0].mxu0
      %v1211 = vadd.f32 %v906, %v1210
      %v1212 = vpop.f32.mrb[0].mxu0
      %1213 = vmatprep.mubr.bf16.mxu0 0
      %1214 = vmatmul.mubr.bf16.gmra.mrb[0].mxu0 %v1031
      %v1215 = vpop.f32.mrb[0].mxu0
      %v1216 = vadd.f32 %v911, %v1215
      %v1217 = vpop.f32.mrb[0].mxu0
      %v1218 = vpop.f32.mrb[0].mxu0
      %v1219 = vadd.f32 %v914, %v1218
      %v1220 = vpop.f32.mrb[0].mxu0
      %1221 = vmatprep.mubr.bf16.mxu0 0
      %1222 = vmatmul.mubr.bf16.gmra.mrb[0].mxu0 %v1032
      %v1223 = vpop.f32.mrb[0].mxu0
      %v1224 = vadd.f32 %v919, %v1223
      %v1225 = vpop.f32.mrb[0].mxu0
      %v1226 = vpop.f32.mrb[0].mxu0
      %v1227 = vadd.f32 %v922, %v1226
      %v1228 = vpop.f32.mrb[0].mxu0
      %1229 = vmatprep.mubr.bf16.mxu0 0
      %1230 = vmatmul.mubr.bf16.gmra.mrb[0].mxu0 %v1033
      %v1231 = vpop.f32.mrb[0].mxu0
      %v1232 = vadd.f32 %v927, %v1231
      %v1233 = vpop.f32.mrb[0].mxu0
      %v1234 = vpop.f32.mrb[0].mxu0
      %v1235 = vadd.f32 %v930, %v1234
      %v1236 = vpop.f32.mrb[0].mxu0
      %1237 = vmatprep.mubr.bf16.mxu0 0
      %1238 = vmatmul.mubr.bf16.gmra.mrb[0].mxu0 %v1034
      %v1239 = vpop.f32.mrb[0].mxu0
      %v1240 = vadd.f32 %v935, %v1239
      %v1241 = vpop.f32.mrb[0].mxu0
      %v1242 = vpop.f32.mrb[0].mxu0
      %v1243 = vadd.f32 %v938, %v1242
      %v1244 = vpop.f32.mrb[0].mxu0
      %1245 = vmatprep.mubr.bf16.mxu0 0
      %1246 = vmatmul.mubr.bf16.gmra.mrb[0].mxu0 %v1035
      %v1247 = vpop.f32.mrb[0].mxu0
      %v1248 = vadd.f32 %v943, %v1247
      %v1249 = vpop.f32.mrb[0].mxu0
      %v1250 = vpop.f32.mrb[0].mxu0
      %v1251 = vadd.f32 %v946, %v1250
      %v1252 = vpop.f32.mrb[0].mxu0
      %1253 = vmatprep.mubr.bf16.mxu0 0
      %1254 = vmatmul.mubr.bf16.gmra.mrb[0].mxu0 %v1036
      %v1255 = vpop.f32.mrb[0].mxu0
      %v1256 = vadd.f32 %v951, %v1255
      %v1257 = vpop.f32.mrb[0].mxu0
      %v1258 = vpop.f32.mrb[0].mxu0
      %v1259 = vadd.f32 %v954, %v1258
      %v1260 = vpop.f32.mrb[0].mxu0
      %1261 = vdwg.mxu0
      %v1262 = vld [vmem:[%s203] sm:$0xe]
      %v1263 = vld [vmem:[%s203 + $0xc] sm:$0xe]
      %v1264 = vld [vmem:[%s203 + $0x18] sm:$0xe]
      %v1265 = vld [vmem:[%s203 + $0x24] sm:$0xe]
      %v1266 = vld [vmem:[%s203 + $0x30] sm:$0xe]
      %v1267 = vld [vmem:[%s203 + $0x3c] sm:$0xe]
      %v1268 = vld [vmem:[%s203 + $0x48] sm:$0xe]
      %v1269 = vld [vmem:[%s203 + $0x54] sm:$0xe]
      %v1270 = vld [vmem:[%s203 + $0x60] sm:$0xe]
      %v1271 = vld [vmem:[%s203 + $0x6c] sm:$0xe]
      %v1272 = vld [vmem:[%s203 + $0x78] sm:$0xe]
      %v1273 = vld [vmem:[%s203 + $0x84] sm:$0xe]
      %v1274 = vld [vmem:[%s203 + $0x90] sm:$0xe]
      %v1275 = vld [vmem:[%s203 + $0x9c] sm:$0xe]
      %v1276 = vld [vmem:[%s203 + $0xa8] sm:$0xe]
      %v1277 = vld [vmem:[%s203 + $0xb4] sm:$0xe]
      %vm1310 = vcmask 1042432
      %vm1311 = vcmask 1046532
      %vm1312 = vmor %vm1310, %vm1311
      %v1313 = vrot.slane %v1262, 5
      %v1314 = vrot.slane %v1313, 4
      %v1315 = vrot.slane %v217, 5
      %v1316 = vsel %vm1312, %v1314, %v1315
      %v1317 = vrot.slane %v1315, 4
      %v1318 = vrot.slane %v264, 5
      %v1319 = vsel %vm1312, %v1317, %v1318
      %v1320 = vrot.slane %v1263, 5
      %v1321 = vrot.slane %v1320, 4
      %v1322 = vrot.slane %v219, 5
      %v1323 = vsel %vm1312, %v1321, %v1322
      %v1324 = vrot.slane %v1322, 4
      %v1325 = vrot.slane %v265, 5
      %v1326 = vsel %vm1312, %v1324, %v1325
      %v1327 = vrot.slane %v1264, 5
      %v1328 = vrot.slane %v1327, 4
      %v1329 = vrot.slane %v221, 5
      %v1330 = vsel %vm1312, %v1328, %v1329
      %v1331 = vrot.slane %v1329, 4
      %v1332 = vrot.slane %v266, 5
      %v1333 = vsel %vm1312, %v1331, %v1332
      %v1334 = vrot.slane %v1265, 5
      %v1335 = vrot.slane %v1334, 4
      %v1336 = vrot.slane %v223, 5
      %v1337 = vsel %vm1312, %v1335, %v1336
      %v1338 = vrot.slane %v1336, 4
      %v1339 = vrot.slane %v267, 5
      %v1340 = vsel %vm1312, %v1338, %v1339
      %v1341 = vrot.slane %v1266, 5
      %v1342 = vrot.slane %v1341, 4
      %v1343 = vrot.slane %v225, 5
      %v1344 = vsel %vm1312, %v1342, %v1343
      %v1345 = vrot.slane %v1343, 4
      %v1346 = vrot.slane %v268, 5
      %v1347 = vsel %vm1312, %v1345, %v1346
      %v1348 = vrot.slane %v1267, 5
      %v1349 = vrot.slane %v1348, 4
      %v1350 = vrot.slane %v227, 5
      %v1351 = vsel %vm1312, %v1349, %v1350
      %v1352 = vrot.slane %v1350, 4
      %v1353 = vrot.slane %v269, 5
      %v1354 = vsel %vm1312, %v1352, %v1353
      %v1355 = vrot.slane %v1268, 5
      %v1356 = vrot.slane %v1355, 4
      %v1357 = vrot.slane %v229, 5
      %v1358 = vsel %vm1312, %v1356, %v1357
      %v1359 = vrot.slane %v1357, 4
      %v1360 = vrot.slane %v270, 5
      %v1361 = vsel %vm1312, %v1359, %v1360
      %v1362 = vrot.slane %v1269, 5
      %v1363 = vrot.slane %v1362, 4
      %v1364 = vrot.slane %v231, 5
      %v1365 = vsel %vm1312, %v1363, %v1364
      %v1366 = vrot.slane %v1364, 4
      %v1367 = vrot.slane %v271, 5
      %v1368 = vsel %vm1312, %v1366, %v1367
      %v1369 = vrot.slane %v1270, 5
      %v1370 = vrot.slane %v1369, 4
      %v1371 = vrot.slane %v233, 5
      %v1372 = vsel %vm1312, %v1370, %v1371
      %v1373 = vrot.slane %v1371, 4
      %v1374 = vrot.slane %v272, 5
      %v1375 = vsel %vm1312, %v1373, %v1374
      %v1376 = vrot.slane %v1271, 5
      %v1377 = vrot.slane %v1376, 4
      %v1378 = vrot.slane %v235, 5
      %v1379 = vsel %vm1312, %v1377, %v1378
      %v1380 = vrot.slane %v1378, 4
      %v1381 = vrot.slane %v273, 5
      %v1382 = vsel %vm1312, %v1380, %v1381
      %v1383 = vrot.slane %v1272, 5
      %v1384 = vrot.slane %v1383, 4
      %v1385 = vrot.slane %v237, 5
      %v1386 = vsel %vm1312, %v1384, %v1385
      %v1387 = vrot.slane %v1385, 4
      %v1388 = vrot.slane %v274, 5
      %v1389 = vsel %vm1312, %v1387, %v1388
      %v1390 = vrot.slane %v1273, 5
      %v1391 = vrot.slane %v1390, 4
      %v1392 = vrot.slane %v239, 5
      %v1393 = vsel %vm1312, %v1391, %v1392
      %v1394 = vrot.slane %v1392, 4
      %v1395 = vrot.slane %v275, 5
      %v1396 = vsel %vm1312, %v1394, %v1395
      %v1397 = vrot.slane %v1274, 5
      %v1398 = vrot.slane %v1397, 4
      %v1399 = vrot.slane %v241, 5
      %v1400 = vsel %vm1312, %v1398, %v1399
      %v1401 = vrot.slane %v1399, 4
      %v1402 = vrot.slane %v276, 5
      %v1403 = vsel %vm1312, %v1401, %v1402
      %v1404 = vrot.slane %v1275, 5
      %v1405 = vrot.slane %v1404, 4
      %v1406 = vrot.slane %v243, 5
      %v1407 = vsel %vm1312, %v1405, %v1406
      %v1408 = vrot.slane %v1406, 4
      %v1409 = vrot.slane %v277, 5
      %v1410 = vsel %vm1312, %v1408, %v1409
      %v1411 = vrot.slane %v1276, 5
      %v1412 = vrot.slane %v1411, 4
      %v1413 = vrot.slane %v245, 5
      %v1414 = vsel %vm1312, %v1412, %v1413
      %v1415 = vrot.slane %v1413, 4
      %v1416 = vrot.slane %v278, 5
      %v1417 = vsel %vm1312, %v1415, %v1416
      %v1418 = vrot.slane %v1277, 5
      %v1419 = vrot.slane %v1418, 4
      %v1420 = vrot.slane %v247, 5
      %v1421 = vsel %vm1312, %v1419, %v1420
      %v1422 = vrot.slane %v1420, 4
      %v1423 = vrot.slane %v279, 5
      %v1424 = vsel %vm1312, %v1422, %v1423
      %s1425 = scalar_lea.vmem %s1, 128
      %v1426 = vld [vmem:[%s1425] sm:$0xf]
      %v1427 = vld [vmem:[%s1425 + $0x4] sm:$0xf]
      %v1428 = vld [vmem:[%s1425 + $0x8] sm:$0xf]
      %v1429 = vld [vmem:[%s1425 + $0xc] sm:$0xf]
      %v1430 = vld [vmem:[%s1425 + $0x10] sm:$0xf]
      %v1431 = vld [vmem:[%s1425 + $0x14] sm:$0xf]
      %v1432 = vld [vmem:[%s1425 + $0x18] sm:$0xf]
      %v1433 = vld [vmem:[%s1425 + $0x1c] sm:$0xf]
      %v1434 = vld [vmem:[%s1425 + $0x20] sm:$0xf]
      %v1435 = vld [vmem:[%s1425 + $0x24] sm:$0xf]
      %v1436 = vld [vmem:[%s1425 + $0x28] sm:$0xf]
      %v1437 = vld [vmem:[%s1425 + $0x2c] sm:$0xf]
      %v1438 = vld [vmem:[%s1425 + $0x30] sm:$0xf]
      %v1439 = vld [vmem:[%s1425 + $0x34] sm:$0xf]
      %v1440 = vld [vmem:[%s1425 + $0x38] sm:$0xf]
      %v1441 = vld [vmem:[%s1425 + $0x3c] sm:$0xf]
      %v1442 = vunpack.c.l.b16 %v1316
      %v1443 = vunpack.c.l.b16 %v1319
      %v1444 = vunpack.c.l.b16 %v1323
      %v1445 = vunpack.c.l.b16 %v1326
      %v1446 = vunpack.c.l.b16 %v1330
      %v1447 = vunpack.c.l.b16 %v1333
      %v1448 = vunpack.c.l.b16 %v1337
      %v1449 = vunpack.c.l.b16 %v1340
      %v1450 = vunpack.c.l.b16 %v1344
      %v1451 = vunpack.c.l.b16 %v1347
      %v1452 = vunpack.c.l.b16 %v1351
      %v1453 = vunpack.c.l.b16 %v1354
      %v1454 = vunpack.c.l.b16 %v1358
      %v1455 = vunpack.c.l.b16 %v1361
      %v1456 = vunpack.c.l.b16 %v1365
      %v1457 = vunpack.c.l.b16 %v1368
      %v1458 = vunpack.c.l.b16 %v1372
      %v1459 = vunpack.c.l.b16 %v1375
      %v1460 = vunpack.c.l.b16 %v1379
      %v1461 = vunpack.c.l.b16 %v1382
      %v1462 = vunpack.c.l.b16 %v1386
      %v1463 = vunpack.c.l.b16 %v1389
      %v1464 = vunpack.c.l.b16 %v1393
      %v1465 = vunpack.c.l.b16 %v1396
      %v1466 = vunpack.c.l.b16 %v1400
      %v1467 = vunpack.c.l.b16 %v1403
      %v1468 = vunpack.c.l.b16 %v1407
      %v1469 = vunpack.c.l.b16 %v1410
      %v1470 = vunpack.c.l.b16 %v1414
      %v1471 = vunpack.c.l.b16 %v1417
      %v1472 = vunpack.c.l.b16 %v1421
      %v1473 = vunpack.c.l.b16 %v1424
      %v1474 = vpack.c.b16 %v1443, %v1442
      %v1475 = vpack.c.b16 %v1445, %v1444
      %v1476 = vpack.c.b16 %v1447, %v1446
      %v1477 = vpack.c.b16 %v1449, %v1448
      %v1478 = vpack.c.b16 %v1451, %v1450
      %v1479 = vpack.c.b16 %v1453, %v1452
      %v1480 = vpack.c.b16 %v1455, %v1454
      %v1481 = vpack.c.b16 %v1457, %v1456
      %v1482 = vpack.c.b16 %v1459, %v1458
      %v1483 = vpack.c.b16 %v1461, %v1460
      %v1484 = vpack.c.b16 %v1463, %v1462
      %v1485 = vpack.c.b16 %v1465, %v1464
      %v1486 = vpack.c.b16 %v1467, %v1466
      %v1487 = vpack.c.b16 %v1469, %v1468
      %v1488 = vpack.c.b16 %v1471, %v1470
      %v1489 = vpack.c.b16 %v1473, %v1472
      %v1522 = vunpack.c.l.b16 %v1426
      %v1523 = vunpack.c.l.b16 %v1427
      %v1524 = vunpack.c.l.b16 %v1428
      %v1525 = vunpack.c.l.b16 %v1429
      %v1526 = vunpack.c.l.b16 %v1430
      %v1527 = vunpack.c.l.b16 %v1431
      %v1528 = vunpack.c.l.b16 %v1432
      %v1529 = vunpack.c.l.b16 %v1433
      %v1530 = vunpack.c.l.b16 %v1434
      %v1531 = vunpack.c.l.b16 %v1435
      %v1532 = vunpack.c.l.b16 %v1436
      %v1533 = vunpack.c.l.b16 %v1437
      %v1534 = vunpack.c.l.b16 %v1438
      %v1535 = vunpack.c.l.b16 %v1439
      %v1536 = vunpack.c.l.b16 %v1440
      %v1537 = vunpack.c.l.b16 %v1441
      %v1538 = vpack.c.b16 %v1523, %v1522
      %v1539 = vpack.c.b16 %v1525, %v1524
      %v1540 = vpack.c.b16 %v1527, %v1526
      %v1541 = vpack.c.b16 %v1529, %v1528
      %v1542 = vpack.c.b16 %v1531, %v1530
      %v1543 = vpack.c.b16 %v1533, %v1532
      %v1544 = vpack.c.b16 %v1535, %v1534
      %v1545 = vpack.c.b16 %v1537, %v1536
      %1554 = vmatprep.subr.bf16.mxu0 0
      %1555 = vmatpush1.bf16.msra.mxu0 %v1538
      %1556 = vmatprep.subr.bf16.mxu0 0
      %1557 = vmatpush1.bf16.msra.mxu0 %v1539
      %1558 = vmatprep.subr.bf16.mxu0 0
      %1559 = vmatpush1.bf16.msra.mxu0 %v1540
      %1560 = vmatprep.subr.bf16.mxu0 0
      %1561 = vmatpush1.bf16.msra.mxu0 %v1541
      %1562 = vmatprep.subr.bf16.mxu0 0
      %1563 = vmatpush1.bf16.msra.mxu0 %v1542
      %1564 = vmatprep.subr.bf16.mxu0 0
      %1565 = vmatpush1.bf16.msra.mxu0 %v1543
      %1566 = vmatprep.subr.bf16.mxu0 0
      %1567 = vmatpush1.bf16.msra.mxu0 %v1544
      %1568 = vmatprep.subr.bf16.mxu0 0
      %1569 = vmatpush1.bf16.msra.mxu0 %v1545
      %1570 = vmatprep.subr.bf16.mxu0 0
      %1571 = vmatpush1.bf16.msra.mxu0 0
      %1572 = vmatprep.subr.bf16.mxu0 0
      %1573 = vmatpush1.bf16.msra.mxu0 0
      %1574 = vmatprep.subr.bf16.mxu0 0
      %1575 = vmatpush1.bf16.msra.mxu0 0
      %1576 = vmatprep.subr.bf16.mxu0 0
      %1577 = vmatpush1.bf16.msra.mxu0 0
      %1578 = vmatprep.subr.bf16.mxu0 0
      %1579 = vmatpush1.bf16.msra.mxu0 0
      %1580 = vmatprep.subr.bf16.mxu0 0
      %1581 = vmatpush1.bf16.msra.mxu0 0
      %1582 = vmatprep.subr.bf16.mxu0 0
      %1583 = vmatpush1.bf16.msra.mxu0 0
      %1584 = vmatprep.subr.bf16.mxu0 0
      %1585 = vmatpush1.bf16.msra.mxu0 0
      %1586 = vmatprep.mubr.bf16.mxu0 0
      %1587 = vmatmul.mubr.bf16.gmra.mrb[0].mxu0 %v1474
      %v1588 = vpop.f32.mrb[0].mxu0
      %v1589 = vadd.f32 0.0, %v1588
      %v1590 = vpop.f32.mrb[0].mxu0
      %v1591 = vpop.f32.mrb[0].mxu0
      %v1592 = vadd.f32 0.0, %v1591
      %v1593 = vpop.f32.mrb[0].mxu0
      %1594 = vmatprep.mubr.bf16.mxu0 0
      %1595 = vmatmul.mubr.bf16.gmra.mrb[0].mxu0 %v1475
      %v1596 = vpop.f32.mrb[0].mxu0
      %v1597 = vadd.f32 0.0, %v1596
      %v1598 = vpop.f32.mrb[0].mxu0
      %v1599 = vpop.f32.mrb[0].mxu0
      %v1600 = vadd.f32 0.0, %v1599
      %v1601 = vpop.f32.mrb[0].mxu0
      %1602 = vmatprep.mubr.bf16.mxu0 0
      %1603 = vmatmul.mubr.bf16.gmra.mrb[0].mxu0 %v1476
      %v1604 = vpop.f32.mrb[0].mxu0
      %v1605 = vadd.f32 0.0, %v1604
      %v1606 = vpop.f32.mrb[0].mxu0
      %v1607 = vpop.f32.mrb[0].mxu0
      %v1608 = vadd.f32 0.0, %v1607
      %v1609 = vpop.f32.mrb[0].mxu0
      %1610 = vmatprep.mubr.bf16.mxu0 0
      %1611 = vmatmul.mubr.bf16.gmra.mrb[0].mxu0 %v1477
      %v1612 = vpop.f32.mrb[0].mxu0
      %v1613 = vadd.f32 0.0, %v1612
      %v1614 = vpop.f32.mrb[0].mxu0
      %v1615 = vpop.f32.mrb[0].mxu0
      %v1616 = vadd.f32 0.0, %v1615
      %v1617 = vpop.f32.mrb[0].mxu0
      %1618 = vmatprep.mubr.bf16.mxu0 0
      %1619 = vmatmul.mubr.bf16.gmra.mrb[0].mxu0 %v1478
      %v1620 = vpop.f32.mrb[0].mxu0
      %v1621 = vadd.f32 0.0, %v1620
      %v1622 = vpop.f32.mrb[0].mxu0
      %v1623 = vpop.f32.mrb[0].mxu0
      %v1624 = vadd.f32 0.0, %v1623
      %v1625 = vpop.f32.mrb[0].mxu0
      %1626 = vmatprep.mubr.bf16.mxu0 0
      %1627 = vmatmul.mubr.bf16.gmra.mrb[0].mxu0 %v1479
      %v1628 = vpop.f32.mrb[0].mxu0
      %v1629 = vadd.f32 0.0, %v1628
      %v1630 = vpop.f32.mrb[0].mxu0
      %v1631 = vpop.f32.mrb[0].mxu0
      %v1632 = vadd.f32 0.0, %v1631
      %v1633 = vpop.f32.mrb[0].mxu0
      %1634 = vmatprep.mubr.bf16.mxu0 0
      %1635 = vmatmul.mubr.bf16.gmra.mrb[0].mxu0 %v1480
      %v1636 = vpop.f32.mrb[0].mxu0
      %v1637 = vadd.f32 0.0, %v1636
      %v1638 = vpop.f32.mrb[0].mxu0
      %v1639 = vpop.f32.mrb[0].mxu0
      %v1640 = vadd.f32 0.0, %v1639
      %v1641 = vpop.f32.mrb[0].mxu0
      %1642 = vmatprep.mubr.bf16.mxu0 0
      %1643 = vmatmul.mubr.bf16.gmra.mrb[0].mxu0 %v1481
      %v1644 = vpop.f32.mrb[0].mxu0
      %v1645 = vadd.f32 0.0, %v1644
      %v1646 = vpop.f32.mrb[0].mxu0
      %v1647 = vpop.f32.mrb[0].mxu0
      %v1648 = vadd.f32 0.0, %v1647
      %v1649 = vpop.f32.mrb[0].mxu0
      %1650 = vmatprep.mubr.bf16.mxu0 0
      %1651 = vmatmul.mubr.bf16.gmra.mrb[0].mxu0 %v1482
      %v1652 = vpop.f32.mrb[0].mxu0
      %v1653 = vadd.f32 0.0, %v1652
      %v1654 = vpop.f32.mrb[0].mxu0
      %v1655 = vpop.f32.mrb[0].mxu0
      %v1656 = vadd.f32 0.0, %v1655
      %v1657 = vpop.f32.mrb[0].mxu0
      %1658 = vmatprep.mubr.bf16.mxu0 0
      %1659 = vmatmul.mubr.bf16.gmra.mrb[0].mxu0 %v1483
      %v1660 = vpop.f32.mrb[0].mxu0
      %v1661 = vadd.f32 0.0, %v1660
      %v1662 = vpop.f32.mrb[0].mxu0
      %v1663 = vpop.f32.mrb[0].mxu0
      %v1664 = vadd.f32 0.0, %v1663
      %v1665 = vpop.f32.mrb[0].mxu0
      %1666 = vmatprep.mubr.bf16.mxu0 0
      %1667 = vmatmul.mubr.bf16.gmra.mrb[0].mxu0 %v1484
      %v1668 = vpop.f32.mrb[0].mxu0
      %v1669 = vadd.f32 0.0, %v1668
      %v1670 = vpop.f32.mrb[0].mxu0
      %v1671 = vpop.f32.mrb[0].mxu0
      %v1672 = vadd.f32 0.0, %v1671
      %v1673 = vpop.f32.mrb[0].mxu0
      %1674 = vmatprep.mubr.bf16.mxu0 0
      %1675 = vmatmul.mubr.bf16.gmra.mrb[0].mxu0 %v1485
      %v1676 = vpop.f32.mrb[0].mxu0
      %v1677 = vadd.f32 0.0, %v1676
      %v1678 = vpop.f32.mrb[0].mxu0
      %v1679 = vpop.f32.mrb[0].mxu0
      %v1680 = vadd.f32 0.0, %v1679
      %v1681 = vpop.f32.mrb[0].mxu0
      %1682 = vmatprep.mubr.bf16.mxu0 0
      %1683 = vmatmul.mubr.bf16.gmra.mrb[0].mxu0 %v1486
      %v1684 = vpop.f32.mrb[0].mxu0
      %v1685 = vadd.f32 0.0, %v1684
      %v1686 = vpop.f32.mrb[0].mxu0
      %v1687 = vpop.f32.mrb[0].mxu0
      %v1688 = vadd.f32 0.0, %v1687
      %v1689 = vpop.f32.mrb[0].mxu0
      %1690 = vmatprep.mubr.bf16.mxu0 0
      %1691 = vmatmul.mubr.bf16.gmra.mrb[0].mxu0 %v1487
      %v1692 = vpop.f32.mrb[0].mxu0
      %v1693 = vadd.f32 0.0, %v1692
      %v1694 = vpop.f32.mrb[0].mxu0
      %v1695 = vpop.f32.mrb[0].mxu0
      %v1696 = vadd.f32 0.0, %v1695
      %v1697 = vpop.f32.mrb[0].mxu0
      %1698 = vmatprep.mubr.bf16.mxu0 0
      %1699 = vmatmul.mubr.bf16.gmra.mrb[0].mxu0 %v1488
      %v1700 = vpop.f32.mrb[0].mxu0
      %v1701 = vadd.f32 0.0, %v1700
      %v1702 = vpop.f32.mrb[0].mxu0
      %v1703 = vpop.f32.mrb[0].mxu0
      %v1704 = vadd.f32 0.0, %v1703
      %v1705 = vpop.f32.mrb[0].mxu0
      %1706 = vmatprep.mubr.bf16.mxu0 0
      %1707 = vmatmul.mubr.bf16.gmra.mrb[0].mxu0 %v1489
      %v1708 = vpop.f32.mrb[0].mxu0
      %v1709 = vadd.f32 0.0, %v1708
      %v1710 = vpop.f32.mrb[0].mxu0
      %v1711 = vpop.f32.mrb[0].mxu0
      %v1712 = vadd.f32 0.0, %v1711
      %v1713 = vpop.f32.mrb[0].mxu0
      %1714 = vdwg.mxu0
      %v1715 = vadd.f32 %v1136, %v1589
      %v1716 = vadd.f32 %v1139, %v1592
      %v1717 = vadd.f32 %v1144, %v1597
      %v1718 = vadd.f32 %v1147, %v1600
      %v1719 = vadd.f32 %v1152, %v1605
      %v1720 = vadd.f32 %v1155, %v1608
      %v1721 = vadd.f32 %v1160, %v1613
      %v1722 = vadd.f32 %v1163, %v1616
      %v1723 = vadd.f32 %v1168, %v1621
      %v1724 = vadd.f32 %v1171, %v1624
      %v1725 = vadd.f32 %v1176, %v1629
      %v1726 = vadd.f32 %v1179, %v1632
      %v1727 = vadd.f32 %v1184, %v1637
      %v1728 = vadd.f32 %v1187, %v1640
      %v1729 = vadd.f32 %v1192, %v1645
      %v1730 = vadd.f32 %v1195, %v1648
      %v1731 = vadd.f32 %v1200, %v1653
      %v1732 = vadd.f32 %v1203, %v1656
      %v1733 = vadd.f32 %v1208, %v1661
      %v1734 = vadd.f32 %v1211, %v1664
      %v1735 = vadd.f32 %v1216, %v1669
      %v1736 = vadd.f32 %v1219, %v1672
      %v1737 = vadd.f32 %v1224, %v1677
      %v1738 = vadd.f32 %v1227, %v1680
      %v1739 = vadd.f32 %v1232, %v1685
      %v1740 = vadd.f32 %v1235, %v1688
      %v1741 = vadd.f32 %v1240, %v1693
      %v1742 = vadd.f32 %v1243, %v1696
      %v1743 = vadd.f32 %v1248, %v1701
      %v1744 = vadd.f32 %v1251, %v1704
      %v1745 = vadd.f32 %v1256, %v1709
      %v1746 = vadd.f32 %v1259, %v1712
      %s1747 = scalar_lea.vmem %s203, 12
      %v1748 = vld [vmem:[%s1747] sm:$0xf]
      %v1749 = vld [vmem:[%s1747 + $0x4] sm:$0xf]
      %v1750 = vld [vmem:[%s1747 + $0xc] sm:$0xf]
      %v1751 = vld [vmem:[%s1747 + $0x10] sm:$0xf]
      %v1752 = vld [vmem:[%s1747 + $0x18] sm:$0xf]
      %v1753 = vld [vmem:[%s1747 + $0x1c] sm:$0xf]
      %v1754 = vld [vmem:[%s1747 + $0x24] sm:$0xf]
      %v1755 = vld [vmem:[%s1747 + $0x28] sm:$0xf]
      %v1756 = vld [vmem:[%s1747 + $0x30] sm:$0xf]
      %v1757 = vld [vmem:[%s1747 + $0x34] sm:$0xf]
      %v1758 = vld [vmem:[%s1747 + $0x3c] sm:$0xf]
      %v1759 = vld [vmem:[%s1747 + $0x40] sm:$0xf]
      %v1760 = vld [vmem:[%s1747 + $0x48] sm:$0xf]
      %v1761 = vld [vmem:[%s1747 + $0x4c] sm:$0xf]
      %v1762 = vld [vmem:[%s1747 + $0x54] sm:$0xf]
      %v1763 = vld [vmem:[%s1747 + $0x58] sm:$0xf]
      %v1764 = vld [vmem:[%s1747 + $0x60] sm:$0xf]
      %v1765 = vld [vmem:[%s1747 + $0x64] sm:$0xf]
      %v1766 = vld [vmem:[%s1747 + $0x6c] sm:$0xf]
      %v1767 = vld [vmem:[%s1747 + $0x70] sm:$0xf]
      %v1768 = vld [vmem:[%s1747 + $0x78] sm:$0xf]
      %v1769 = vld [vmem:[%s1747 + $0x7c] sm:$0xf]
      %v1770 = vld [vmem:[%s1747 + $0x84] sm:$0xf]
      %v1771 = vld [vmem:[%s1747 + $0x88] sm:$0xf]
      %v1772 = vld [vmem:[%s1747 + $0x90] sm:$0xf]
      %v1773 = vld [vmem:[%s1747 + $0x94] sm:$0xf]
      %v1774 = vld [vmem:[%s1747 + $0x9c] sm:$0xf]
      %v1775 = vld [vmem:[%s1747 + $0xa0] sm:$0xf]
      %v1776 = vld [vmem:[%s1747 + $0xa8] sm:$0xf]
      %v1777 = vld [vmem:[%s1747 + $0xac] sm:$0xf]
      %v1778 = vld [vmem:[%s1747 + $0xb4] sm:$0xf]
      %v1779 = vld [vmem:[%s1747 + $0xb8] sm:$0xf]
      %s1780 = scalar_lea.vmem %s1, 192
      %v1781 = vld [vmem:[%s1780] sm:$0xf]
      %v1782 = vld [vmem:[%s1780 + $0x4] sm:$0xf]
      %v1783 = vld [vmem:[%s1780 + $0x8] sm:$0xf]
      %v1784 = vld [vmem:[%s1780 + $0xc] sm:$0xf]
      %v1785 = vld [vmem:[%s1780 + $0x10] sm:$0xf]
      %v1786 = vld [vmem:[%s1780 + $0x14] sm:$0xf]
      %v1787 = vld [vmem:[%s1780 + $0x18] sm:$0xf]
      %v1788 = vld [vmem:[%s1780 + $0x1c] sm:$0xf]
      %v1789 = vld [vmem:[%s1780 + $0x20] sm:$0xf]
      %v1790 = vld [vmem:[%s1780 + $0x24] sm:$0xf]
      %v1791 = vld [vmem:[%s1780 + $0x28] sm:$0xf]
      %v1792 = vld [vmem:[%s1780 + $0x2c] sm:$0xf]
      %v1793 = vld [vmem:[%s1780 + $0x30] sm:$0xf]
      %v1794 = vld [vmem:[%s1780 + $0x34] sm:$0xf]
      %v1795 = vld [vmem:[%s1780 + $0x38] sm:$0xf]
      %v1796 = vld [vmem:[%s1780 + $0x3c] sm:$0xf]
      %v1829 = vunpack.c.l.b16 %v1748
      %v1830 = vunpack.c.l.b16 %v1749
      %v1831 = vunpack.c.l.b16 %v1750
      %v1832 = vunpack.c.l.b16 %v1751
      %v1833 = vunpack.c.l.b16 %v1752
      %v1834 = vunpack.c.l.b16 %v1753
      %v1835 = vunpack.c.l.b16 %v1754
      %v1836 = vunpack.c.l.b16 %v1755
      %v1837 = vunpack.c.l.b16 %v1756
      %v1838 = vunpack.c.l.b16 %v1757
      %v1839 = vunpack.c.l.b16 %v1758
      %v1840 = vunpack.c.l.b16 %v1759
      %v1841 = vunpack.c.l.b16 %v1760
      %v1842 = vunpack.c.l.b16 %v1761
      %v1843 = vunpack.c.l.b16 %v1762
      %v1844 = vunpack.c.l.b16 %v1763
      %v1845 = vunpack.c.l.b16 %v1764
      %v1846 = vunpack.c.l.b16 %v1765
      %v1847 = vunpack.c.l.b16 %v1766
      %v1848 = vunpack.c.l.b16 %v1767
      %v1849 = vunpack.c.l.b16 %v1768
      %v1850 = vunpack.c.l.b16 %v1769
      %v1851 = vunpack.c.l.b16 %v1770
      %v1852 = vunpack.c.l.b16 %v1771
      %v1853 = vunpack.c.l.b16 %v1772
      %v1854 = vunpack.c.l.b16 %v1773
      %v1855 = vunpack.c.l.b16 %v1774
      %v1856 = vunpack.c.l.b16 %v1775
      %v1857 = vunpack.c.l.b16 %v1776
      %v1858 = vunpack.c.l.b16 %v1777
      %v1859 = vunpack.c.l.b16 %v1778
      %v1860 = vunpack.c.l.b16 %v1779
      %v1861 = vpack.c.b16 %v1830, %v1829
      %v1862 = vpack.c.b16 %v1832, %v1831
      %v1863 = vpack.c.b16 %v1834, %v1833
      %v1864 = vpack.c.b16 %v1836, %v1835
      %v1865 = vpack.c.b16 %v1838, %v1837
      %v1866 = vpack.c.b16 %v1840, %v1839
      %v1867 = vpack.c.b16 %v1842, %v1841
      %v1868 = vpack.c.b16 %v1844, %v1843
      %v1869 = vpack.c.b16 %v1846, %v1845
      %v1870 = vpack.c.b16 %v1848, %v1847
      %v1871 = vpack.c.b16 %v1850, %v1849
      %v1872 = vpack.c.b16 %v1852, %v1851
      %v1873 = vpack.c.b16 %v1854, %v1853
      %v1874 = vpack.c.b16 %v1856, %v1855
      %v1875 = vpack.c.b16 %v1858, %v1857
      %v1876 = vpack.c.b16 %v1860, %v1859
      %v1909 = vunpack.c.l.b16 %v1781
      %v1910 = vunpack.c.l.b16 %v1782
      %v1911 = vunpack.c.l.b16 %v1783
      %v1912 = vunpack.c.l.b16 %v1784
      %v1913 = vunpack.c.l.b16 %v1785
      %v1914 = vunpack.c.l.b16 %v1786
      %v1915 = vunpack.c.l.b16 %v1787
      %v1916 = vunpack.c.l.b16 %v1788
      %v1917 = vunpack.c.l.b16 %v1789
      %v1918 = vunpack.c.l.b16 %v1790
      %v1919 = vunpack.c.l.b16 %v1791
      %v1920 = vunpack.c.l.b16 %v1792
      %v1921 = vunpack.c.l.b16 %v1793
      %v1922 = vunpack.c.l.b16 %v1794
      %v1923 = vunpack.c.l.b16 %v1795
      %v1924 = vunpack.c.l.b16 %v1796
      %v1925 = vpack.c.b16 %v1910, %v1909
      %v1926 = vpack.c.b16 %v1912, %v1911
      %v1927 = vpack.c.b16 %v1914, %v1913
      %v1928 = vpack.c.b16 %v1916, %v1915
      %v1929 = vpack.c.b16 %v1918, %v1917
      %v1930 = vpack.c.b16 %v1920, %v1919
      %v1931 = vpack.c.b16 %v1922, %v1921
      %v1932 = vpack.c.b16 %v1924, %v1923
      %1941 = vmatprep.subr.bf16.mxu0 0
      %1942 = vmatpush1.bf16.msra.mxu0 %v1925
      %1943 = vmatprep.subr.bf16.mxu0 0
      %1944 = vmatpush1.bf16.msra.mxu0 %v1926
      %1945 = vmatprep.subr.bf16.mxu0 0
      %1946 = vmatpush1.bf16.msra.mxu0 %v1927
      %1947 = vmatprep.subr.bf16.mxu0 0
      %1948 = vmatpush1.bf16.msra.mxu0 %v1928
      %1949 = vmatprep.subr.bf16.mxu0 0
      %1950 = vmatpush1.bf16.msra.mxu0 %v1929
      %1951 = vmatprep.subr.bf16.mxu0 0
      %1952 = vmatpush1.bf16.msra.mxu0 %v1930
      %1953 = vmatprep.subr.bf16.mxu0 0
      %1954 = vmatpush1.bf16.msra.mxu0 %v1931
      %1955 = vmatprep.subr.bf16.mxu0 0
      %1956 = vmatpush1.bf16.msra.mxu0 %v1932
      %1957 = vmatprep.subr.bf16.mxu0 0
      %1958 = vmatpush1.bf16.msra.mxu0 0
      %1959 = vmatprep.subr.bf16.mxu0 0
      %1960 = vmatpush1.bf16.msra.mxu0 0
      %1961 = vmatprep.subr.bf16.mxu0 0
      %1962 = vmatpush1.bf16.msra.mxu0 0
      %1963 = vmatprep.subr.bf16.mxu0 0
      %1964 = vmatpush1.bf16.msra.mxu0 0
      %1965 = vmatprep.subr.bf16.mxu0 0
      %1966 = vmatpush1.bf16.msra.mxu0 0
      %1967 = vmatprep.subr.bf16.mxu0 0
      %1968 = vmatpush1.bf16.msra.mxu0 0
      %1969 = vmatprep.subr.bf16.mxu0 0
      %1970 = vmatpush1.bf16.msra.mxu0 0
      %1971 = vmatprep.subr.bf16.mxu0 0
      %1972 = vmatpush1.bf16.msra.mxu0 0
      %1973 = vmatprep.mubr.bf16.mxu0 0
      %1974 = vmatmul.mubr.bf16.gmra.mrb[0].mxu0 %v1861
      %v1975 = vpop.f32.mrb[0].mxu0
      %v1976 = vadd.f32 0.0, %v1975
      %v1977 = vpop.f32.mrb[0].mxu0
      %v1978 = vpop.f32.mrb[0].mxu0
      %v1979 = vadd.f32 0.0, %v1978
      %v1980 = vpop.f32.mrb[0].mxu0
      %1981 = vmatprep.mubr.bf16.mxu0 0
      %1982 = vmatmul.mubr.bf16.gmra.mrb[0].mxu0 %v1862
      %v1983 = vpop.f32.mrb[0].mxu0
      %v1984 = vadd.f32 0.0, %v1983
      %v1985 = vpop.f32.mrb[0].mxu0
      %v1986 = vpop.f32.mrb[0].mxu0
      %v1987 = vadd.f32 0.0, %v1986
      %v1988 = vpop.f32.mrb[0].mxu0
      %1989 = vmatprep.mubr.bf16.mxu0 0
      %1990 = vmatmul.mubr.bf16.gmra.mrb[0].mxu0 %v1863
      %v1991 = vpop.f32.mrb[0].mxu0
      %v1992 = vadd.f32 0.0, %v1991
      %v1993 = vpop.f32.mrb[0].mxu0
      %v1994 = vpop.f32.mrb[0].mxu0
      %v1995 = vadd.f32 0.0, %v1994
      %v1996 = vpop.f32.mrb[0].mxu0
      %1997 = vmatprep.mubr.bf16.mxu0 0
      %1998 = vmatmul.mubr.bf16.gmra.mrb[0].mxu0 %v1864
      %v1999 = vpop.f32.mrb[0].mxu0
      %v2000 = vadd.f32 0.0, %v1999
      %v2001 = vpop.f32.mrb[0].mxu0
      %v2002 = vpop.f32.mrb[0].mxu0
      %v2003 = vadd.f32 0.0, %v2002
      %v2004 = vpop.f32.mrb[0].mxu0
      %2005 = vmatprep.mubr.bf16.mxu0 0
      %2006 = vmatmul.mubr.bf16.gmra.mrb[0].mxu0 %v1865
      %v2007 = vpop.f32.mrb[0].mxu0
      %v2008 = vadd.f32 0.0, %v2007
      %v2009 = vpop.f32.mrb[0].mxu0
      %v2010 = vpop.f32.mrb[0].mxu0
      %v2011 = vadd.f32 0.0, %v2010
      %v2012 = vpop.f32.mrb[0].mxu0
      %2013 = vmatprep.mubr.bf16.mxu0 0
      %2014 = vmatmul.mubr.bf16.gmra.mrb[0].mxu0 %v1866
      %v2015 = vpop.f32.mrb[0].mxu0
      %v2016 = vadd.f32 0.0, %v2015
      %v2017 = vpop.f32.mrb[0].mxu0
      %v2018 = vpop.f32.mrb[0].mxu0
      %v2019 = vadd.f32 0.0, %v2018
      %v2020 = vpop.f32.mrb[0].mxu0
      %2021 = vmatprep.mubr.bf16.mxu0 0
      %2022 = vmatmul.mubr.bf16.gmra.mrb[0].mxu0 %v1867
      %v2023 = vpop.f32.mrb[0].mxu0
      %v2024 = vadd.f32 0.0, %v2023
      %v2025 = vpop.f32.mrb[0].mxu0
      %v2026 = vpop.f32.mrb[0].mxu0
      %v2027 = vadd.f32 0.0, %v2026
      %v2028 = vpop.f32.mrb[0].mxu0
      %2029 = vmatprep.mubr.bf16.mxu0 0
      %2030 = vmatmul.mubr.bf16.gmra.mrb[0].mxu0 %v1868
      %v2031 = vpop.f32.mrb[0].mxu0
      %v2032 = vadd.f32 0.0, %v2031
      %v2033 = vpop.f32.mrb[0].mxu0
      %v2034 = vpop.f32.mrb[0].mxu0
      %v2035 = vadd.f32 0.0, %v2034
      %v2036 = vpop.f32.mrb[0].mxu0
      %2037 = vmatprep.mubr.bf16.mxu0 0
      %2038 = vmatmul.mubr.bf16.gmra.mrb[0].mxu0 %v1869
      %v2039 = vpop.f32.mrb[0].mxu0
      %v2040 = vadd.f32 0.0, %v2039
      %v2041 = vpop.f32.mrb[0].mxu0
      %v2042 = vpop.f32.mrb[0].mxu0
      %v2043 = vadd.f32 0.0, %v2042
      %v2044 = vpop.f32.mrb[0].mxu0
      %2045 = vmatprep.mubr.bf16.mxu0 0
      %2046 = vmatmul.mubr.bf16.gmra.mrb[0].mxu0 %v1870
      %v2047 = vpop.f32.mrb[0].mxu0
      %v2048 = vadd.f32 0.0, %v2047
      %v2049 = vpop.f32.mrb[0].mxu0
      %v2050 = vpop.f32.mrb[0].mxu0
      %v2051 = vadd.f32 0.0, %v2050
      %v2052 = vpop.f32.mrb[0].mxu0
      %2053 = vmatprep.mubr.bf16.mxu0 0
      %2054 = vmatmul.mubr.bf16.gmra.mrb[0].mxu0 %v1871
      %v2055 = vpop.f32.mrb[0].mxu0
      %v2056 = vadd.f32 0.0, %v2055
      %v2057 = vpop.f32.mrb[0].mxu0
      %v2058 = vpop.f32.mrb[0].mxu0
      %v2059 = vadd.f32 0.0, %v2058
      %v2060 = vpop.f32.mrb[0].mxu0
      %2061 = vmatprep.mubr.bf16.mxu0 0
      %2062 = vmatmul.mubr.bf16.gmra.mrb[0].mxu0 %v1872
      %v2063 = vpop.f32.mrb[0].mxu0
      %v2064 = vadd.f32 0.0, %v2063
      %v2065 = vpop.f32.mrb[0].mxu0
      %v2066 = vpop.f32.mrb[0].mxu0
      %v2067 = vadd.f32 0.0, %v2066
      %v2068 = vpop.f32.mrb[0].mxu0
      %2069 = vmatprep.mubr.bf16.mxu0 0
      %2070 = vmatmul.mubr.bf16.gmra.mrb[0].mxu0 %v1873
      %v2071 = vpop.f32.mrb[0].mxu0
      %v2072 = vadd.f32 0.0, %v2071
      %v2073 = vpop.f32.mrb[0].mxu0
      %v2074 = vpop.f32.mrb[0].mxu0
      %v2075 = vadd.f32 0.0, %v2074
      %v2076 = vpop.f32.mrb[0].mxu0
      %2077 = vmatprep.mubr.bf16.mxu0 0
      %2078 = vmatmul.mubr.bf16.gmra.mrb[0].mxu0 %v1874
      %v2079 = vpop.f32.mrb[0].mxu0
      %v2080 = vadd.f32 0.0, %v2079
      %v2081 = vpop.f32.mrb[0].mxu0
      %v2082 = vpop.f32.mrb[0].mxu0
      %v2083 = vadd.f32 0.0, %v2082
      %v2084 = vpop.f32.mrb[0].mxu0
      %2085 = vmatprep.mubr.bf16.mxu0 0
      %2086 = vmatmul.mubr.bf16.gmra.mrb[0].mxu0 %v1875
      %v2087 = vpop.f32.mrb[0].mxu0
      %v2088 = vadd.f32 0.0, %v2087
      %v2089 = vpop.f32.mrb[0].mxu0
      %v2090 = vpop.f32.mrb[0].mxu0
      %v2091 = vadd.f32 0.0, %v2090
      %v2092 = vpop.f32.mrb[0].mxu0
      %2093 = vmatprep.mubr.bf16.mxu0 0
      %2094 = vmatmul.mubr.bf16.gmra.mrb[0].mxu0 %v1876
      %v2095 = vpop.f32.mrb[0].mxu0
      %v2096 = vadd.f32 0.0, %v2095
      %v2097 = vpop.f32.mrb[0].mxu0
      %v2098 = vpop.f32.mrb[0].mxu0
      %v2099 = vadd.f32 0.0, %v2098
      %v2100 = vpop.f32.mrb[0].mxu0
      %2101 = vdwg.mxu0
      %v2102 = vadd.f32 %v1715, %v1976
      %v2103 = vadd.f32 %v1716, %v1979
      %v2104 = vadd.f32 %v1717, %v1984
      %v2105 = vadd.f32 %v1718, %v1987
      %v2106 = vadd.f32 %v1719, %v1992
      %v2107 = vadd.f32 %v1720, %v1995
      %v2108 = vadd.f32 %v1721, %v2000
      %v2109 = vadd.f32 %v1722, %v2003
      %v2110 = vadd.f32 %v1723, %v2008
      %v2111 = vadd.f32 %v1724, %v2011
      %v2112 = vadd.f32 %v1725, %v2016
      %v2113 = vadd.f32 %v1726, %v2019
      %v2114 = vadd.f32 %v1727, %v2024
      %v2115 = vadd.f32 %v1728, %v2027
      %v2116 = vadd.f32 %v1729, %v2032
      %v2117 = vadd.f32 %v1730, %v2035
      %v2118 = vadd.f32 %v1731, %v2040
      %v2119 = vadd.f32 %v1732, %v2043
      %v2120 = vadd.f32 %v1733, %v2048
      %v2121 = vadd.f32 %v1734, %v2051
      %v2122 = vadd.f32 %v1735, %v2056
      %v2123 = vadd.f32 %v1736, %v2059
      %v2124 = vadd.f32 %v1737, %v2064
      %v2125 = vadd.f32 %v1738, %v2067
      %v2126 = vadd.f32 %v1739, %v2072
      %v2127 = vadd.f32 %v1740, %v2075
      %v2128 = vadd.f32 %v1741, %v2080
      %v2129 = vadd.f32 %v1742, %v2083
      %v2130 = vadd.f32 %v1743, %v2088
      %v2131 = vadd.f32 %v1744, %v2091
      %v2132 = vadd.f32 %v1745, %v2096
      %v2133 = vadd.f32 %v1746, %v2099
      %v2134 = vld [vmem:[%s1747] sm:$0xf]
      %v2135 = vld [vmem:[%s1747 + $0x4] sm:$0xf]
      %v2136 = vld [vmem:[%s1747 + $0x8] sm:$0x1]
      %v2137 = vld [vmem:[%s1747 + $0xc] sm:$0xf]
      %v2138 = vld [vmem:[%s1747 + $0x10] sm:$0xf]
      %v2139 = vld [vmem:[%s1747 + $0x14] sm:$0x1]
      %v2140 = vld [vmem:[%s1747 + $0x18] sm:$0xf]
      %v2141 = vld [vmem:[%s1747 + $0x1c] sm:$0xf]
      %v2142 = vld [vmem:[%s1747 + $0x20] sm:$0x1]
      %v2143 = vld [vmem:[%s1747 + $0x24] sm:$0xf]
      %v2144 = vld [vmem:[%s1747 + $0x28] sm:$0xf]
      %v2145 = vld [vmem:[%s1747 + $0x2c] sm:$0x1]
      %v2146 = vld [vmem:[%s1747 + $0x30] sm:$0xf]
      %v2147 = vld [vmem:[%s1747 + $0x34] sm:$0xf]
      %v2148 = vld [vmem:[%s1747 + $0x38] sm:$0x1]
      %v2149 = vld [vmem:[%s1747 + $0x3c] sm:$0xf]
      %v2150 = vld [vmem:[%s1747 + $0x40] sm:$0xf]
      %v2151 = vld [vmem:[%s1747 + $0x44] sm:$0x1]
      %v2152 = vld [vmem:[%s1747 + $0x48] sm:$0xf]
      %v2153 = vld [vmem:[%s1747 + $0x4c] sm:$0xf]
      %v2154 = vld [vmem:[%s1747 + $0x50] sm:$0x1]
      %v2155 = vld [vmem:[%s1747 + $0x54] sm:$0xf]
      %v2156 = vld [vmem:[%s1747 + $0x58] sm:$0xf]
      %v2157 = vld [vmem:[%s1747 + $0x5c] sm:$0x1]
      %v2158 = vld [vmem:[%s1747 + $0x60] sm:$0xf]
      %v2159 = vld [vmem:[%s1747 + $0x64] sm:$0xf]
      %v2160 = vld [vmem:[%s1747 + $0x68] sm:$0x1]
      %v2161 = vld [vmem:[%s1747 + $0x6c] sm:$0xf]
      %v2162 = vld [vmem:[%s1747 + $0x70] sm:$0xf]
      %v2163 = vld [vmem:[%s1747 + $0x74] sm:$0x1]
      %v2164 = vld [vmem:[%s1747 + $0x78] sm:$0xf]
      %v2165 = vld [vmem:[%s1747 + $0x7c] sm:$0xf]
      %v2166 = vld [vmem:[%s1747 + $0x80] sm:$0x1]
      %v2167 = vld [vmem:[%s1747 + $0x84] sm:$0xf]
      %v2168 = vld [vmem:[%s1747 + $0x88] sm:$0xf]
      %v2169 = vld [vmem:[%s1747 + $0x8c] sm:$0x1]
      %v2170 = vld [vmem:[%s1747 + $0x90] sm:$0xf]
      %v2171 = vld [vmem:[%s1747 + $0x94] sm:$0xf]
      %v2172 = vld [vmem:[%s1747 + $0x98] sm:$0x1]
      %v2173 = vld [vmem:[%s1747 + $0x9c] sm:$0xf]
      %v2174 = vld [vmem:[%s1747 + $0xa0] sm:$0xf]
      %v2175 = vld [vmem:[%s1747 + $0xa4] sm:$0x1]
      %v2176 = vld [vmem:[%s1747 + $0xa8] sm:$0xf]
      %v2177 = vld [vmem:[%s1747 + $0xac] sm:$0xf]
      %v2178 = vld [vmem:[%s1747 + $0xb0] sm:$0x1]
      %v2179 = vld [vmem:[%s1747 + $0xb4] sm:$0xf]
      %v2180 = vld [vmem:[%s1747 + $0xb8] sm:$0xf]
      %v2181 = vld [vmem:[%s1747 + $0xbc] sm:$0x1]
      %v2183 = vshrl.u32 %v2134, 16
      %v2185 = vrot.slane %v2183, 4
      %v2186 = vshll.u32 %v2134, 16
      %v2188 = vrot.slane %v2186, 5
      %v2189 = vor.u32 %v2185, %v2188
      %v2190 = vrot.slane %v2189, 4
      %v2192 = vshll.u32 %v2135, 16
      %v2194 = vrot.slane %v2192, 5
      %v2195 = vsel %vm282, %v2190, %v2194
      %v2196 = vshrl.u32 %v2135, 16
      %v2198 = vrot.slane %v2196, 4
      %v2199 = vor.u32 %v2198, %v2194
      %v2200 = vrot.slane %v2199, 4
      %v2202 = vshll.u32 %v2136, 16
      %v2204 = vrot.slane %v2202, 5
      %v2205 = vsel %vm282, %v2200, %v2204
      %v2207 = vshrl.u32 %v2137, 16
      %v2209 = vrot.slane %v2207, 4
      %v2210 = vshll.u32 %v2137, 16
      %v2212 = vrot.slane %v2210, 5
      %v2213 = vor.u32 %v2209, %v2212
      %v2214 = vrot.slane %v2213, 4
      %v2216 = vshll.u32 %v2138, 16
      %v2218 = vrot.slane %v2216, 5
      %v2219 = vsel %vm282, %v2214, %v2218
      %v2220 = vshrl.u32 %v2138, 16
      %v2222 = vrot.slane %v2220, 4
      %v2223 = vor.u32 %v2222, %v2218
      %v2224 = vrot.slane %v2223, 4
      %v2226 = vshll.u32 %v2139, 16
      %v2228 = vrot.slane %v2226, 5
      %v2229 = vsel %vm282, %v2224, %v2228
      %v2231 = vshrl.u32 %v2140, 16
      %v2233 = vrot.slane %v2231, 4
      %v2234 = vshll.u32 %v2140, 16
      %v2236 = vrot.slane %v2234, 5
      %v2237 = vor.u32 %v2233, %v2236
      %v2238 = vrot.slane %v2237, 4
      %v2240 = vshll.u32 %v2141, 16
      %v2242 = vrot.slane %v2240, 5
      %v2243 = vsel %vm282, %v2238, %v2242
      %v2244 = vshrl.u32 %v2141, 16
      %v2246 = vrot.slane %v2244, 4
      %v2247 = vor.u32 %v2246, %v2242
      %v2248 = vrot.slane %v2247, 4
      %v2250 = vshll.u32 %v2142, 16
      %v2252 = vrot.slane %v2250, 5
      %v2253 = vsel %vm282, %v2248, %v2252
      %v2255 = vshrl.u32 %v2143, 16
      %v2257 = vrot.slane %v2255, 4
      %v2258 = vshll.u32 %v2143, 16
      %v2260 = vrot.slane %v2258, 5
      %v2261 = vor.u32 %v2257, %v2260
      %v2262 = vrot.slane %v2261, 4
      %v2264 = vshll.u32 %v2144, 16
      %v2266 = vrot.slane %v2264, 5
      %v2267 = vsel %vm282, %v2262, %v2266
      %v2268 = vshrl.u32 %v2144, 16
      %v2270 = vrot.slane %v2268, 4
      %v2271 = vor.u32 %v2270, %v2266
      %v2272 = vrot.slane %v2271, 4
      %v2274 = vshll.u32 %v2145, 16
      %v2276 = vrot.slane %v2274, 5
      %v2277 = vsel %vm282, %v2272, %v2276
      %v2279 = vshrl.u32 %v2146, 16
      %v2281 = vrot.slane %v2279, 4
      %v2282 = vshll.u32 %v2146, 16
      %v2284 = vrot.slane %v2282, 5
      %v2285 = vor.u32 %v2281, %v2284
      %v2286 = vrot.slane %v2285, 4
      %v2288 = vshll.u32 %v2147, 16
      %v2290 = vrot.slane %v2288, 5
      %v2291 = vsel %vm282, %v2286, %v2290
      %v2292 = vshrl.u32 %v2147, 16
      %v2294 = vrot.slane %v2292, 4
      %v2295 = vor.u32 %v2294, %v2290
      %v2296 = vrot.slane %v2295, 4
      %v2298 = vshll.u32 %v2148, 16
      %v2300 = vrot.slane %v2298, 5
      %v2301 = vsel %vm282, %v2296, %v2300
      %v2303 = vshrl.u32 %v2149, 16
      %v2305 = vrot.slane %v2303, 4
      %v2306 = vshll.u32 %v2149, 16
      %v2308 = vrot.slane %v2306, 5
      %v2309 = vor.u32 %v2305, %v2308
      %v2310 = vrot.slane %v2309, 4
      %v2312 = vshll.u32 %v2150, 16
      %v2314 = vrot.slane %v2312, 5
      %v2315 = vsel %vm282, %v2310, %v2314
      %v2316 = vshrl.u32 %v2150, 16
      %v2318 = vrot.slane %v2316, 4
      %v2319 = vor.u32 %v2318, %v2314
      %v2320 = vrot.slane %v2319, 4
      %v2322 = vshll.u32 %v2151, 16
      %v2324 = vrot.slane %v2322, 5
      %v2325 = vsel %vm282, %v2320, %v2324
      %v2327 = vshrl.u32 %v2152, 16
      %v2329 = vrot.slane %v2327, 4
      %v2330 = vshll.u32 %v2152, 16
      %v2332 = vrot.slane %v2330, 5
      %v2333 = vor.u32 %v2329, %v2332
      %v2334 = vrot.slane %v2333, 4
      %v2336 = vshll.u32 %v2153, 16
      %v2338 = vrot.slane %v2336, 5
      %v2339 = vsel %vm282, %v2334, %v2338
      %v2340 = vshrl.u32 %v2153, 16
      %v2342 = vrot.slane %v2340, 4
      %v2343 = vor.u32 %v2342, %v2338
      %v2344 = vrot.slane %v2343, 4
      %v2346 = vshll.u32 %v2154, 16
      %v2348 = vrot.slane %v2346, 5
      %v2349 = vsel %vm282, %v2344, %v2348
      %v2351 = vshrl.u32 %v2155, 16
      %v2353 = vrot.slane %v2351, 4
      %v2354 = vshll.u32 %v2155, 16
      %v2356 = vrot.slane %v2354, 5
      %v2357 = vor.u32 %v2353, %v2356
      %v2358 = vrot.slane %v2357, 4
      %v2360 = vshll.u32 %v2156, 16
      %v2362 = vrot.slane %v2360, 5
      %v2363 = vsel %vm282, %v2358, %v2362
      %v2364 = vshrl.u32 %v2156, 16
      %v2366 = vrot.slane %v2364, 4
      %v2367 = vor.u32 %v2366, %v2362
      %v2368 = vrot.slane %v2367, 4
      %v2370 = vshll.u32 %v2157, 16
      %v2372 = vrot.slane %v2370, 5
      %v2373 = vsel %vm282, %v2368, %v2372
      %v2375 = vshrl.u32 %v2158, 16
      %v2377 = vrot.slane %v2375, 4
      %v2378 = vshll.u32 %v2158, 16
      %v2380 = vrot.slane %v2378, 5
      %v2381 = vor.u32 %v2377, %v2380
      %v2382 = vrot.slane %v2381, 4
      %v2384 = vshll.u32 %v2159, 16
      %v2386 = vrot.slane %v2384, 5
      %v2387 = vsel %vm282, %v2382, %v2386
      %v2388 = vshrl.u32 %v2159, 16
      %v2390 = vrot.slane %v2388, 4
      %v2391 = vor.u32 %v2390, %v2386
      %v2392 = vrot.slane %v2391, 4
      %v2394 = vshll.u32 %v2160, 16
      %v2396 = vrot.slane %v2394, 5
      %v2397 = vsel %vm282, %v2392, %v2396
      %v2399 = vshrl.u32 %v2161, 16
      %v2401 = vrot.slane %v2399, 4
      %v2402 = vshll.u32 %v2161, 16
      %v2404 = vrot.slane %v2402, 5
      %v2405 = vor.u32 %v2401, %v2404
      %v2406 = vrot.slane %v2405, 4
      %v2408 = vshll.u32 %v2162, 16
      %v2410 = vrot.slane %v2408, 5
      %v2411 = vsel %vm282, %v2406, %v2410
      %v2412 = vshrl.u32 %v2162, 16
      %v2414 = vrot.slane %v2412, 4
      %v2415 = vor.u32 %v2414, %v2410
      %v2416 = vrot.slane %v2415, 4
      %v2418 = vshll.u32 %v2163, 16
      %v2420 = vrot.slane %v2418, 5
      %v2421 = vsel %vm282, %v2416, %v2420
      %v2423 = vshrl.u32 %v2164, 16
      %v2425 = vrot.slane %v2423, 4
      %v2426 = vshll.u32 %v2164, 16
      %v2428 = vrot.slane %v2426, 5
      %v2429 = vor.u32 %v2425, %v2428
      %v2430 = vrot.slane %v2429, 4
      %v2432 = vshll.u32 %v2165, 16
      %v2434 = vrot.slane %v2432, 5
      %v2435 = vsel %vm282, %v2430, %v2434
      %v2436 = vshrl.u32 %v2165, 16
      %v2438 = vrot.slane %v2436, 4
      %v2439 = vor.u32 %v2438, %v2434
      %v2440 = vrot.slane %v2439, 4
      %v2442 = vshll.u32 %v2166, 16
      %v2444 = vrot.slane %v2442, 5
      %v2445 = vsel %vm282, %v2440, %v2444
      %v2447 = vshrl.u32 %v2167, 16
      %v2449 = vrot.slane %v2447, 4
      %v2450 = vshll.u32 %v2167, 16
      %v2452 = vrot.slane %v2450, 5
      %v2453 = vor.u32 %v2449, %v2452
      %v2454 = vrot.slane %v2453, 4
      %v2456 = vshll.u32 %v2168, 16
      %v2458 = vrot.slane %v2456, 5
      %v2459 = vsel %vm282, %v2454, %v2458
      %v2460 = vshrl.u32 %v2168, 16
      %v2462 = vrot.slane %v2460, 4
      %v2463 = vor.u32 %v2462, %v2458
      %v2464 = vrot.slane %v2463, 4
      %v2466 = vshll.u32 %v2169, 16
      %v2468 = vrot.slane %v2466, 5
      %v2469 = vsel %vm282, %v2464, %v2468
      %v2471 = vshrl.u32 %v2170, 16
      %v2473 = vrot.slane %v2471, 4
      %v2474 = vshll.u32 %v2170, 16
      %v2476 = vrot.slane %v2474, 5
      %v2477 = vor.u32 %v2473, %v2476
      %v2478 = vrot.slane %v2477, 4
      %v2480 = vshll.u32 %v2171, 16
      %v2482 = vrot.slane %v2480, 5
      %v2483 = vsel %vm282, %v2478, %v2482
      %v2484 = vshrl.u32 %v2171, 16
      %v2486 = vrot.slane %v2484, 4
      %v2487 = vor.u32 %v2486, %v2482
      %v2488 = vrot.slane %v2487, 4
      %v2490 = vshll.u32 %v2172, 16
      %v2492 = vrot.slane %v2490, 5
      %v2493 = vsel %vm282, %v2488, %v2492
      %v2495 = vshrl.u32 %v2173, 16
      %v2497 = vrot.slane %v2495, 4
      %v2498 = vshll.u32 %v2173, 16
      %v2500 = vrot.slane %v2498, 5
      %v2501 = vor.u32 %v2497, %v2500
      %v2502 = vrot.slane %v2501, 4
      %v2504 = vshll.u32 %v2174, 16
      %v2506 = vrot.slane %v2504, 5
      %v2507 = vsel %vm282, %v2502, %v2506
      %v2508 = vshrl.u32 %v2174, 16
      %v2510 = vrot.slane %v2508, 4
      %v2511 = vor.u32 %v2510, %v2506
      %v2512 = vrot.slane %v2511, 4
      %v2514 = vshll.u32 %v2175, 16
      %v2516 = vrot.slane %v2514, 5
      %v2517 = vsel %vm282, %v2512, %v2516
      %v2519 = vshrl.u32 %v2176, 16
      %v2521 = vrot.slane %v2519, 4
      %v2522 = vshll.u32 %v2176, 16
      %v2524 = vrot.slane %v2522, 5
      %v2525 = vor.u32 %v2521, %v2524
      %v2526 = vrot.slane %v2525, 4
      %v2528 = vshll.u32 %v2177, 16
      %v2530 = vrot.slane %v2528, 5
      %v2531 = vsel %vm282, %v2526, %v2530
      %v2532 = vshrl.u32 %v2177, 16
      %v2534 = vrot.slane %v2532, 4
      %v2535 = vor.u32 %v2534, %v2530
      %v2536 = vrot.slane %v2535, 4
      %v2538 = vshll.u32 %v2178, 16
      %v2540 = vrot.slane %v2538, 5
      %v2541 = vsel %vm282, %v2536, %v2540
      %v2543 = vshrl.u32 %v2179, 16
      %v2545 = vrot.slane %v2543, 4
      %v2546 = vshll.u32 %v2179, 16
      %v2548 = vrot.slane %v2546, 5
      %v2549 = vor.u32 %v2545, %v2548
      %v2550 = vrot.slane %v2549, 4
      %v2552 = vshll.u32 %v2180, 16
      %v2554 = vrot.slane %v2552, 5
      %v2555 = vsel %vm282, %v2550, %v2554
      %v2556 = vshrl.u32 %v2180, 16
      %v2558 = vrot.slane %v2556, 4
      %v2559 = vor.u32 %v2558, %v2554
      %v2560 = vrot.slane %v2559, 4
      %v2562 = vshll.u32 %v2181, 16
      %v2564 = vrot.slane %v2562, 5
      %v2565 = vsel %vm282, %v2560, %v2564
      %s2566 = scalar_lea.vmem %s1, 256
      %v2567 = vld [vmem:[%s2566] sm:$0xf]
      %v2568 = vld [vmem:[%s2566 + $0x4] sm:$0xf]
      %v2569 = vld [vmem:[%s2566 + $0x8] sm:$0xf]
      %v2570 = vld [vmem:[%s2566 + $0xc] sm:$0xf]
      %v2571 = vld [vmem:[%s2566 + $0x10] sm:$0xf]
      %v2572 = vld [vmem:[%s2566 + $0x14] sm:$0xf]
      %v2573 = vld [vmem:[%s2566 + $0x18] sm:$0xf]
      %v2574 = vld [vmem:[%s2566 + $0x1c] sm:$0xf]
      %v2575 = vld [vmem:[%s2566 + $0x20] sm:$0xf]
      %v2576 = vld [vmem:[%s2566 + $0x24] sm:$0xf]
      %v2577 = vld [vmem:[%s2566 + $0x28] sm:$0xf]
      %v2578 = vld [vmem:[%s2566 + $0x2c] sm:$0xf]
      %v2579 = vld [vmem:[%s2566 + $0x30] sm:$0xf]
      %v2580 = vld [vmem:[%s2566 + $0x34] sm:$0xf]
      %v2581 = vld [vmem:[%s2566 + $0x38] sm:$0xf]
      %v2582 = vld [vmem:[%s2566 + $0x3c] sm:$0xf]
      %v2583 = vunpack.c.l.b16 %v2195
      %v2584 = vunpack.c.l.b16 %v2205
      %v2585 = vunpack.c.l.b16 %v2219
      %v2586 = vunpack.c.l.b16 %v2229
      %v2587 = vunpack.c.l.b16 %v2243
      %v2588 = vunpack.c.l.b16 %v2253
      %v2589 = vunpack.c.l.b16 %v2267
      %v2590 = vunpack.c.l.b16 %v2277
      %v2591 = vunpack.c.l.b16 %v2291
      %v2592 = vunpack.c.l.b16 %v2301
      %v2593 = vunpack.c.l.b16 %v2315
      %v2594 = vunpack.c.l.b16 %v2325
      %v2595 = vunpack.c.l.b16 %v2339
      %v2596 = vunpack.c.l.b16 %v2349
      %v2597 = vunpack.c.l.b16 %v2363
      %v2598 = vunpack.c.l.b16 %v2373
      %v2599 = vunpack.c.l.b16 %v2387
      %v2600 = vunpack.c.l.b16 %v2397
      %v2601 = vunpack.c.l.b16 %v2411
      %v2602 = vunpack.c.l.b16 %v2421
      %v2603 = vunpack.c.l.b16 %v2435
      %v2604 = vunpack.c.l.b16 %v2445
      %v2605 = vunpack.c.l.b16 %v2459
      %v2606 = vunpack.c.l.b16 %v2469
      %v2607 = vunpack.c.l.b16 %v2483
      %v2608 = vunpack.c.l.b16 %v2493
      %v2609 = vunpack.c.l.b16 %v2507
      %v2610 = vunpack.c.l.b16 %v2517
      %v2611 = vunpack.c.l.b16 %v2531
      %v2612 = vunpack.c.l.b16 %v2541
      %v2613 = vunpack.c.l.b16 %v2555
      %v2614 = vunpack.c.l.b16 %v2565
      %v2615 = vpack.c.b16 %v2584, %v2583
      %v2616 = vpack.c.b16 %v2586, %v2585
      %v2617 = vpack.c.b16 %v2588, %v2587
      %v2618 = vpack.c.b16 %v2590, %v2589
      %v2619 = vpack.c.b16 %v2592, %v2591
      %v2620 = vpack.c.b16 %v2594, %v2593
      %v2621 = vpack.c.b16 %v2596, %v2595
      %v2622 = vpack.c.b16 %v2598, %v2597
      %v2623 = vpack.c.b16 %v2600, %v2599
      %v2624 = vpack.c.b16 %v2602, %v2601
      %v2625 = vpack.c.b16 %v2604, %v2603
      %v2626 = vpack.c.b16 %v2606, %v2605
      %v2627 = vpack.c.b16 %v2608, %v2607
      %v2628 = vpack.c.b16 %v2610, %v2609
      %v2629 = vpack.c.b16 %v2612, %v2611
      %v2630 = vpack.c.b16 %v2614, %v2613
      %v2663 = vunpack.c.l.b16 %v2567
      %v2664 = vunpack.c.l.b16 %v2568
      %v2665 = vunpack.c.l.b16 %v2569
      %v2666 = vunpack.c.l.b16 %v2570
      %v2667 = vunpack.c.l.b16 %v2571
      %v2668 = vunpack.c.l.b16 %v2572
      %v2669 = vunpack.c.l.b16 %v2573
      %v2670 = vunpack.c.l.b16 %v2574
      %v2671 = vunpack.c.l.b16 %v2575
      %v2672 = vunpack.c.l.b16 %v2576
      %v2673 = vunpack.c.l.b16 %v2577
      %v2674 = vunpack.c.l.b16 %v2578
      %v2675 = vunpack.c.l.b16 %v2579
      %v2676 = vunpack.c.l.b16 %v2580
      %v2677 = vunpack.c.l.b16 %v2581
      %v2678 = vunpack.c.l.b16 %v2582
      %v2679 = vpack.c.b16 %v2664, %v2663
      %v2680 = vpack.c.b16 %v2666, %v2665
      %v2681 = vpack.c.b16 %v2668, %v2667
      %v2682 = vpack.c.b16 %v2670, %v2669
      %v2683 = vpack.c.b16 %v2672, %v2671
      %v2684 = vpack.c.b16 %v2674, %v2673
      %v2685 = vpack.c.b16 %v2676, %v2675
      %v2686 = vpack.c.b16 %v2678, %v2677
      %2695 = vmatprep.subr.bf16.mxu0 0
      %2696 = vmatpush1.bf16.msra.mxu0 %v2679
      %2697 = vmatprep.subr.bf16.mxu0 0
      %2698 = vmatpush1.bf16.msra.mxu0 %v2680
      %2699 = vmatprep.subr.bf16.mxu0 0
      %2700 = vmatpush1.bf16.msra.mxu0 %v2681
      %2701 = vmatprep.subr.bf16.mxu0 0
      %2702 = vmatpush1.bf16.msra.mxu0 %v2682
      %2703 = vmatprep.subr.bf16.mxu0 0
      %2704 = vmatpush1.bf16.msra.mxu0 %v2683
      %2705 = vmatprep.subr.bf16.mxu0 0
      %2706 = vmatpush1.bf16.msra.mxu0 %v2684
      %2707 = vmatprep.subr.bf16.mxu0 0
      %2708 = vmatpush1.bf16.msra.mxu0 %v2685
      %2709 = vmatprep.subr.bf16.mxu0 0
      %2710 = vmatpush1.bf16.msra.mxu0 %v2686
      %2711 = vmatprep.subr.bf16.mxu0 0
      %2712 = vmatpush1.bf16.msra.mxu0 0
      %2713 = vmatprep.subr.bf16.mxu0 0
      %2714 = vmatpush1.bf16.msra.mxu0 0
      %2715 = vmatprep.subr.bf16.mxu0 0
      %2716 = vmatpush1.bf16.msra.mxu0 0
      %2717 = vmatprep.subr.bf16.mxu0 0
      %2718 = vmatpush1.bf16.msra.mxu0 0
      %2719 = vmatprep.subr.bf16.mxu0 0
      %2720 = vmatpush1.bf16.msra.mxu0 0
      %2721 = vmatprep.subr.bf16.mxu0 0
      %2722 = vmatpush1.bf16.msra.mxu0 0
      %2723 = vmatprep.subr.bf16.mxu0 0
      %2724 = vmatpush1.bf16.msra.mxu0 0
      %2725 = vmatprep.subr.bf16.mxu0 0
      %2726 = vmatpush1.bf16.msra.mxu0 0
      %2727 = vmatprep.mubr.bf16.mxu0 0
      %2728 = vmatmul.mubr.bf16.gmra.mrb[0].mxu0 %v2615
      %v2729 = vpop.f32.mrb[0].mxu0
      %v2730 = vadd.f32 0.0, %v2729
      %v2731 = vpop.f32.mrb[0].mxu0
      %v2732 = vpop.f32.mrb[0].mxu0
      %v2733 = vadd.f32 0.0, %v2732
      %v2734 = vpop.f32.mrb[0].mxu0
      %2735 = vmatprep.mubr.bf16.mxu0 0
      %2736 = vmatmul.mubr.bf16.gmra.mrb[0].mxu0 %v2616
      %v2737 = vpop.f32.mrb[0].mxu0
      %v2738 = vadd.f32 0.0, %v2737
      %v2739 = vpop.f32.mrb[0].mxu0
      %v2740 = vpop.f32.mrb[0].mxu0
      %v2741 = vadd.f32 0.0, %v2740
      %v2742 = vpop.f32.mrb[0].mxu0
      %2743 = vmatprep.mubr.bf16.mxu0 0
      %2744 = vmatmul.mubr.bf16.gmra.mrb[0].mxu0 %v2617
      %v2745 = vpop.f32.mrb[0].mxu0
      %v2746 = vadd.f32 0.0, %v2745
      %v2747 = vpop.f32.mrb[0].mxu0
      %v2748 = vpop.f32.mrb[0].mxu0
      %v2749 = vadd.f32 0.0, %v2748
      %v2750 = vpop.f32.mrb[0].mxu0
      %2751 = vmatprep.mubr.bf16.mxu0 0
      %2752 = vmatmul.mubr.bf16.gmra.mrb[0].mxu0 %v2618
      %v2753 = vpop.f32.mrb[0].mxu0
      %v2754 = vadd.f32 0.0, %v2753
      %v2755 = vpop.f32.mrb[0].mxu0
      %v2756 = vpop.f32.mrb[0].mxu0
      %v2757 = vadd.f32 0.0, %v2756
      %v2758 = vpop.f32.mrb[0].mxu0
      %2759 = vmatprep.mubr.bf16.mxu0 0
      %2760 = vmatmul.mubr.bf16.gmra.mrb[0].mxu0 %v2619
      %v2761 = vpop.f32.mrb[0].mxu0
      %v2762 = vadd.f32 0.0, %v2761
      %v2763 = vpop.f32.mrb[0].mxu0
      %v2764 = vpop.f32.mrb[0].mxu0
      %v2765 = vadd.f32 0.0, %v2764
      %v2766 = vpop.f32.mrb[0].mxu0
      %2767 = vmatprep.mubr.bf16.mxu0 0
      %2768 = vmatmul.mubr.bf16.gmra.mrb[0].mxu0 %v2620
      %v2769 = vpop.f32.mrb[0].mxu0
      %v2770 = vadd.f32 0.0, %v2769
      %v2771 = vpop.f32.mrb[0].mxu0
      %v2772 = vpop.f32.mrb[0].mxu0
      %v2773 = vadd.f32 0.0, %v2772
      %v2774 = vpop.f32.mrb[0].mxu0
      %2775 = vmatprep.mubr.bf16.mxu0 0
      %2776 = vmatmul.mubr.bf16.gmra.mrb[0].mxu0 %v2621
      %v2777 = vpop.f32.mrb[0].mxu0
      %v2778 = vadd.f32 0.0, %v2777
      %v2779 = vpop.f32.mrb[0].mxu0
      %v2780 = vpop.f32.mrb[0].mxu0
      %v2781 = vadd.f32 0.0, %v2780
      %v2782 = vpop.f32.mrb[0].mxu0
      %2783 = vmatprep.mubr.bf16.mxu0 0
      %2784 = vmatmul.mubr.bf16.gmra.mrb[0].mxu0 %v2622
      %v2785 = vpop.f32.mrb[0].mxu0
      %v2786 = vadd.f32 0.0, %v2785
      %v2787 = vpop.f32.mrb[0].mxu0
      %v2788 = vpop.f32.mrb[0].mxu0
      %v2789 = vadd.f32 0.0, %v2788
      %v2790 = vpop.f32.mrb[0].mxu0
      %2791 = vmatprep.mubr.bf16.mxu0 0
      %2792 = vmatmul.mubr.bf16.gmra.mrb[0].mxu0 %v2623
      %v2793 = vpop.f32.mrb[0].mxu0
      %v2794 = vadd.f32 0.0, %v2793
      %v2795 = vpop.f32.mrb[0].mxu0
      %v2796 = vpop.f32.mrb[0].mxu0
      %v2797 = vadd.f32 0.0, %v2796
      %v2798 = vpop.f32.mrb[0].mxu0
      %2799 = vmatprep.mubr.bf16.mxu0 0
      %2800 = vmatmul.mubr.bf16.gmra.mrb[0].mxu0 %v2624
      %v2801 = vpop.f32.mrb[0].mxu0
      %v2802 = vadd.f32 0.0, %v2801
      %v2803 = vpop.f32.mrb[0].mxu0
      %v2804 = vpop.f32.mrb[0].mxu0
      %v2805 = vadd.f32 0.0, %v2804
      %v2806 = vpop.f32.mrb[0].mxu0
      %2807 = vmatprep.mubr.bf16.mxu0 0
      %2808 = vmatmul.mubr.bf16.gmra.mrb[0].mxu0 %v2625
      %v2809 = vpop.f32.mrb[0].mxu0
      %v2810 = vadd.f32 0.0, %v2809
      %v2811 = vpop.f32.mrb[0].mxu0
      %v2812 = vpop.f32.mrb[0].mxu0
      %v2813 = vadd.f32 0.0, %v2812
      %v2814 = vpop.f32.mrb[0].mxu0
      %2815 = vmatprep.mubr.bf16.mxu0 0
      %2816 = vmatmul.mubr.bf16.gmra.mrb[0].mxu0 %v2626
      %v2817 = vpop.f32.mrb[0].mxu0
      %v2818 = vadd.f32 0.0, %v2817
      %v2819 = vpop.f32.mrb[0].mxu0
      %v2820 = vpop.f32.mrb[0].mxu0
      %v2821 = vadd.f32 0.0, %v2820
      %v2822 = vpop.f32.mrb[0].mxu0
      %2823 = vmatprep.mubr.bf16.mxu0 0
      %2824 = vmatmul.mubr.bf16.gmra.mrb[0].mxu0 %v2627
      %v2825 = vpop.f32.mrb[0].mxu0
      %v2826 = vadd.f32 0.0, %v2825
      %v2827 = vpop.f32.mrb[0].mxu0
      %v2828 = vpop.f32.mrb[0].mxu0
      %v2829 = vadd.f32 0.0, %v2828
      %v2830 = vpop.f32.mrb[0].mxu0
      %2831 = vmatprep.mubr.bf16.mxu0 0
      %2832 = vmatmul.mubr.bf16.gmra.mrb[0].mxu0 %v2628
      %v2833 = vpop.f32.mrb[0].mxu0
      %v2834 = vadd.f32 0.0, %v2833
      %v2835 = vpop.f32.mrb[0].mxu0
      %v2836 = vpop.f32.mrb[0].mxu0
      %v2837 = vadd.f32 0.0, %v2836
      %v2838 = vpop.f32.mrb[0].mxu0
      %2839 = vmatprep.mubr.bf16.mxu0 0
      %2840 = vmatmul.mubr.bf16.gmra.mrb[0].mxu0 %v2629
      %v2841 = vpop.f32.mrb[0].mxu0
      %v2842 = vadd.f32 0.0, %v2841
      %v2843 = vpop.f32.mrb[0].mxu0
      %v2844 = vpop.f32.mrb[0].mxu0
      %v2845 = vadd.f32 0.0, %v2844
      %v2846 = vpop.f32.mrb[0].mxu0
      %2847 = vmatprep.mubr.bf16.mxu0 0
      %2848 = vmatmul.mubr.bf16.gmra.mrb[0].mxu0 %v2630
      %v2849 = vpop.f32.mrb[0].mxu0
      %v2850 = vadd.f32 0.0, %v2849
      %v2851 = vpop.f32.mrb[0].mxu0
      %v2852 = vpop.f32.mrb[0].mxu0
      %v2853 = vadd.f32 0.0, %v2852
      %v2854 = vpop.f32.mrb[0].mxu0
      %2855 = vdwg.mxu0
      %v2856 = vadd.f32 %v2102, %v2730
      %v2857 = vadd.f32 %v2103, %v2733
      %v2858 = vadd.f32 %v2104, %v2738
      %v2859 = vadd.f32 %v2105, %v2741
      %v2860 = vadd.f32 %v2106, %v2746
      %v2861 = vadd.f32 %v2107, %v2749
      %v2862 = vadd.f32 %v2108, %v2754
      %v2863 = vadd.f32 %v2109, %v2757
      %v2864 = vadd.f32 %v2110, %v2762
      %v2865 = vadd.f32 %v2111, %v2765
      %v2866 = vadd.f32 %v2112, %v2770
      %v2867 = vadd.f32 %v2113, %v2773
      %v2868 = vadd.f32 %v2114, %v2778
      %v2869 = vadd.f32 %v2115, %v2781
      %v2870 = vadd.f32 %v2116, %v2786
      %v2871 = vadd.f32 %v2117, %v2789
      %v2872 = vadd.f32 %v2118, %v2794
      %v2873 = vadd.f32 %v2119, %v2797
      %v2874 = vadd.f32 %v2120, %v2802
      %v2875 = vadd.f32 %v2121, %v2805
      %v2876 = vadd.f32 %v2122, %v2810
      %v2877 = vadd.f32 %v2123, %v2813
      %v2878 = vadd.f32 %v2124, %v2818
      %v2879 = vadd.f32 %v2125, %v2821
      %v2880 = vadd.f32 %v2126, %v2826
      %v2881 = vadd.f32 %v2127, %v2829
      %v2882 = vadd.f32 %v2128, %v2834
      %v2883 = vadd.f32 %v2129, %v2837
      %v2884 = vadd.f32 %v2130, %v2842
      %v2885 = vadd.f32 %v2131, %v2845
      %v2886 = vadd.f32 %v2132, %v2850
      %v2887 = vadd.f32 %v2133, %v2853
      %v2888 = vld [vmem:[%s1747] sm:$0xe]
      %v2889 = vld [vmem:[%s1747 + $0xc] sm:$0xe]
      %v2890 = vld [vmem:[%s1747 + $0x18] sm:$0xe]
      %v2891 = vld [vmem:[%s1747 + $0x24] sm:$0xe]
      %v2892 = vld [vmem:[%s1747 + $0x30] sm:$0xe]
      %v2893 = vld [vmem:[%s1747 + $0x3c] sm:$0xe]
      %v2894 = vld [vmem:[%s1747 + $0x48] sm:$0xe]
      %v2895 = vld [vmem:[%s1747 + $0x54] sm:$0xe]
      %v2896 = vld [vmem:[%s1747 + $0x60] sm:$0xe]
      %v2897 = vld [vmem:[%s1747 + $0x6c] sm:$0xe]
      %v2898 = vld [vmem:[%s1747 + $0x78] sm:$0xe]
      %v2899 = vld [vmem:[%s1747 + $0x84] sm:$0xe]
      %v2900 = vld [vmem:[%s1747 + $0x90] sm:$0xe]
      %v2901 = vld [vmem:[%s1747 + $0x9c] sm:$0xe]
      %v2902 = vld [vmem:[%s1747 + $0xa8] sm:$0xe]
      %v2903 = vld [vmem:[%s1747 + $0xb4] sm:$0xe]
      %v2952 = vrot.slane %v2888, 5
      %v2953 = vrot.slane %v2952, 4
      %v2954 = vrot.slane %v2135, 5
      %v2955 = vsel %vm1312, %v2953, %v2954
      %v2956 = vrot.slane %v2954, 4
      %v2957 = vrot.slane %v2136, 5
      %v2958 = vsel %vm1312, %v2956, %v2957
      %v2959 = vrot.slane %v2889, 5
      %v2960 = vrot.slane %v2959, 4
      %v2961 = vrot.slane %v2138, 5
      %v2962 = vsel %vm1312, %v2960, %v2961
      %v2963 = vrot.slane %v2961, 4
      %v2964 = vrot.slane %v2139, 5
      %v2965 = vsel %vm1312, %v2963, %v2964
      %v2966 = vrot.slane %v2890, 5
      %v2967 = vrot.slane %v2966, 4
      %v2968 = vrot.slane %v2141, 5
      %v2969 = vsel %vm1312, %v2967, %v2968
      %v2970 = vrot.slane %v2968, 4
      %v2971 = vrot.slane %v2142, 5
      %v2972 = vsel %vm1312, %v2970, %v2971
      %v2973 = vrot.slane %v2891, 5
      %v2974 = vrot.slane %v2973, 4
      %v2975 = vrot.slane %v2144, 5
      %v2976 = vsel %vm1312, %v2974, %v2975
      %v2977 = vrot.slane %v2975, 4
      %v2978 = vrot.slane %v2145, 5
      %v2979 = vsel %vm1312, %v2977, %v2978
      %v2980 = vrot.slane %v2892, 5
      %v2981 = vrot.slane %v2980, 4
      %v2982 = vrot.slane %v2147, 5
      %v2983 = vsel %vm1312, %v2981, %v2982
      %v2984 = vrot.slane %v2982, 4
      %v2985 = vrot.slane %v2148, 5
      %v2986 = vsel %vm1312, %v2984, %v2985
      %v2987 = vrot.slane %v2893, 5
      %v2988 = vrot.slane %v2987, 4
      %v2989 = vrot.slane %v2150, 5
      %v2990 = vsel %vm1312, %v2988, %v2989
      %v2991 = vrot.slane %v2989, 4
      %v2992 = vrot.slane %v2151, 5
      %v2993 = vsel %vm1312, %v2991, %v2992
      %v2994 = vrot.slane %v2894, 5
      %v2995 = vrot.slane %v2994, 4
      %v2996 = vrot.slane %v2153, 5
      %v2997 = vsel %vm1312, %v2995, %v2996
      %v2998 = vrot.slane %v2996, 4
      %v2999 = vrot.slane %v2154, 5
      %v3000 = vsel %vm1312, %v2998, %v2999
      %v3001 = vrot.slane %v2895, 5
      %v3002 = vrot.slane %v3001, 4
      %v3003 = vrot.slane %v2156, 5
      %v3004 = vsel %vm1312, %v3002, %v3003
      %v3005 = vrot.slane %v3003, 4
      %v3006 = vrot.slane %v2157, 5
      %v3007 = vsel %vm1312, %v3005, %v3006
      %v3008 = vrot.slane %v2896, 5
      %v3009 = vrot.slane %v3008, 4
      %v3010 = vrot.slane %v2159, 5
      %v3011 = vsel %vm1312, %v3009, %v3010
      %v3012 = vrot.slane %v3010, 4
      %v3013 = vrot.slane %v2160, 5
      %v3014 = vsel %vm1312, %v3012, %v3013
      %v3015 = vrot.slane %v2897, 5
      %v3016 = vrot.slane %v3015, 4
      %v3017 = vrot.slane %v2162, 5
      %v3018 = vsel %vm1312, %v3016, %v3017
      %v3019 = vrot.slane %v3017, 4
      %v3020 = vrot.slane %v2163, 5
      %v3021 = vsel %vm1312, %v3019, %v3020
      %v3022 = vrot.slane %v2898, 5
      %v3023 = vrot.slane %v3022, 4
      %v3024 = vrot.slane %v2165, 5
      %v3025 = vsel %vm1312, %v3023, %v3024
      %v3026 = vrot.slane %v3024, 4
      %v3027 = vrot.slane %v2166, 5
      %v3028 = vsel %vm1312, %v3026, %v3027
      %v3029 = vrot.slane %v2899, 5
      %v3030 = vrot.slane %v3029, 4
      %v3031 = vrot.slane %v2168, 5
      %v3032 = vsel %vm1312, %v3030, %v3031
      %v3033 = vrot.slane %v3031, 4
      %v3034 = vrot.slane %v2169, 5
      %v3035 = vsel %vm1312, %v3033, %v3034
      %v3036 = vrot.slane %v2900, 5
      %v3037 = vrot.slane %v3036, 4
      %v3038 = vrot.slane %v2171, 5
      %v3039 = vsel %vm1312, %v3037, %v3038
      %v3040 = vrot.slane %v3038, 4
      %v3041 = vrot.slane %v2172, 5
      %v3042 = vsel %vm1312, %v3040, %v3041
      %v3043 = vrot.slane %v2901, 5
      %v3044 = vrot.slane %v3043, 4
      %v3045 = vrot.slane %v2174, 5
      %v3046 = vsel %vm1312, %v3044, %v3045
      %v3047 = vrot.slane %v3045, 4
      %v3048 = vrot.slane %v2175, 5
      %v3049 = vsel %vm1312, %v3047, %v3048
      %v3050 = vrot.slane %v2902, 5
      %v3051 = vrot.slane %v3050, 4
      %v3052 = vrot.slane %v2177, 5
      %v3053 = vsel %vm1312, %v3051, %v3052
      %v3054 = vrot.slane %v3052, 4
      %v3055 = vrot.slane %v2178, 5
      %v3056 = vsel %vm1312, %v3054, %v3055
      %v3057 = vrot.slane %v2903, 5
      %v3058 = vrot.slane %v3057, 4
      %v3059 = vrot.slane %v2180, 5
      %v3060 = vsel %vm1312, %v3058, %v3059
      %v3061 = vrot.slane %v3059, 4
      %v3062 = vrot.slane %v2181, 5
      %v3063 = vsel %vm1312, %v3061, %v3062
      %s3064 = scalar_lea.vmem %s1, 320
      %v3065 = vld [vmem:[%s3064] sm:$0xf]
      %v3066 = vld [vmem:[%s3064 + $0x4] sm:$0xf]
      %v3067 = vld [vmem:[%s3064 + $0x8] sm:$0xf]
      %v3068 = vld [vmem:[%s3064 + $0xc] sm:$0xf]
      %v3069 = vld [vmem:[%s3064 + $0x10] sm:$0xf]
      %v3070 = vld [vmem:[%s3064 + $0x14] sm:$0xf]
      %v3071 = vld [vmem:[%s3064 + $0x18] sm:$0xf]
      %v3072 = vld [vmem:[%s3064 + $0x1c] sm:$0xf]
      %v3073 = vld [vmem:[%s3064 + $0x20] sm:$0xf]
      %v3074 = vld [vmem:[%s3064 + $0x24] sm:$0xf]
      %v3075 = vld [vmem:[%s3064 + $0x28] sm:$0xf]
      %v3076 = vld [vmem:[%s3064 + $0x2c] sm:$0xf]
      %v3077 = vld [vmem:[%s3064 + $0x30] sm:$0xf]
      %v3078 = vld [vmem:[%s3064 + $0x34] sm:$0xf]
      %v3079 = vld [vmem:[%s3064 + $0x38] sm:$0xf]
      %v3080 = vld [vmem:[%s3064 + $0x3c] sm:$0xf]
      %v3081 = vunpack.c.l.b16 %v2955
      %v3082 = vunpack.c.l.b16 %v2958
      %v3083 = vunpack.c.l.b16 %v2962
      %v3084 = vunpack.c.l.b16 %v2965
      %v3085 = vunpack.c.l.b16 %v2969
      %v3086 = vunpack.c.l.b16 %v2972
      %v3087 = vunpack.c.l.b16 %v2976
      %v3088 = vunpack.c.l.b16 %v2979
      %v3089 = vunpack.c.l.b16 %v2983
      %v3090 = vunpack.c.l.b16 %v2986
      %v3091 = vunpack.c.l.b16 %v2990
      %v3092 = vunpack.c.l.b16 %v2993
      %v3093 = vunpack.c.l.b16 %v2997
      %v3094 = vunpack.c.l.b16 %v3000
      %v3095 = vunpack.c.l.b16 %v3004
      %v3096 = vunpack.c.l.b16 %v3007
      %v3097 = vunpack.c.l.b16 %v3011
      %v3098 = vunpack.c.l.b16 %v3014
      %v3099 = vunpack.c.l.b16 %v3018
      %v3100 = vunpack.c.l.b16 %v3021
      %v3101 = vunpack.c.l.b16 %v3025
      %v3102 = vunpack.c.l.b16 %v3028
      %v3103 = vunpack.c.l.b16 %v3032
      %v3104 = vunpack.c.l.b16 %v3035
      %v3105 = vunpack.c.l.b16 %v3039
      %v3106 = vunpack.c.l.b16 %v3042
      %v3107 = vunpack.c.l.b16 %v3046
      %v3108 = vunpack.c.l.b16 %v3049
      %v3109 = vunpack.c.l.b16 %v3053
      %v3110 = vunpack.c.l.b16 %v3056
      %v3111 = vunpack.c.l.b16 %v3060
      %v3112 = vunpack.c.l.b16 %v3063
      %v3113 = vpack.c.b16 %v3082, %v3081
      %v3114 = vpack.c.b16 %v3084, %v3083
      %v3115 = vpack.c.b16 %v3086, %v3085
      %v3116 = vpack.c.b16 %v3088, %v3087
      %v3117 = vpack.c.b16 %v3090, %v3089
      %v3118 = vpack.c.b16 %v3092, %v3091
      %v3119 = vpack.c.b16 %v3094, %v3093
      %v3120 = vpack.c.b16 %v3096, %v3095
      %v3121 = vpack.c.b16 %v3098, %v3097
      %v3122 = vpack.c.b16 %v3100, %v3099
      %v3123 = vpack.c.b16 %v3102, %v3101
      %v3124 = vpack.c.b16 %v3104, %v3103
      %v3125 = vpack.c.b16 %v3106, %v3105
      %v3126 = vpack.c.b16 %v3108, %v3107
      %v3127 = vpack.c.b16 %v3110, %v3109
      %v3128 = vpack.c.b16 %v3112, %v3111
      %v3161 = vunpack.c.l.b16 %v3065
      %v3162 = vunpack.c.l.b16 %v3066
      %v3163 = vunpack.c.l.b16 %v3067
      %v3164 = vunpack.c.l.b16 %v3068
      %v3165 = vunpack.c.l.b16 %v3069
      %v3166 = vunpack.c.l.b16 %v3070
      %v3167 = vunpack.c.l.b16 %v3071
      %v3168 = vunpack.c.l.b16 %v3072
      %v3169 = vunpack.c.l.b16 %v3073
      %v3170 = vunpack.c.l.b16 %v3074
      %v3171 = vunpack.c.l.b16 %v3075
      %v3172 = vunpack.c.l.b16 %v3076
      %v3173 = vunpack.c.l.b16 %v3077
      %v3174 = vunpack.c.l.b16 %v3078
      %v3175 = vunpack.c.l.b16 %v3079
      %v3176 = vunpack.c.l.b16 %v3080
      %v3177 = vpack.c.b16 %v3162, %v3161
      %v3178 = vpack.c.b16 %v3164, %v3163
      %v3179 = vpack.c.b16 %v3166, %v3165
      %v3180 = vpack.c.b16 %v3168, %v3167
      %v3181 = vpack.c.b16 %v3170, %v3169
      %v3182 = vpack.c.b16 %v3172, %v3171
      %v3183 = vpack.c.b16 %v3174, %v3173
      %v3184 = vpack.c.b16 %v3176, %v3175
      %3193 = vmatprep.subr.bf16.mxu0 0
      %3194 = vmatpush1.bf16.msra.mxu0 %v3177
      %3195 = vmatprep.subr.bf16.mxu0 0
      %3196 = vmatpush1.bf16.msra.mxu0 %v3178
      %3197 = vmatprep.subr.bf16.mxu0 0
      %3198 = vmatpush1.bf16.msra.mxu0 %v3179
      %3199 = vmatprep.subr.bf16.mxu0 0
      %3200 = vmatpush1.bf16.msra.mxu0 %v3180
      %3201 = vmatprep.subr.bf16.mxu0 0
      %3202 = vmatpush1.bf16.msra.mxu0 %v3181
      %3203 = vmatprep.subr.bf16.mxu0 0
      %3204 = vmatpush1.bf16.msra.mxu0 %v3182
      %3205 = vmatprep.subr.bf16.mxu0 0
      %3206 = vmatpush1.bf16.msra.mxu0 %v3183
      %3207 = vmatprep.subr.bf16.mxu0 0
      %3208 = vmatpush1.bf16.msra.mxu0 %v3184
      %3209 = vmatprep.subr.bf16.mxu0 0
      %3210 = vmatpush1.bf16.msra.mxu0 0
      %3211 = vmatprep.subr.bf16.mxu0 0
      %3212 = vmatpush1.bf16.msra.mxu0 0
      %3213 = vmatprep.subr.bf16.mxu0 0
      %3214 = vmatpush1.bf16.msra.mxu0 0
      %3215 = vmatprep.subr.bf16.mxu0 0
      %3216 = vmatpush1.bf16.msra.mxu0 0
      %3217 = vmatprep.subr.bf16.mxu0 0
      %3218 = vmatpush1.bf16.msra.mxu0 0
      %3219 = vmatprep.subr.bf16.mxu0 0
      %3220 = vmatpush1.bf16.msra.mxu0 0
      %3221 = vmatprep.subr.bf16.mxu0 0
      %3222 = vmatpush1.bf16.msra.mxu0 0
      %3223 = vmatprep.subr.bf16.mxu0 0
      %3224 = vmatpush1.bf16.msra.mxu0 0
      %3225 = vmatprep.mubr.bf16.mxu0 0
      %3226 = vmatmul.mubr.bf16.gmra.mrb[0].mxu0 %v3113
      %v3227 = vpop.f32.mrb[0].mxu0
      %v3228 = vadd.f32 0.0, %v3227
      %v3229 = vpop.f32.mrb[0].mxu0
      %v3230 = vpop.f32.mrb[0].mxu0
      %v3231 = vadd.f32 0.0, %v3230
      %v3232 = vpop.f32.mrb[0].mxu0
      %3233 = vmatprep.mubr.bf16.mxu0 0
      %3234 = vmatmul.mubr.bf16.gmra.mrb[0].mxu0 %v3114
      %v3235 = vpop.f32.mrb[0].mxu0
      %v3236 = vadd.f32 0.0, %v3235
      %v3237 = vpop.f32.mrb[0].mxu0
      %v3238 = vpop.f32.mrb[0].mxu0
      %v3239 = vadd.f32 0.0, %v3238
      %v3240 = vpop.f32.mrb[0].mxu0
      %3241 = vmatprep.mubr.bf16.mxu0 0
      %3242 = vmatmul.mubr.bf16.gmra.mrb[0].mxu0 %v3115
      %v3243 = vpop.f32.mrb[0].mxu0
      %v3244 = vadd.f32 0.0, %v3243
      %v3245 = vpop.f32.mrb[0].mxu0
      %v3246 = vpop.f32.mrb[0].mxu0
      %v3247 = vadd.f32 0.0, %v3246
      %v3248 = vpop.f32.mrb[0].mxu0
      %3249 = vmatprep.mubr.bf16.mxu0 0
      %3250 = vmatmul.mubr.bf16.gmra.mrb[0].mxu0 %v3116
      %v3251 = vpop.f32.mrb[0].mxu0
      %v3252 = vadd.f32 0.0, %v3251
      %v3253 = vpop.f32.mrb[0].mxu0
      %v3254 = vpop.f32.mrb[0].mxu0
      %v3255 = vadd.f32 0.0, %v3254
      %v3256 = vpop.f32.mrb[0].mxu0
      %3257 = vmatprep.mubr.bf16.mxu0 0
      %3258 = vmatmul.mubr.bf16.gmra.mrb[0].mxu0 %v3117
      %v3259 = vpop.f32.mrb[0].mxu0
      %v3260 = vadd.f32 0.0, %v3259
      %v3261 = vpop.f32.mrb[0].mxu0
      %v3262 = vpop.f32.mrb[0].mxu0
      %v3263 = vadd.f32 0.0, %v3262
      %v3264 = vpop.f32.mrb[0].mxu0
      %3265 = vmatprep.mubr.bf16.mxu0 0
      %3266 = vmatmul.mubr.bf16.gmra.mrb[0].mxu0 %v3118
      %v3267 = vpop.f32.mrb[0].mxu0
      %v3268 = vadd.f32 0.0, %v3267
      %v3269 = vpop.f32.mrb[0].mxu0
      %v3270 = vpop.f32.mrb[0].mxu0
      %v3271 = vadd.f32 0.0, %v3270
      %v3272 = vpop.f32.mrb[0].mxu0
      %3273 = vmatprep.mubr.bf16.mxu0 0
      %3274 = vmatmul.mubr.bf16.gmra.mrb[0].mxu0 %v3119
      %v3275 = vpop.f32.mrb[0].mxu0
      %v3276 = vadd.f32 0.0, %v3275
      %v3277 = vpop.f32.mrb[0].mxu0
      %v3278 = vpop.f32.mrb[0].mxu0
      %v3279 = vadd.f32 0.0, %v3278
      %v3280 = vpop.f32.mrb[0].mxu0
      %3281 = vmatprep.mubr.bf16.mxu0 0
      %3282 = vmatmul.mubr.bf16.gmra.mrb[0].mxu0 %v3120
      %v3283 = vpop.f32.mrb[0].mxu0
      %v3284 = vadd.f32 0.0, %v3283
      %v3285 = vpop.f32.mrb[0].mxu0
      %v3286 = vpop.f32.mrb[0].mxu0
      %v3287 = vadd.f32 0.0, %v3286
      %v3288 = vpop.f32.mrb[0].mxu0
      %3289 = vmatprep.mubr.bf16.mxu0 0
      %3290 = vmatmul.mubr.bf16.gmra.mrb[0].mxu0 %v3121
      %v3291 = vpop.f32.mrb[0].mxu0
      %v3292 = vadd.f32 0.0, %v3291
      %v3293 = vpop.f32.mrb[0].mxu0
      %v3294 = vpop.f32.mrb[0].mxu0
      %v3295 = vadd.f32 0.0, %v3294
      %v3296 = vpop.f32.mrb[0].mxu0
      %3297 = vmatprep.mubr.bf16.mxu0 0
      %3298 = vmatmul.mubr.bf16.gmra.mrb[0].mxu0 %v3122
      %v3299 = vpop.f32.mrb[0].mxu0
      %v3300 = vadd.f32 0.0, %v3299
      %v3301 = vpop.f32.mrb[0].mxu0
      %v3302 = vpop.f32.mrb[0].mxu0
      %v3303 = vadd.f32 0.0, %v3302
      %v3304 = vpop.f32.mrb[0].mxu0
      %3305 = vmatprep.mubr.bf16.mxu0 0
      %3306 = vmatmul.mubr.bf16.gmra.mrb[0].mxu0 %v3123
      %v3307 = vpop.f32.mrb[0].mxu0
      %v3308 = vadd.f32 0.0, %v3307
      %v3309 = vpop.f32.mrb[0].mxu0
      %v3310 = vpop.f32.mrb[0].mxu0
      %v3311 = vadd.f32 0.0, %v3310
      %v3312 = vpop.f32.mrb[0].mxu0
      %3313 = vmatprep.mubr.bf16.mxu0 0
      %3314 = vmatmul.mubr.bf16.gmra.mrb[0].mxu0 %v3124
      %v3315 = vpop.f32.mrb[0].mxu0
      %v3316 = vadd.f32 0.0, %v3315
      %v3317 = vpop.f32.mrb[0].mxu0
      %v3318 = vpop.f32.mrb[0].mxu0
      %v3319 = vadd.f32 0.0, %v3318
      %v3320 = vpop.f32.mrb[0].mxu0
      %3321 = vmatprep.mubr.bf16.mxu0 0
      %3322 = vmatmul.mubr.bf16.gmra.mrb[0].mxu0 %v3125
      %v3323 = vpop.f32.mrb[0].mxu0
      %v3324 = vadd.f32 0.0, %v3323
      %v3325 = vpop.f32.mrb[0].mxu0
      %v3326 = vpop.f32.mrb[0].mxu0
      %v3327 = vadd.f32 0.0, %v3326
      %v3328 = vpop.f32.mrb[0].mxu0
      %3329 = vmatprep.mubr.bf16.mxu0 0
      %3330 = vmatmul.mubr.bf16.gmra.mrb[0].mxu0 %v3126
      %v3331 = vpop.f32.mrb[0].mxu0
      %v3332 = vadd.f32 0.0, %v3331
      %v3333 = vpop.f32.mrb[0].mxu0
      %v3334 = vpop.f32.mrb[0].mxu0
      %v3335 = vadd.f32 0.0, %v3334
      %v3336 = vpop.f32.mrb[0].mxu0
      %3337 = vmatprep.mubr.bf16.mxu0 0
      %3338 = vmatmul.mubr.bf16.gmra.mrb[0].mxu0 %v3127
      %v3339 = vpop.f32.mrb[0].mxu0
      %v3340 = vadd.f32 0.0, %v3339
      %v3341 = vpop.f32.mrb[0].mxu0
      %v3342 = vpop.f32.mrb[0].mxu0
      %v3343 = vadd.f32 0.0, %v3342
      %v3344 = vpop.f32.mrb[0].mxu0
      %3345 = vmatprep.mubr.bf16.mxu0 0
      %3346 = vmatmul.mubr.bf16.gmra.mrb[0].mxu0 %v3128
      %v3347 = vpop.f32.mrb[0].mxu0
      %v3348 = vadd.f32 0.0, %v3347
      %v3349 = vpop.f32.mrb[0].mxu0
      %v3350 = vpop.f32.mrb[0].mxu0
      %v3351 = vadd.f32 0.0, %v3350
      %v3352 = vpop.f32.mrb[0].mxu0
      %3353 = vdwg.mxu0
      %v3354 = vadd.f32 %v2856, %v3228
      %v3355 = vadd.f32 %v2857, %v3231
      %v3356 = vadd.f32 %v2858, %v3236
      %v3357 = vadd.f32 %v2859, %v3239
      %v3358 = vadd.f32 %v2860, %v3244
      %v3359 = vadd.f32 %v2861, %v3247
      %v3360 = vadd.f32 %v2862, %v3252
      %v3361 = vadd.f32 %v2863, %v3255
      %v3362 = vadd.f32 %v2864, %v3260
      %v3363 = vadd.f32 %v2865, %v3263
      %v3364 = vadd.f32 %v2866, %v3268
      %v3365 = vadd.f32 %v2867, %v3271
      %v3366 = vadd.f32 %v2868, %v3276
      %v3367 = vadd.f32 %v2869, %v3279
      %v3368 = vadd.f32 %v2870, %v3284
      %v3369 = vadd.f32 %v2871, %v3287
      %v3370 = vadd.f32 %v2872, %v3292
      %v3371 = vadd.f32 %v2873, %v3295
      %v3372 = vadd.f32 %v2874, %v3300
      %v3373 = vadd.f32 %v2875, %v3303
      %v3374 = vadd.f32 %v2876, %v3308
      %v3375 = vadd.f32 %v2877, %v3311
      %v3376 = vadd.f32 %v2878, %v3316
      %v3377 = vadd.f32 %v2879, %v3319
      %v3378 = vadd.f32 %v2880, %v3324
      %v3379 = vadd.f32 %v2881, %v3327
      %v3380 = vadd.f32 %v2882, %v3332
      %v3381 = vadd.f32 %v2883, %v3335
      %v3382 = vadd.f32 %v2884, %v3340
      %v3383 = vadd.f32 %v2885, %v3343
      %v3384 = vadd.f32 %v2886, %v3348
      %v3385 = vadd.f32 %v2887, %v3351
      %s3386 = scalar_lea.vmem %s203, 24
      %v3387 = vld [vmem:[%s3386] sm:$0xf]
      %v3388 = vld [vmem:[%s3386 + $0x4] sm:$0xf]
      %v3389 = vld [vmem:[%s3386 + $0xc] sm:$0xf]
      %v3390 = vld [vmem:[%s3386 + $0x10] sm:$0xf]
      %v3391 = vld [vmem:[%s3386 + $0x18] sm:$0xf]
      %v3392 = vld [vmem:[%s3386 + $0x1c] sm:$0xf]
      %v3393 = vld [vmem:[%s3386 + $0x24] sm:$0xf]
      %v3394 = vld [vmem:[%s3386 + $0x28] sm:$0xf]
      %v3395 = vld [vmem:[%s3386 + $0x30] sm:$0xf]
      %v3396 = vld [vmem:[%s3386 + $0x34] sm:$0xf]
      %v3397 = vld [vmem:[%s3386 + $0x3c] sm:$0xf]
      %v3398 = vld [vmem:[%s3386 + $0x40] sm:$0xf]
      %v3399 = vld [vmem:[%s3386 + $0x48] sm:$0xf]
      %v3400 = vld [vmem:[%s3386 + $0x4c] sm:$0xf]
      %v3401 = vld [vmem:[%s3386 + $0x54] sm:$0xf]
      %v3402 = vld [vmem:[%s3386 + $0x58] sm:$0xf]
      %v3403 = vld [vmem:[%s3386 + $0x60] sm:$0xf]
      %v3404 = vld [vmem:[%s3386 + $0x64] sm:$0xf]
      %v3405 = vld [vmem:[%s3386 + $0x6c] sm:$0xf]
      %v3406 = vld [vmem:[%s3386 + $0x70] sm:$0xf]
      %v3407 = vld [vmem:[%s3386 + $0x78] sm:$0xf]
      %v3408 = vld [vmem:[%s3386 + $0x7c] sm:$0xf]
      %v3409 = vld [vmem:[%s3386 + $0x84] sm:$0xf]
      %v3410 = vld [vmem:[%s3386 + $0x88] sm:$0xf]
      %v3411 = vld [vmem:[%s3386 + $0x90] sm:$0xf]
      %v3412 = vld [vmem:[%s3386 + $0x94] sm:$0xf]
      %v3413 = vld [vmem:[%s3386 + $0x9c] sm:$0xf]
      %v3414 = vld [vmem:[%s3386 + $0xa0] sm:$0xf]
      %v3415 = vld [vmem:[%s3386 + $0xa8] sm:$0xf]
      %v3416 = vld [vmem:[%s3386 + $0xac] sm:$0xf]
      %v3417 = vld [vmem:[%s3386 + $0xb4] sm:$0xf]
      %v3418 = vld [vmem:[%s3386 + $0xb8] sm:$0xf]
      %s3419 = scalar_lea.vmem %s1, 384
      %v3420 = vld [vmem:[%s3419] sm:$0xf]
      %v3421 = vld [vmem:[%s3419 + $0x4] sm:$0xf]
      %v3422 = vld [vmem:[%s3419 + $0x8] sm:$0xf]
      %v3423 = vld [vmem:[%s3419 + $0xc] sm:$0xf]
      %v3424 = vld [vmem:[%s3419 + $0x10] sm:$0xf]
      %v3425 = vld [vmem:[%s3419 + $0x14] sm:$0xf]
      %v3426 = vld [vmem:[%s3419 + $0x18] sm:$0xf]
      %v3427 = vld [vmem:[%s3419 + $0x1c] sm:$0xf]
      %v3428 = vld [vmem:[%s3419 + $0x20] sm:$0xf]
      %v3429 = vld [vmem:[%s3419 + $0x24] sm:$0xf]
      %v3430 = vld [vmem:[%s3419 + $0x28] sm:$0xf]
      %v3431 = vld [vmem:[%s3419 + $0x2c] sm:$0xf]
      %v3432 = vld [vmem:[%s3419 + $0x30] sm:$0xf]
      %v3433 = vld [vmem:[%s3419 + $0x34] sm:$0xf]
      %v3434 = vld [vmem:[%s3419 + $0x38] sm:$0xf]
      %v3435 = vld [vmem:[%s3419 + $0x3c] sm:$0xf]
      %v3468 = vunpack.c.l.b16 %v3387
      %v3469 = vunpack.c.l.b16 %v3388
      %v3470 = vunpack.c.l.b16 %v3389
      %v3471 = vunpack.c.l.b16 %v3390
      %v3472 = vunpack.c.l.b16 %v3391
      %v3473 = vunpack.c.l.b16 %v3392
      %v3474 = vunpack.c.l.b16 %v3393
      %v3475 = vunpack.c.l.b16 %v3394
      %v3476 = vunpack.c.l.b16 %v3395
      %v3477 = vunpack.c.l.b16 %v3396
      %v3478 = vunpack.c.l.b16 %v3397
      %v3479 = vunpack.c.l.b16 %v3398
      %v3480 = vunpack.c.l.b16 %v3399
      %v3481 = vunpack.c.l.b16 %v3400
      %v3482 = vunpack.c.l.b16 %v3401
      %v3483 = vunpack.c.l.b16 %v3402
      %v3484 = vunpack.c.l.b16 %v3403
      %v3485 = vunpack.c.l.b16 %v3404
      %v3486 = vunpack.c.l.b16 %v3405
      %v3487 = vunpack.c.l.b16 %v3406
      %v3488 = vunpack.c.l.b16 %v3407
      %v3489 = vunpack.c.l.b16 %v3408
      %v3490 = vunpack.c.l.b16 %v3409
      %v3491 = vunpack.c.l.b16 %v3410
      %v3492 = vunpack.c.l.b16 %v3411
      %v3493 = vunpack.c.l.b16 %v3412
      %v3494 = vunpack.c.l.b16 %v3413
      %v3495 = vunpack.c.l.b16 %v3414
      %v3496 = vunpack.c.l.b16 %v3415
      %v3497 = vunpack.c.l.b16 %v3416
      %v3498 = vunpack.c.l.b16 %v3417
      %v3499 = vunpack.c.l.b16 %v3418
      %v3500 = vpack.c.b16 %v3469, %v3468
      %v3501 = vpack.c.b16 %v3471, %v3470
      %v3502 = vpack.c.b16 %v3473, %v3472
      %v3503 = vpack.c.b16 %v3475, %v3474
      %v3504 = vpack.c.b16 %v3477, %v3476
      %v3505 = vpack.c.b16 %v3479, %v3478
      %v3506 = vpack.c.b16 %v3481, %v3480
      %v3507 = vpack.c.b16 %v3483, %v3482
      %v3508 = vpack.c.b16 %v3485, %v3484
      %v3509 = vpack.c.b16 %v3487, %v3486
      %v3510 = vpack.c.b16 %v3489, %v3488
      %v3511 = vpack.c.b16 %v3491, %v3490
      %v3512 = vpack.c.b16 %v3493, %v3492
      %v3513 = vpack.c.b16 %v3495, %v3494
      %v3514 = vpack.c.b16 %v3497, %v3496
      %v3515 = vpack.c.b16 %v3499, %v3498
      %v3548 = vunpack.c.l.b16 %v3420
      %v3549 = vunpack.c.l.b16 %v3421
      %v3550 = vunpack.c.l.b16 %v3422
      %v3551 = vunpack.c.l.b16 %v3423
      %v3552 = vunpack.c.l.b16 %v3424
      %v3553 = vunpack.c.l.b16 %v3425
      %v3554 = vunpack.c.l.b16 %v3426
      %v3555 = vunpack.c.l.b16 %v3427
      %v3556 = vunpack.c.l.b16 %v3428
      %v3557 = vunpack.c.l.b16 %v3429
      %v3558 = vunpack.c.l.b16 %v3430
      %v3559 = vunpack.c.l.b16 %v3431
      %v3560 = vunpack.c.l.b16 %v3432
      %v3561 = vunpack.c.l.b16 %v3433
      %v3562 = vunpack.c.l.b16 %v3434
      %v3563 = vunpack.c.l.b16 %v3435
      %v3564 = vpack.c.b16 %v3549, %v3548
      %v3565 = vpack.c.b16 %v3551, %v3550
      %v3566 = vpack.c.b16 %v3553, %v3552
      %v3567 = vpack.c.b16 %v3555, %v3554
      %v3568 = vpack.c.b16 %v3557, %v3556
      %v3569 = vpack.c.b16 %v3559, %v3558
      %v3570 = vpack.c.b16 %v3561, %v3560
      %v3571 = vpack.c.b16 %v3563, %v3562
      %3580 = vmatprep.subr.bf16.mxu0 0
      %3581 = vmatpush1.bf16.msra.mxu0 %v3564
      %3582 = vmatprep.subr.bf16.mxu0 0
      %3583 = vmatpush1.bf16.msra.mxu0 %v3565
      %3584 = vmatprep.subr.bf16.mxu0 0
      %3585 = vmatpush1.bf16.msra.mxu0 %v3566
      %3586 = vmatprep.subr.bf16.mxu0 0
      %3587 = vmatpush1.bf16.msra.mxu0 %v3567
      %3588 = vmatprep.subr.bf16.mxu0 0
      %3589 = vmatpush1.bf16.msra.mxu0 %v3568
      %3590 = vmatprep.subr.bf16.mxu0 0
      %3591 = vmatpush1.bf16.msra.mxu0 %v3569
      %3592 = vmatprep.subr.bf16.mxu0 0
      %3593 = vmatpush1.bf16.msra.mxu0 %v3570
      %3594 = vmatprep.subr.bf16.mxu0 0
      %3595 = vmatpush1.bf16.msra.mxu0 %v3571
      %3596 = vmatprep.subr.bf16.mxu0 0
      %3597 = vmatpush1.bf16.msra.mxu0 0
      %3598 = vmatprep.subr.bf16.mxu0 0
      %3599 = vmatpush1.bf16.msra.mxu0 0
      %3600 = vmatprep.subr.bf16.mxu0 0
      %3601 = vmatpush1.bf16.msra.mxu0 0
      %3602 = vmatprep.subr.bf16.mxu0 0
      %3603 = vmatpush1.bf16.msra.mxu0 0
      %3604 = vmatprep.subr.bf16.mxu0 0
      %3605 = vmatpush1.bf16.msra.mxu0 0
      %3606 = vmatprep.subr.bf16.mxu0 0
      %3607 = vmatpush1.bf16.msra.mxu0 0
      %3608 = vmatprep.subr.bf16.mxu0 0
      %3609 = vmatpush1.bf16.msra.mxu0 0
      %3610 = vmatprep.subr.bf16.mxu0 0
      %3611 = vmatpush1.bf16.msra.mxu0 0
      %3612 = vmatprep.mubr.bf16.mxu0 0
      %3613 = vmatmul.mubr.bf16.gmra.mrb[0].mxu0 %v3500
      %v3614 = vpop.f32.mrb[0].mxu0
      %v3615 = vadd.f32 0.0, %v3614
      %v3616 = vpop.f32.mrb[0].mxu0
      %v3617 = vpop.f32.mrb[0].mxu0
      %v3618 = vadd.f32 0.0, %v3617
      %v3619 = vpop.f32.mrb[0].mxu0
      %3620 = vmatprep.mubr.bf16.mxu0 0
      %3621 = vmatmul.mubr.bf16.gmra.mrb[0].mxu0 %v3501
      %v3622 = vpop.f32.mrb[0].mxu0
      %v3623 = vadd.f32 0.0, %v3622
      %v3624 = vpop.f32.mrb[0].mxu0
      %v3625 = vpop.f32.mrb[0].mxu0
      %v3626 = vadd.f32 0.0, %v3625
      %v3627 = vpop.f32.mrb[0].mxu0
      %3628 = vmatprep.mubr.bf16.mxu0 0
      %3629 = vmatmul.mubr.bf16.gmra.mrb[0].mxu0 %v3502
      %v3630 = vpop.f32.mrb[0].mxu0
      %v3631 = vadd.f32 0.0, %v3630
      %v3632 = vpop.f32.mrb[0].mxu0
      %v3633 = vpop.f32.mrb[0].mxu0
      %v3634 = vadd.f32 0.0, %v3633
      %v3635 = vpop.f32.mrb[0].mxu0
      %3636 = vmatprep.mubr.bf16.mxu0 0
      %3637 = vmatmul.mubr.bf16.gmra.mrb[0].mxu0 %v3503
      %v3638 = vpop.f32.mrb[0].mxu0
      %v3639 = vadd.f32 0.0, %v3638
      %v3640 = vpop.f32.mrb[0].mxu0
      %v3641 = vpop.f32.mrb[0].mxu0
      %v3642 = vadd.f32 0.0, %v3641
      %v3643 = vpop.f32.mrb[0].mxu0
      %3644 = vmatprep.mubr.bf16.mxu0 0
      %3645 = vmatmul.mubr.bf16.gmra.mrb[0].mxu0 %v3504
      %v3646 = vpop.f32.mrb[0].mxu0
      %v3647 = vadd.f32 0.0, %v3646
      %v3648 = vpop.f32.mrb[0].mxu0
      %v3649 = vpop.f32.mrb[0].mxu0
      %v3650 = vadd.f32 0.0, %v3649
      %v3651 = vpop.f32.mrb[0].mxu0
      %3652 = vmatprep.mubr.bf16.mxu0 0
      %3653 = vmatmul.mubr.bf16.gmra.mrb[0].mxu0 %v3505
      %v3654 = vpop.f32.mrb[0].mxu0
      %v3655 = vadd.f32 0.0, %v3654
      %v3656 = vpop.f32.mrb[0].mxu0
      %v3657 = vpop.f32.mrb[0].mxu0
      %v3658 = vadd.f32 0.0, %v3657
      %v3659 = vpop.f32.mrb[0].mxu0
      %3660 = vmatprep.mubr.bf16.mxu0 0
      %3661 = vmatmul.mubr.bf16.gmra.mrb[0].mxu0 %v3506
      %v3662 = vpop.f32.mrb[0].mxu0
      %v3663 = vadd.f32 0.0, %v3662
      %v3664 = vpop.f32.mrb[0].mxu0
      %v3665 = vpop.f32.mrb[0].mxu0
      %v3666 = vadd.f32 0.0, %v3665
      %v3667 = vpop.f32.mrb[0].mxu0
      %3668 = vmatprep.mubr.bf16.mxu0 0
      %3669 = vmatmul.mubr.bf16.gmra.mrb[0].mxu0 %v3507
      %v3670 = vpop.f32.mrb[0].mxu0
      %v3671 = vadd.f32 0.0, %v3670
      %v3672 = vpop.f32.mrb[0].mxu0
      %v3673 = vpop.f32.mrb[0].mxu0
      %v3674 = vadd.f32 0.0, %v3673
      %v3675 = vpop.f32.mrb[0].mxu0
      %3676 = vmatprep.mubr.bf16.mxu0 0
      %3677 = vmatmul.mubr.bf16.gmra.mrb[0].mxu0 %v3508
      %v3678 = vpop.f32.mrb[0].mxu0
      %v3679 = vadd.f32 0.0, %v3678
      %v3680 = vpop.f32.mrb[0].mxu0
      %v3681 = vpop.f32.mrb[0].mxu0
      %v3682 = vadd.f32 0.0, %v3681
      %v3683 = vpop.f32.mrb[0].mxu0
      %3684 = vmatprep.mubr.bf16.mxu0 0
      %3685 = vmatmul.mubr.bf16.gmra.mrb[0].mxu0 %v3509
      %v3686 = vpop.f32.mrb[0].mxu0
      %v3687 = vadd.f32 0.0, %v3686
      %v3688 = vpop.f32.mrb[0].mxu0
      %v3689 = vpop.f32.mrb[0].mxu0
      %v3690 = vadd.f32 0.0, %v3689
      %v3691 = vpop.f32.mrb[0].mxu0
      %3692 = vmatprep.mubr.bf16.mxu0 0
      %3693 = vmatmul.mubr.bf16.gmra.mrb[0].mxu0 %v3510
      %v3694 = vpop.f32.mrb[0].mxu0
      %v3695 = vadd.f32 0.0, %v3694
      %v3696 = vpop.f32.mrb[0].mxu0
      %v3697 = vpop.f32.mrb[0].mxu0
      %v3698 = vadd.f32 0.0, %v3697
      %v3699 = vpop.f32.mrb[0].mxu0
      %3700 = vmatprep.mubr.bf16.mxu0 0
      %3701 = vmatmul.mubr.bf16.gmra.mrb[0].mxu0 %v3511
      %v3702 = vpop.f32.mrb[0].mxu0
      %v3703 = vadd.f32 0.0, %v3702
      %v3704 = vpop.f32.mrb[0].mxu0
      %v3705 = vpop.f32.mrb[0].mxu0
      %v3706 = vadd.f32 0.0, %v3705
      %v3707 = vpop.f32.mrb[0].mxu0
      %3708 = vmatprep.mubr.bf16.mxu0 0
      %3709 = vmatmul.mubr.bf16.gmra.mrb[0].mxu0 %v3512
      %v3710 = vpop.f32.mrb[0].mxu0
      %v3711 = vadd.f32 0.0, %v3710
      %v3712 = vpop.f32.mrb[0].mxu0
      %v3713 = vpop.f32.mrb[0].mxu0
      %v3714 = vadd.f32 0.0, %v3713
      %v3715 = vpop.f32.mrb[0].mxu0
      %3716 = vmatprep.mubr.bf16.mxu0 0
      %3717 = vmatmul.mubr.bf16.gmra.mrb[0].mxu0 %v3513
      %v3718 = vpop.f32.mrb[0].mxu0
      %v3719 = vadd.f32 0.0, %v3718
      %v3720 = vpop.f32.mrb[0].mxu0
      %v3721 = vpop.f32.mrb[0].mxu0
      %v3722 = vadd.f32 0.0, %v3721
      %v3723 = vpop.f32.mrb[0].mxu0
      %3724 = vmatprep.mubr.bf16.mxu0 0
      %3725 = vmatmul.mubr.bf16.gmra.mrb[0].mxu0 %v3514
      %v3726 = vpop.f32.mrb[0].mxu0
      %v3727 = vadd.f32 0.0, %v3726
      %v3728 = vpop.f32.mrb[0].mxu0
      %v3729 = vpop.f32.mrb[0].mxu0
      %v3730 = vadd.f32 0.0, %v3729
      %v3731 = vpop.f32.mrb[0].mxu0
      %3732 = vmatprep.mubr.bf16.mxu0 0
      %3733 = vmatmul.mubr.bf16.gmra.mrb[0].mxu0 %v3515
      %v3734 = vpop.f32.mrb[0].mxu0
      %v3735 = vadd.f32 0.0, %v3734
      %v3736 = vpop.f32.mrb[0].mxu0
      %v3737 = vpop.f32.mrb[0].mxu0
      %v3738 = vadd.f32 0.0, %v3737
      %v3739 = vpop.f32.mrb[0].mxu0
      %3740 = vdwg.mxu0
      %v3741 = vadd.f32 %v3354, %v3615
      %v3742 = vadd.f32 %v3355, %v3618
      %v3743 = vadd.f32 %v3356, %v3623
      %v3744 = vadd.f32 %v3357, %v3626
      %v3745 = vadd.f32 %v3358, %v3631
      %v3746 = vadd.f32 %v3359, %v3634
      %v3747 = vadd.f32 %v3360, %v3639
      %v3748 = vadd.f32 %v3361, %v3642
      %v3749 = vadd.f32 %v3362, %v3647
      %v3750 = vadd.f32 %v3363, %v3650
      %v3751 = vadd.f32 %v3364, %v3655
      %v3752 = vadd.f32 %v3365, %v3658
      %v3753 = vadd.f32 %v3366, %v3663
      %v3754 = vadd.f32 %v3367, %v3666
      %v3755 = vadd.f32 %v3368, %v3671
      %v3756 = vadd.f32 %v3369, %v3674
      %v3757 = vadd.f32 %v3370, %v3679
      %v3758 = vadd.f32 %v3371, %v3682
      %v3759 = vadd.f32 %v3372, %v3687
      %v3760 = vadd.f32 %v3373, %v3690
      %v3761 = vadd.f32 %v3374, %v3695
      %v3762 = vadd.f32 %v3375, %v3698
      %v3763 = vadd.f32 %v3376, %v3703
      %v3764 = vadd.f32 %v3377, %v3706
      %v3765 = vadd.f32 %v3378, %v3711
      %v3766 = vadd.f32 %v3379, %v3714
      %v3767 = vadd.f32 %v3380, %v3719
      %v3768 = vadd.f32 %v3381, %v3722
      %v3769 = vadd.f32 %v3382, %v3727
      %v3770 = vadd.f32 %v3383, %v3730
      %v3771 = vadd.f32 %v3384, %v3735
      %v3772 = vadd.f32 %v3385, %v3738
      %v3773 = vld [vmem:[%s3386] sm:$0xf]
      %v3774 = vld [vmem:[%s3386 + $0x4] sm:$0xf]
      %v3775 = vld [vmem:[%s3386 + $0x8] sm:$0x1]
      %v3776 = vld [vmem:[%s3386 + $0xc] sm:$0xf]
      %v3777 = vld [vmem:[%s3386 + $0x10] sm:$0xf]
      %v3778 = vld [vmem:[%s3386 + $0x14] sm:$0x1]
      %v3779 = vld [vmem:[%s3386 + $0x18] sm:$0xf]
      %v3780 = vld [vmem:[%s3386 + $0x1c] sm:$0xf]
      %v3781 = vld [vmem:[%s3386 + $0x20] sm:$0x1]
      %v3782 = vld [vmem:[%s3386 + $0x24] sm:$0xf]
      %v3783 = vld [vmem:[%s3386 + $0x28] sm:$0xf]
      %v3784 = vld [vmem:[%s3386 + $0x2c] sm:$0x1]
      %v3785 = vld [vmem:[%s3386 + $0x30] sm:$0xf]
      %v3786 = vld [vmem:[%s3386 + $0x34] sm:$0xf]
      %v3787 = vld [vmem:[%s3386 + $0x38] sm:$0x1]
      %v3788 = vld [vmem:[%s3386 + $0x3c] sm:$0xf]
      %v3789 = vld [vmem:[%s3386 + $0x40] sm:$0xf]
      %v3790 = vld [vmem:[%s3386 + $0x44] sm:$0x1]
      %v3791 = vld [vmem:[%s3386 + $0x48] sm:$0xf]
      %v3792 = vld [vmem:[%s3386 + $0x4c] sm:$0xf]
      %v3793 = vld [vmem:[%s3386 + $0x50] sm:$0x1]
      %v3794 = vld [vmem:[%s3386 + $0x54] sm:$0xf]
      %v3795 = vld [vmem:[%s3386 + $0x58] sm:$0xf]
      %v3796 = vld [vmem:[%s3386 + $0x5c] sm:$0x1]
      %v3797 = vld [vmem:[%s3386 + $0x60] sm:$0xf]
      %v3798 = vld [vmem:[%s3386 + $0x64] sm:$0xf]
      %v3799 = vld [vmem:[%s3386 + $0x68] sm:$0x1]
      %v3800 = vld [vmem:[%s3386 + $0x6c] sm:$0xf]
      %v3801 = vld [vmem:[%s3386 + $0x70] sm:$0xf]
      %v3802 = vld [vmem:[%s3386 + $0x74] sm:$0x1]
      %v3803 = vld [vmem:[%s3386 + $0x78] sm:$0xf]
      %v3804 = vld [vmem:[%s3386 + $0x7c] sm:$0xf]
      %v3805 = vld [vmem:[%s3386 + $0x80] sm:$0x1]
      %v3806 = vld [vmem:[%s3386 + $0x84] sm:$0xf]
      %v3807 = vld [vmem:[%s3386 + $0x88] sm:$0xf]
      %v3808 = vld [vmem:[%s3386 + $0x8c] sm:$0x1]
      %v3809 = vld [vmem:[%s3386 + $0x90] sm:$0xf]
      %v3810 = vld [vmem:[%s3386 + $0x94] sm:$0xf]
      %v3811 = vld [vmem:[%s3386 + $0x98] sm:$0x1]
      %v3812 = vld [vmem:[%s3386 + $0x9c] sm:$0xf]
      %v3813 = vld [vmem:[%s3386 + $0xa0] sm:$0xf]
      %v3814 = vld [vmem:[%s3386 + $0xa4] sm:$0x1]
      %v3815 = vld [vmem:[%s3386 + $0xa8] sm:$0xf]
      %v3816 = vld [vmem:[%s3386 + $0xac] sm:$0xf]
      %v3817 = vld [vmem:[%s3386 + $0xb0] sm:$0x1]
      %v3818 = vld [vmem:[%s3386 + $0xb4] sm:$0xf]
      %v3819 = vld [vmem:[%s3386 + $0xb8] sm:$0xf]
      %v3820 = vld [vmem:[%s3386 + $0xbc] sm:$0x1]
      %v3822 = vshrl.u32 %v3773, 16
      %v3824 = vrot.slane %v3822, 4
      %v3825 = vshll.u32 %v3773, 16
      %v3827 = vrot.slane %v3825, 5
      %v3828 = vor.u32 %v3824, %v3827
      %v3829 = vrot.slane %v3828, 4
      %v3831 = vshll.u32 %v3774, 16
      %v3833 = vrot.slane %v3831, 5
      %v3834 = vsel %vm282, %v3829, %v3833
      %v3835 = vshrl.u32 %v3774, 16
      %v3837 = vrot.slane %v3835, 4
      %v3838 = vor.u32 %v3837, %v3833
      %v3839 = vrot.slane %v3838, 4
      %v3841 = vshll.u32 %v3775, 16
      %v3843 = vrot.slane %v3841, 5
      %v3844 = vsel %vm282, %v3839, %v3843
      %v3846 = vshrl.u32 %v3776, 16
      %v3848 = vrot.slane %v3846, 4
      %v3849 = vshll.u32 %v3776, 16
      %v3851 = vrot.slane %v3849, 5
      %v3852 = vor.u32 %v3848, %v3851
      %v3853 = vrot.slane %v3852, 4
      %v3855 = vshll.u32 %v3777, 16
      %v3857 = vrot.slane %v3855, 5
      %v3858 = vsel %vm282, %v3853, %v3857
      %v3859 = vshrl.u32 %v3777, 16
      %v3861 = vrot.slane %v3859, 4
      %v3862 = vor.u32 %v3861, %v3857
      %v3863 = vrot.slane %v3862, 4
      %v3865 = vshll.u32 %v3778, 16
      %v3867 = vrot.slane %v3865, 5
      %v3868 = vsel %vm282, %v3863, %v3867
      %v3870 = vshrl.u32 %v3779, 16
      %v3872 = vrot.slane %v3870, 4
      %v3873 = vshll.u32 %v3779, 16
      %v3875 = vrot.slane %v3873, 5
      %v3876 = vor.u32 %v3872, %v3875
      %v3877 = vrot.slane %v3876, 4
      %v3879 = vshll.u32 %v3780, 16
      %v3881 = vrot.slane %v3879, 5
      %v3882 = vsel %vm282, %v3877, %v3881
      %v3883 = vshrl.u32 %v3780, 16
      %v3885 = vrot.slane %v3883, 4
      %v3886 = vor.u32 %v3885, %v3881
      %v3887 = vrot.slane %v3886, 4
      %v3889 = vshll.u32 %v3781, 16
      %v3891 = vrot.slane %v3889, 5
      %v3892 = vsel %vm282, %v3887, %v3891
      %v3894 = vshrl.u32 %v3782, 16
      %v3896 = vrot.slane %v3894, 4
      %v3897 = vshll.u32 %v3782, 16
      %v3899 = vrot.slane %v3897, 5
      %v3900 = vor.u32 %v3896, %v3899
      %v3901 = vrot.slane %v3900, 4
      %v3903 = vshll.u32 %v3783, 16
      %v3905 = vrot.slane %v3903, 5
      %v3906 = vsel %vm282, %v3901, %v3905
      %v3907 = vshrl.u32 %v3783, 16
      %v3909 = vrot.slane %v3907, 4
      %v3910 = vor.u32 %v3909, %v3905
      %v3911 = vrot.slane %v3910, 4
      %v3913 = vshll.u32 %v3784, 16
      %v3915 = vrot.slane %v3913, 5
      %v3916 = vsel %vm282, %v3911, %v3915
      %v3918 = vshrl.u32 %v3785, 16
      %v3920 = vrot.slane %v3918, 4
      %v3921 = vshll.u32 %v3785, 16
      %v3923 = vrot.slane %v3921, 5
      %v3924 = vor.u32 %v3920, %v3923
      %v3925 = vrot.slane %v3924, 4
      %v3927 = vshll.u32 %v3786, 16
      %v3929 = vrot.slane %v3927, 5
      %v3930 = vsel %vm282, %v3925, %v3929
      %v3931 = vshrl.u32 %v3786, 16
      %v3933 = vrot.slane %v3931, 4
      %v3934 = vor.u32 %v3933, %v3929
      %v3935 = vrot.slane %v3934, 4
      %v3937 = vshll.u32 %v3787, 16
      %v3939 = vrot.slane %v3937, 5
      %v3940 = vsel %vm282, %v3935, %v3939
      %v3942 = vshrl.u32 %v3788, 16
      %v3944 = vrot.slane %v3942, 4
      %v3945 = vshll.u32 %v3788, 16
      %v3947 = vrot.slane %v3945, 5
      %v3948 = vor.u32 %v3944, %v3947
      %v3949 = vrot.slane %v3948, 4
      %v3951 = vshll.u32 %v3789, 16
      %v3953 = vrot.slane %v3951, 5
      %v3954 = vsel %vm282, %v3949, %v3953
      %v3955 = vshrl.u32 %v3789, 16
      %v3957 = vrot.slane %v3955, 4
      %v3958 = vor.u32 %v3957, %v3953
      %v3959 = vrot.slane %v3958, 4
      %v3961 = vshll.u32 %v3790, 16
      %v3963 = vrot.slane %v3961, 5
      %v3964 = vsel %vm282, %v3959, %v3963
      %v3966 = vshrl.u32 %v3791, 16
      %v3968 = vrot.slane %v3966, 4
      %v3969 = vshll.u32 %v3791, 16
      %v3971 = vrot.slane %v3969, 5
      %v3972 = vor.u32 %v3968, %v3971
      %v3973 = vrot.slane %v3972, 4
      %v3975 = vshll.u32 %v3792, 16
      %v3977 = vrot.slane %v3975, 5
      %v3978 = vsel %vm282, %v3973, %v3977
      %v3979 = vshrl.u32 %v3792, 16
      %v3981 = vrot.slane %v3979, 4
      %v3982 = vor.u32 %v3981, %v3977
      %v3983 = vrot.slane %v3982, 4
      %v3985 = vshll.u32 %v3793, 16
      %v3987 = vrot.slane %v3985, 5
      %v3988 = vsel %vm282, %v3983, %v3987
      %v3990 = vshrl.u32 %v3794, 16
      %v3992 = vrot.slane %v3990, 4
      %v3993 = vshll.u32 %v3794, 16
      %v3995 = vrot.slane %v3993, 5
      %v3996 = vor.u32 %v3992, %v3995
      %v3997 = vrot.slane %v3996, 4
      %v3999 = vshll.u32 %v3795, 16
      %v4001 = vrot.slane %v3999, 5
      %v4002 = vsel %vm282, %v3997, %v4001
      %v4003 = vshrl.u32 %v3795, 16
      %v4005 = vrot.slane %v4003, 4
      %v4006 = vor.u32 %v4005, %v4001
      %v4007 = vrot.slane %v4006, 4
      %v4009 = vshll.u32 %v3796, 16
      %v4011 = vrot.slane %v4009, 5
      %v4012 = vsel %vm282, %v4007, %v4011
      %v4014 = vshrl.u32 %v3797, 16
      %v4016 = vrot.slane %v4014, 4
      %v4017 = vshll.u32 %v3797, 16
      %v4019 = vrot.slane %v4017, 5
      %v4020 = vor.u32 %v4016, %v4019
      %v4021 = vrot.slane %v4020, 4
      %v4023 = vshll.u32 %v3798, 16
      %v4025 = vrot.slane %v4023, 5
      %v4026 = vsel %vm282, %v4021, %v4025
      %v4027 = vshrl.u32 %v3798, 16
      %v4029 = vrot.slane %v4027, 4
      %v4030 = vor.u32 %v4029, %v4025
      %v4031 = vrot.slane %v4030, 4
      %v4033 = vshll.u32 %v3799, 16
      %v4035 = vrot.slane %v4033, 5
      %v4036 = vsel %vm282, %v4031, %v4035
      %v4038 = vshrl.u32 %v3800, 16
      %v4040 = vrot.slane %v4038, 4
      %v4041 = vshll.u32 %v3800, 16
      %v4043 = vrot.slane %v4041, 5
      %v4044 = vor.u32 %v4040, %v4043
      %v4045 = vrot.slane %v4044, 4
      %v4047 = vshll.u32 %v3801, 16
      %v4049 = vrot.slane %v4047, 5
      %v4050 = vsel %vm282, %v4045, %v4049
      %v4051 = vshrl.u32 %v3801, 16
      %v4053 = vrot.slane %v4051, 4
      %v4054 = vor.u32 %v4053, %v4049
      %v4055 = vrot.slane %v4054, 4
      %v4057 = vshll.u32 %v3802, 16
      %v4059 = vrot.slane %v4057, 5
      %v4060 = vsel %vm282, %v4055, %v4059
      %v4062 = vshrl.u32 %v3803, 16
      %v4064 = vrot.slane %v4062, 4
      %v4065 = vshll.u32 %v3803, 16
      %v4067 = vrot.slane %v4065, 5
      %v4068 = vor.u32 %v4064, %v4067
      %v4069 = vrot.slane %v4068, 4
      %v4071 = vshll.u32 %v3804, 16
      %v4073 = vrot.slane %v4071, 5
      %v4074 = vsel %vm282, %v4069, %v4073
      %v4075 = vshrl.u32 %v3804, 16
      %v4077 = vrot.slane %v4075, 4
      %v4078 = vor.u32 %v4077, %v4073
      %v4079 = vrot.slane %v4078, 4
      %v4081 = vshll.u32 %v3805, 16
      %v4083 = vrot.slane %v4081, 5
      %v4084 = vsel %vm282, %v4079, %v4083
      %v4086 = vshrl.u32 %v3806, 16
      %v4088 = vrot.slane %v4086, 4
      %v4089 = vshll.u32 %v3806, 16
      %v4091 = vrot.slane %v4089, 5
      %v4092 = vor.u32 %v4088, %v4091
      %v4093 = vrot.slane %v4092, 4
      %v4095 = vshll.u32 %v3807, 16
      %v4097 = vrot.slane %v4095, 5
      %v4098 = vsel %vm282, %v4093, %v4097
      %v4099 = vshrl.u32 %v3807, 16
      %v4101 = vrot.slane %v4099, 4
      %v4102 = vor.u32 %v4101, %v4097
      %v4103 = vrot.slane %v4102, 4
      %v4105 = vshll.u32 %v3808, 16
      %v4107 = vrot.slane %v4105, 5
      %v4108 = vsel %vm282, %v4103, %v4107
      %v4110 = vshrl.u32 %v3809, 16
      %v4112 = vrot.slane %v4110, 4
      %v4113 = vshll.u32 %v3809, 16
      %v4115 = vrot.slane %v4113, 5
      %v4116 = vor.u32 %v4112, %v4115
      %v4117 = vrot.slane %v4116, 4
      %v4119 = vshll.u32 %v3810, 16
      %v4121 = vrot.slane %v4119, 5
      %v4122 = vsel %vm282, %v4117, %v4121
      %v4123 = vshrl.u32 %v3810, 16
      %v4125 = vrot.slane %v4123, 4
      %v4126 = vor.u32 %v4125, %v4121
      %v4127 = vrot.slane %v4126, 4
      %v4129 = vshll.u32 %v3811, 16
      %v4131 = vrot.slane %v4129, 5
      %v4132 = vsel %vm282, %v4127, %v4131
      %v4134 = vshrl.u32 %v3812, 16
      %v4136 = vrot.slane %v4134, 4
      %v4137 = vshll.u32 %v3812, 16
      %v4139 = vrot.slane %v4137, 5
      %v4140 = vor.u32 %v4136, %v4139
      %v4141 = vrot.slane %v4140, 4
      %v4143 = vshll.u32 %v3813, 16
      %v4145 = vrot.slane %v4143, 5
      %v4146 = vsel %vm282, %v4141, %v4145
      %v4147 = vshrl.u32 %v3813, 16
      %v4149 = vrot.slane %v4147, 4
      %v4150 = vor.u32 %v4149, %v4145
      %v4151 = vrot.slane %v4150, 4
      %v4153 = vshll.u32 %v3814, 16
      %v4155 = vrot.slane %v4153, 5
      %v4156 = vsel %vm282, %v4151, %v4155
      %v4158 = vshrl.u32 %v3815, 16
      %v4160 = vrot.slane %v4158, 4
      %v4161 = vshll.u32 %v3815, 16
      %v4163 = vrot.slane %v4161, 5
      %v4164 = vor.u32 %v4160, %v4163
      %v4165 = vrot.slane %v4164, 4
      %v4167 = vshll.u32 %v3816, 16
      %v4169 = vrot.slane %v4167, 5
      %v4170 = vsel %vm282, %v4165, %v4169
      %v4171 = vshrl.u32 %v3816, 16
      %v4173 = vrot.slane %v4171, 4
      %v4174 = vor.u32 %v4173, %v4169
      %v4175 = vrot.slane %v4174, 4
      %v4177 = vshll.u32 %v3817, 16
      %v4179 = vrot.slane %v4177, 5
      %v4180 = vsel %vm282, %v4175, %v4179
      %v4182 = vshrl.u32 %v3818, 16
      %v4184 = vrot.slane %v4182, 4
      %v4185 = vshll.u32 %v3818, 16
      %v4187 = vrot.slane %v4185, 5
      %v4188 = vor.u32 %v4184, %v4187
      %v4189 = vrot.slane %v4188, 4
      %v4191 = vshll.u32 %v3819, 16
      %v4193 = vrot.slane %v4191, 5
      %v4194 = vsel %vm282, %v4189, %v4193
      %v4195 = vshrl.u32 %v3819, 16
      %v4197 = vrot.slane %v4195, 4
      %v4198 = vor.u32 %v4197, %v4193
      %v4199 = vrot.slane %v4198, 4
      %v4201 = vshll.u32 %v3820, 16
      %v4203 = vrot.slane %v4201, 5
      %v4204 = vsel %vm282, %v4199, %v4203
      %s4205 = scalar_lea.vmem %s1, 448
      %v4206 = vld [vmem:[%s4205] sm:$0xf]
      %v4207 = vld [vmem:[%s4205 + $0x4] sm:$0xf]
      %v4208 = vld [vmem:[%s4205 + $0x8] sm:$0xf]
      %v4209 = vld [vmem:[%s4205 + $0xc] sm:$0xf]
      %v4210 = vld [vmem:[%s4205 + $0x10] sm:$0xf]
      %v4211 = vld [vmem:[%s4205 + $0x14] sm:$0xf]
      %v4212 = vld [vmem:[%s4205 + $0x18] sm:$0xf]
      %v4213 = vld [vmem:[%s4205 + $0x1c] sm:$0xf]
      %v4214 = vld [vmem:[%s4205 + $0x20] sm:$0xf]
      %v4215 = vld [vmem:[%s4205 + $0x24] sm:$0xf]
      %v4216 = vld [vmem:[%s4205 + $0x28] sm:$0xf]
      %v4217 = vld [vmem:[%s4205 + $0x2c] sm:$0xf]
      %v4218 = vld [vmem:[%s4205 + $0x30] sm:$0xf]
      %v4219 = vld [vmem:[%s4205 + $0x34] sm:$0xf]
      %v4220 = vld [vmem:[%s4205 + $0x38] sm:$0xf]
      %v4221 = vld [vmem:[%s4205 + $0x3c] sm:$0xf]
      %v4222 = vunpack.c.l.b16 %v3834
      %v4223 = vunpack.c.l.b16 %v3844
      %v4224 = vunpack.c.l.b16 %v3858
      %v4225 = vunpack.c.l.b16 %v3868
      %v4226 = vunpack.c.l.b16 %v3882
      %v4227 = vunpack.c.l.b16 %v3892
      %v4228 = vunpack.c.l.b16 %v3906
      %v4229 = vunpack.c.l.b16 %v3916
      %v4230 = vunpack.c.l.b16 %v3930
      %v4231 = vunpack.c.l.b16 %v3940
      %v4232 = vunpack.c.l.b16 %v3954
      %v4233 = vunpack.c.l.b16 %v3964
      %v4234 = vunpack.c.l.b16 %v3978
      %v4235 = vunpack.c.l.b16 %v3988
      %v4236 = vunpack.c.l.b16 %v4002
      %v4237 = vunpack.c.l.b16 %v4012
      %v4238 = vunpack.c.l.b16 %v4026
      %v4239 = vunpack.c.l.b16 %v4036
      %v4240 = vunpack.c.l.b16 %v4050
      %v4241 = vunpack.c.l.b16 %v4060
      %v4242 = vunpack.c.l.b16 %v4074
      %v4243 = vunpack.c.l.b16 %v4084
      %v4244 = vunpack.c.l.b16 %v4098
      %v4245 = vunpack.c.l.b16 %v4108
      %v4246 = vunpack.c.l.b16 %v4122
      %v4247 = vunpack.c.l.b16 %v4132
      %v4248 = vunpack.c.l.b16 %v4146
      %v4249 = vunpack.c.l.b16 %v4156
      %v4250 = vunpack.c.l.b16 %v4170
      %v4251 = vunpack.c.l.b16 %v4180
      %v4252 = vunpack.c.l.b16 %v4194
      %v4253 = vunpack.c.l.b16 %v4204
      %v4254 = vpack.c.b16 %v4223, %v4222
      %v4255 = vpack.c.b16 %v4225, %v4224
      %v4256 = vpack.c.b16 %v4227, %v4226
      %v4257 = vpack.c.b16 %v4229, %v4228
      %v4258 = vpack.c.b16 %v4231, %v4230
      %v4259 = vpack.c.b16 %v4233, %v4232
      %v4260 = vpack.c.b16 %v4235, %v4234
      %v4261 = vpack.c.b16 %v4237, %v4236
      %v4262 = vpack.c.b16 %v4239, %v4238
      %v4263 = vpack.c.b16 %v4241, %v4240
      %v4264 = vpack.c.b16 %v4243, %v4242
      %v4265 = vpack.c.b16 %v4245, %v4244
      %v4266 = vpack.c.b16 %v4247, %v4246
      %v4267 = vpack.c.b16 %v4249, %v4248
      %v4268 = vpack.c.b16 %v4251, %v4250
      %v4269 = vpack.c.b16 %v4253, %v4252
      %v4302 = vunpack.c.l.b16 %v4206
      %v4303 = vunpack.c.l.b16 %v4207
      %v4304 = vunpack.c.l.b16 %v4208
      %v4305 = vunpack.c.l.b16 %v4209
      %v4306 = vunpack.c.l.b16 %v4210
      %v4307 = vunpack.c.l.b16 %v4211
      %v4308 = vunpack.c.l.b16 %v4212
      %v4309 = vunpack.c.l.b16 %v4213
      %v4310 = vunpack.c.l.b16 %v4214
      %v4311 = vunpack.c.l.b16 %v4215
      %v4312 = vunpack.c.l.b16 %v4216
      %v4313 = vunpack.c.l.b16 %v4217
      %v4314 = vunpack.c.l.b16 %v4218
      %v4315 = vunpack.c.l.b16 %v4219
      %v4316 = vunpack.c.l.b16 %v4220
      %v4317 = vunpack.c.l.b16 %v4221
      %v4318 = vpack.c.b16 %v4303, %v4302
      %v4319 = vpack.c.b16 %v4305, %v4304
      %v4320 = vpack.c.b16 %v4307, %v4306
      %v4321 = vpack.c.b16 %v4309, %v4308
      %v4322 = vpack.c.b16 %v4311, %v4310
      %v4323 = vpack.c.b16 %v4313, %v4312
      %v4324 = vpack.c.b16 %v4315, %v4314
      %v4325 = vpack.c.b16 %v4317, %v4316
      %4334 = vmatprep.subr.bf16.mxu0 0
      %4335 = vmatpush1.bf16.msra.mxu0 %v4318
      %4336 = vmatprep.subr.bf16.mxu0 0
      %4337 = vmatpush1.bf16.msra.mxu0 %v4319
      %4338 = vmatprep.subr.bf16.mxu0 0
      %4339 = vmatpush1.bf16.msra.mxu0 %v4320
      %4340 = vmatprep.subr.bf16.mxu0 0
      %4341 = vmatpush1.bf16.msra.mxu0 %v4321
      %4342 = vmatprep.subr.bf16.mxu0 0
      %4343 = vmatpush1.bf16.msra.mxu0 %v4322
      %4344 = vmatprep.subr.bf16.mxu0 0
      %4345 = vmatpush1.bf16.msra.mxu0 %v4323
      %4346 = vmatprep.subr.bf16.mxu0 0
      %4347 = vmatpush1.bf16.msra.mxu0 %v4324
      %4348 = vmatprep.subr.bf16.mxu0 0
      %4349 = vmatpush1.bf16.msra.mxu0 %v4325
      %4350 = vmatprep.subr.bf16.mxu0 0
      %4351 = vmatpush1.bf16.msra.mxu0 0
      %4352 = vmatprep.subr.bf16.mxu0 0
      %4353 = vmatpush1.bf16.msra.mxu0 0
      %4354 = vmatprep.subr.bf16.mxu0 0
      %4355 = vmatpush1.bf16.msra.mxu0 0
      %4356 = vmatprep.subr.bf16.mxu0 0
      %4357 = vmatpush1.bf16.msra.mxu0 0
      %4358 = vmatprep.subr.bf16.mxu0 0
      %4359 = vmatpush1.bf16.msra.mxu0 0
      %4360 = vmatprep.subr.bf16.mxu0 0
      %4361 = vmatpush1.bf16.msra.mxu0 0
      %4362 = vmatprep.subr.bf16.mxu0 0
      %4363 = vmatpush1.bf16.msra.mxu0 0
      %4364 = vmatprep.subr.bf16.mxu0 0
      %4365 = vmatpush1.bf16.msra.mxu0 0
      %4366 = vmatprep.mubr.bf16.mxu0 0
      %4367 = vmatmul.mubr.bf16.gmra.mrb[0].mxu0 %v4254
      %v4368 = vpop.f32.mrb[0].mxu0
      %v4369 = vadd.f32 0.0, %v4368
      %v4370 = vpop.f32.mrb[0].mxu0
      %v4371 = vpop.f32.mrb[0].mxu0
      %v4372 = vadd.f32 0.0, %v4371
      %v4373 = vpop.f32.mrb[0].mxu0
      %4374 = vmatprep.mubr.bf16.mxu0 0
      %4375 = vmatmul.mubr.bf16.gmra.mrb[0].mxu0 %v4255
      %v4376 = vpop.f32.mrb[0].mxu0
      %v4377 = vadd.f32 0.0, %v4376
      %v4378 = vpop.f32.mrb[0].mxu0
      %v4379 = vpop.f32.mrb[0].mxu0
      %v4380 = vadd.f32 0.0, %v4379
      %v4381 = vpop.f32.mrb[0].mxu0
      %4382 = vmatprep.mubr.bf16.mxu0 0
      %4383 = vmatmul.mubr.bf16.gmra.mrb[0].mxu0 %v4256
      %v4384 = vpop.f32.mrb[0].mxu0
      %v4385 = vadd.f32 0.0, %v4384
      %v4386 = vpop.f32.mrb[0].mxu0
      %v4387 = vpop.f32.mrb[0].mxu0
      %v4388 = vadd.f32 0.0, %v4387
      %v4389 = vpop.f32.mrb[0].mxu0
      %4390 = vmatprep.mubr.bf16.mxu0 0
      %4391 = vmatmul.mubr.bf16.gmra.mrb[0].mxu0 %v4257
      %v4392 = vpop.f32.mrb[0].mxu0
      %v4393 = vadd.f32 0.0, %v4392
      %v4394 = vpop.f32.mrb[0].mxu0
      %v4395 = vpop.f32.mrb[0].mxu0
      %v4396 = vadd.f32 0.0, %v4395
      %v4397 = vpop.f32.mrb[0].mxu0
      %4398 = vmatprep.mubr.bf16.mxu0 0
      %4399 = vmatmul.mubr.bf16.gmra.mrb[0].mxu0 %v4258
      %v4400 = vpop.f32.mrb[0].mxu0
      %v4401 = vadd.f32 0.0, %v4400
      %v4402 = vpop.f32.mrb[0].mxu0
      %v4403 = vpop.f32.mrb[0].mxu0
      %v4404 = vadd.f32 0.0, %v4403
      %v4405 = vpop.f32.mrb[0].mxu0
      %4406 = vmatprep.mubr.bf16.mxu0 0
      %4407 = vmatmul.mubr.bf16.gmra.mrb[0].mxu0 %v4259
      %v4408 = vpop.f32.mrb[0].mxu0
      %v4409 = vadd.f32 0.0, %v4408
      %v4410 = vpop.f32.mrb[0].mxu0
      %v4411 = vpop.f32.mrb[0].mxu0
      %v4412 = vadd.f32 0.0, %v4411
      %v4413 = vpop.f32.mrb[0].mxu0
      %4414 = vmatprep.mubr.bf16.mxu0 0
      %4415 = vmatmul.mubr.bf16.gmra.mrb[0].mxu0 %v4260
      %v4416 = vpop.f32.mrb[0].mxu0
      %v4417 = vadd.f32 0.0, %v4416
      %v4418 = vpop.f32.mrb[0].mxu0
      %v4419 = vpop.f32.mrb[0].mxu0
      %v4420 = vadd.f32 0.0, %v4419
      %v4421 = vpop.f32.mrb[0].mxu0
      %4422 = vmatprep.mubr.bf16.mxu0 0
      %4423 = vmatmul.mubr.bf16.gmra.mrb[0].mxu0 %v4261
      %v4424 = vpop.f32.mrb[0].mxu0
      %v4425 = vadd.f32 0.0, %v4424
      %v4426 = vpop.f32.mrb[0].mxu0
      %v4427 = vpop.f32.mrb[0].mxu0
      %v4428 = vadd.f32 0.0, %v4427
      %v4429 = vpop.f32.mrb[0].mxu0
      %4430 = vmatprep.mubr.bf16.mxu0 0
      %4431 = vmatmul.mubr.bf16.gmra.mrb[0].mxu0 %v4262
      %v4432 = vpop.f32.mrb[0].mxu0
      %v4433 = vadd.f32 0.0, %v4432
      %v4434 = vpop.f32.mrb[0].mxu0
      %v4435 = vpop.f32.mrb[0].mxu0
      %v4436 = vadd.f32 0.0, %v4435
      %v4437 = vpop.f32.mrb[0].mxu0
      %4438 = vmatprep.mubr.bf16.mxu0 0
      %4439 = vmatmul.mubr.bf16.gmra.mrb[0].mxu0 %v4263
      %v4440 = vpop.f32.mrb[0].mxu0
      %v4441 = vadd.f32 0.0, %v4440
      %v4442 = vpop.f32.mrb[0].mxu0
      %v4443 = vpop.f32.mrb[0].mxu0
      %v4444 = vadd.f32 0.0, %v4443
      %v4445 = vpop.f32.mrb[0].mxu0
      %4446 = vmatprep.mubr.bf16.mxu0 0
      %4447 = vmatmul.mubr.bf16.gmra.mrb[0].mxu0 %v4264
      %v4448 = vpop.f32.mrb[0].mxu0
      %v4449 = vadd.f32 0.0, %v4448
      %v4450 = vpop.f32.mrb[0].mxu0
      %v4451 = vpop.f32.mrb[0].mxu0
      %v4452 = vadd.f32 0.0, %v4451
      %v4453 = vpop.f32.mrb[0].mxu0
      %4454 = vmatprep.mubr.bf16.mxu0 0
      %4455 = vmatmul.mubr.bf16.gmra.mrb[0].mxu0 %v4265
      %v4456 = vpop.f32.mrb[0].mxu0
      %v4457 = vadd.f32 0.0, %v4456
      %v4458 = vpop.f32.mrb[0].mxu0
      %v4459 = vpop.f32.mrb[0].mxu0
      %v4460 = vadd.f32 0.0, %v4459
      %v4461 = vpop.f32.mrb[0].mxu0
      %4462 = vmatprep.mubr.bf16.mxu0 0
      %4463 = vmatmul.mubr.bf16.gmra.mrb[0].mxu0 %v4266
      %v4464 = vpop.f32.mrb[0].mxu0
      %v4465 = vadd.f32 0.0, %v4464
      %v4466 = vpop.f32.mrb[0].mxu0
      %v4467 = vpop.f32.mrb[0].mxu0
      %v4468 = vadd.f32 0.0, %v4467
      %v4469 = vpop.f32.mrb[0].mxu0
      %4470 = vmatprep.mubr.bf16.mxu0 0
      %4471 = vmatmul.mubr.bf16.gmra.mrb[0].mxu0 %v4267
      %v4472 = vpop.f32.mrb[0].mxu0
      %v4473 = vadd.f32 0.0, %v4472
      %v4474 = vpop.f32.mrb[0].mxu0
      %v4475 = vpop.f32.mrb[0].mxu0
      %v4476 = vadd.f32 0.0, %v4475
      %v4477 = vpop.f32.mrb[0].mxu0
      %4478 = vmatprep.mubr.bf16.mxu0 0
      %4479 = vmatmul.mubr.bf16.gmra.mrb[0].mxu0 %v4268
      %v4480 = vpop.f32.mrb[0].mxu0
      %v4481 = vadd.f32 0.0, %v4480
      %v4482 = vpop.f32.mrb[0].mxu0
      %v4483 = vpop.f32.mrb[0].mxu0
      %v4484 = vadd.f32 0.0, %v4483
      %v4485 = vpop.f32.mrb[0].mxu0
      %4486 = vmatprep.mubr.bf16.mxu0 0
      %4487 = vmatmul.mubr.bf16.gmra.mrb[0].mxu0 %v4269
      %v4488 = vpop.f32.mrb[0].mxu0
      %v4489 = vadd.f32 0.0, %v4488
      %v4490 = vpop.f32.mrb[0].mxu0
      %v4491 = vpop.f32.mrb[0].mxu0
      %v4492 = vadd.f32 0.0, %v4491
      %v4493 = vpop.f32.mrb[0].mxu0
      %4494 = vdwg.mxu0
      %v4495 = vadd.f32 %v3741, %v4369
      %v4496 = vadd.f32 %v3742, %v4372
      %v4497 = vadd.f32 %v3743, %v4377
      %v4498 = vadd.f32 %v3744, %v4380
      %v4499 = vadd.f32 %v3745, %v4385
      %v4500 = vadd.f32 %v3746, %v4388
      %v4501 = vadd.f32 %v3747, %v4393
      %v4502 = vadd.f32 %v3748, %v4396
      %v4503 = vadd.f32 %v3749, %v4401
      %v4504 = vadd.f32 %v3750, %v4404
      %v4505 = vadd.f32 %v3751, %v4409
      %v4506 = vadd.f32 %v3752, %v4412
      %v4507 = vadd.f32 %v3753, %v4417
      %v4508 = vadd.f32 %v3754, %v4420
      %v4509 = vadd.f32 %v3755, %v4425
      %v4510 = vadd.f32 %v3756, %v4428
      %v4511 = vadd.f32 %v3757, %v4433
      %v4512 = vadd.f32 %v3758, %v4436
      %v4513 = vadd.f32 %v3759, %v4441
      %v4514 = vadd.f32 %v3760, %v4444
      %v4515 = vadd.f32 %v3761, %v4449
      %v4516 = vadd.f32 %v3762, %v4452
      %v4517 = vadd.f32 %v3763, %v4457
      %v4518 = vadd.f32 %v3764, %v4460
      %v4519 = vadd.f32 %v3765, %v4465
      %v4520 = vadd.f32 %v3766, %v4468
      %v4521 = vadd.f32 %v3767, %v4473
      %v4522 = vadd.f32 %v3768, %v4476
      %v4523 = vadd.f32 %v3769, %v4481
      %v4524 = vadd.f32 %v3770, %v4484
      %v4525 = vadd.f32 %v3771, %v4489
      %v4526 = vadd.f32 %v3772, %v4492
      %v4527 = vld [vmem:[%s3386] sm:$0xe]
      %v4528 = vld [vmem:[%s3386 + $0xc] sm:$0xe]
      %v4529 = vld [vmem:[%s3386 + $0x18] sm:$0xe]
      %v4530 = vld [vmem:[%s3386 + $0x24] sm:$0xe]
      %v4531 = vld [vmem:[%s3386 + $0x30] sm:$0xe]
      %v4532 = vld [vmem:[%s3386 + $0x3c] sm:$0xe]
      %v4533 = vld [vmem:[%s3386 + $0x48] sm:$0xe]
      %v4534 = vld [vmem:[%s3386 + $0x54] sm:$0xe]
      %v4535 = vld [vmem:[%s3386 + $0x60] sm:$0xe]
      %v4536 = vld [vmem:[%s3386 + $0x6c] sm:$0xe]
      %v4537 = vld [vmem:[%s3386 + $0x78] sm:$0xe]
      %v4538 = vld [vmem:[%s3386 + $0x84] sm:$0xe]
      %v4539 = vld [vmem:[%s3386 + $0x90] sm:$0xe]
      %v4540 = vld [vmem:[%s3386 + $0x9c] sm:$0xe]
      %v4541 = vld [vmem:[%s3386 + $0xa8] sm:$0xe]
      %v4542 = vld [vmem:[%s3386 + $0xb4] sm:$0xe]
      %v4591 = vrot.slane %v4527, 5
      %v4592 = vrot.slane %v4591, 4
      %v4593 = vrot.slane %v3774, 5
      %v4594 = vsel %vm1312, %v4592, %v4593
      %v4595 = vrot.slane %v4593, 4
      %v4596 = vrot.slane %v3775, 5
      %v4597 = vsel %vm1312, %v4595, %v4596
      %v4598 = vrot.slane %v4528, 5
      %v4599 = vrot.slane %v4598, 4
      %v4600 = vrot.slane %v3777, 5
      %v4601 = vsel %vm1312, %v4599, %v4600
      %v4602 = vrot.slane %v4600, 4
      %v4603 = vrot.slane %v3778, 5
      %v4604 = vsel %vm1312, %v4602, %v4603
      %v4605 = vrot.slane %v4529, 5
      %v4606 = vrot.slane %v4605, 4
      %v4607 = vrot.slane %v3780, 5
      %v4608 = vsel %vm1312, %v4606, %v4607
      %v4609 = vrot.slane %v4607, 4
      %v4610 = vrot.slane %v3781, 5
      %v4611 = vsel %vm1312, %v4609, %v4610
      %v4612 = vrot.slane %v4530, 5
      %v4613 = vrot.slane %v4612, 4
      %v4614 = vrot.slane %v3783, 5
      %v4615 = vsel %vm1312, %v4613, %v4614
      %v4616 = vrot.slane %v4614, 4
      %v4617 = vrot.slane %v3784, 5
      %v4618 = vsel %vm1312, %v4616, %v4617
      %v4619 = vrot.slane %v4531, 5
      %v4620 = vrot.slane %v4619, 4
      %v4621 = vrot.slane %v3786, 5
      %v4622 = vsel %vm1312, %v4620, %v4621
      %v4623 = vrot.slane %v4621, 4
      %v4624 = vrot.slane %v3787, 5
      %v4625 = vsel %vm1312, %v4623, %v4624
      %v4626 = vrot.slane %v4532, 5
      %v4627 = vrot.slane %v4626, 4
      %v4628 = vrot.slane %v3789, 5
      %v4629 = vsel %vm1312, %v4627, %v4628
      %v4630 = vrot.slane %v4628, 4
      %v4631 = vrot.slane %v3790, 5
      %v4632 = vsel %vm1312, %v4630, %v4631
      %v4633 = vrot.slane %v4533, 5
      %v4634 = vrot.slane %v4633, 4
      %v4635 = vrot.slane %v3792, 5
      %v4636 = vsel %vm1312, %v4634, %v4635
      %v4637 = vrot.slane %v4635, 4
      %v4638 = vrot.slane %v3793, 5
      %v4639 = vsel %vm1312, %v4637, %v4638
      %v4640 = vrot.slane %v4534, 5
      %v4641 = vrot.slane %v4640, 4
      %v4642 = vrot.slane %v3795, 5
      %v4643 = vsel %vm1312, %v4641, %v4642
      %v4644 = vrot.slane %v4642, 4
      %v4645 = vrot.slane %v3796, 5
      %v4646 = vsel %vm1312, %v4644, %v4645
      %v4647 = vrot.slane %v4535, 5
      %v4648 = vrot.slane %v4647, 4
      %v4649 = vrot.slane %v3798, 5
      %v4650 = vsel %vm1312, %v4648, %v4649
      %v4651 = vrot.slane %v4649, 4
      %v4652 = vrot.slane %v3799, 5
      %v4653 = vsel %vm1312, %v4651, %v4652
      %v4654 = vrot.slane %v4536, 5
      %v4655 = vrot.slane %v4654, 4
      %v4656 = vrot.slane %v3801, 5
      %v4657 = vsel %vm1312, %v4655, %v4656
      %v4658 = vrot.slane %v4656, 4
      %v4659 = vrot.slane %v3802, 5
      %v4660 = vsel %vm1312, %v4658, %v4659
      %v4661 = vrot.slane %v4537, 5
      %v4662 = vrot.slane %v4661, 4
      %v4663 = vrot.slane %v3804, 5
      %v4664 = vsel %vm1312, %v4662, %v4663
      %v4665 = vrot.slane %v4663, 4
      %v4666 = vrot.slane %v3805, 5
      %v4667 = vsel %vm1312, %v4665, %v4666
      %v4668 = vrot.slane %v4538, 5
      %v4669 = vrot.slane %v4668, 4
      %v4670 = vrot.slane %v3807, 5
      %v4671 = vsel %vm1312, %v4669, %v4670
      %v4672 = vrot.slane %v4670, 4
      %v4673 = vrot.slane %v3808, 5
      %v4674 = vsel %vm1312, %v4672, %v4673
      %v4675 = vrot.slane %v4539, 5
      %v4676 = vrot.slane %v4675, 4
      %v4677 = vrot.slane %v3810, 5
      %v4678 = vsel %vm1312, %v4676, %v4677
      %v4679 = vrot.slane %v4677, 4
      %v4680 = vrot.slane %v3811, 5
      %v4681 = vsel %vm1312, %v4679, %v4680
      %v4682 = vrot.slane %v4540, 5
      %v4683 = vrot.slane %v4682, 4
      %v4684 = vrot.slane %v3813, 5
      %v4685 = vsel %vm1312, %v4683, %v4684
      %v4686 = vrot.slane %v4684, 4
      %v4687 = vrot.slane %v3814, 5
      %v4688 = vsel %vm1312, %v4686, %v4687
      %v4689 = vrot.slane %v4541, 5
      %v4690 = vrot.slane %v4689, 4
      %v4691 = vrot.slane %v3816, 5
      %v4692 = vsel %vm1312, %v4690, %v4691
      %v4693 = vrot.slane %v4691, 4
      %v4694 = vrot.slane %v3817, 5
      %v4695 = vsel %vm1312, %v4693, %v4694
      %v4696 = vrot.slane %v4542, 5
      %v4697 = vrot.slane %v4696, 4
      %v4698 = vrot.slane %v3819, 5
      %v4699 = vsel %vm1312, %v4697, %v4698
      %v4700 = vrot.slane %v4698, 4
      %v4701 = vrot.slane %v3820, 5
      %v4702 = vsel %vm1312, %v4700, %v4701
      %s4703 = scalar_lea.vmem %s1, 512
      %v4704 = vld [vmem:[%s4703] sm:$0xf]
      %v4705 = vld [vmem:[%s4703 + $0x4] sm:$0xf]
      %v4706 = vld [vmem:[%s4703 + $0x8] sm:$0xf]
      %v4707 = vld [vmem:[%s4703 + $0xc] sm:$0xf]
      %v4708 = vld [vmem:[%s4703 + $0x10] sm:$0xf]
      %v4709 = vld [vmem:[%s4703 + $0x14] sm:$0xf]
      %v4710 = vld [vmem:[%s4703 + $0x18] sm:$0xf]
      %v4711 = vld [vmem:[%s4703 + $0x1c] sm:$0xf]
      %v4712 = vld [vmem:[%s4703 + $0x20] sm:$0xf]
      %v4713 = vld [vmem:[%s4703 + $0x24] sm:$0xf]
      %v4714 = vld [vmem:[%s4703 + $0x28] sm:$0xf]
      %v4715 = vld [vmem:[%s4703 + $0x2c] sm:$0xf]
      %v4716 = vld [vmem:[%s4703 + $0x30] sm:$0xf]
      %v4717 = vld [vmem:[%s4703 + $0x34] sm:$0xf]
      %v4718 = vld [vmem:[%s4703 + $0x38] sm:$0xf]
      %v4719 = vld [vmem:[%s4703 + $0x3c] sm:$0xf]
      %v4720 = vunpack.c.l.b16 %v4594
      %v4721 = vunpack.c.l.b16 %v4597
      %v4722 = vunpack.c.l.b16 %v4601
      %v4723 = vunpack.c.l.b16 %v4604
      %v4724 = vunpack.c.l.b16 %v4608
      %v4725 = vunpack.c.l.b16 %v4611
      %v4726 = vunpack.c.l.b16 %v4615
      %v4727 = vunpack.c.l.b16 %v4618
      %v4728 = vunpack.c.l.b16 %v4622
      %v4729 = vunpack.c.l.b16 %v4625
      %v4730 = vunpack.c.l.b16 %v4629
      %v4731 = vunpack.c.l.b16 %v4632
      %v4732 = vunpack.c.l.b16 %v4636
      %v4733 = vunpack.c.l.b16 %v4639
      %v4734 = vunpack.c.l.b16 %v4643
      %v4735 = vunpack.c.l.b16 %v4646
      %v4736 = vunpack.c.l.b16 %v4650
      %v4737 = vunpack.c.l.b16 %v4653
      %v4738 = vunpack.c.l.b16 %v4657
      %v4739 = vunpack.c.l.b16 %v4660
      %v4740 = vunpack.c.l.b16 %v4664
      %v4741 = vunpack.c.l.b16 %v4667
      %v4742 = vunpack.c.l.b16 %v4671
      %v4743 = vunpack.c.l.b16 %v4674
      %v4744 = vunpack.c.l.b16 %v4678
      %v4745 = vunpack.c.l.b16 %v4681
      %v4746 = vunpack.c.l.b16 %v4685
      %v4747 = vunpack.c.l.b16 %v4688
      %v4748 = vunpack.c.l.b16 %v4692
      %v4749 = vunpack.c.l.b16 %v4695
      %v4750 = vunpack.c.l.b16 %v4699
      %v4751 = vunpack.c.l.b16 %v4702
      %v4752 = vpack.c.b16 %v4721, %v4720
      %v4753 = vpack.c.b16 %v4723, %v4722
      %v4754 = vpack.c.b16 %v4725, %v4724
      %v4755 = vpack.c.b16 %v4727, %v4726
      %v4756 = vpack.c.b16 %v4729, %v4728
      %v4757 = vpack.c.b16 %v4731, %v4730
      %v4758 = vpack.c.b16 %v4733, %v4732
      %v4759 = vpack.c.b16 %v4735, %v4734
      %v4760 = vpack.c.b16 %v4737, %v4736
      %v4761 = vpack.c.b16 %v4739, %v4738
      %v4762 = vpack.c.b16 %v4741, %v4740
      %v4763 = vpack.c.b16 %v4743, %v4742
      %v4764 = vpack.c.b16 %v4745, %v4744
      %v4765 = vpack.c.b16 %v4747, %v4746
      %v4766 = vpack.c.b16 %v4749, %v4748
      %v4767 = vpack.c.b16 %v4751, %v4750
      %v4800 = vunpack.c.l.b16 %v4704
      %v4801 = vunpack.c.l.b16 %v4705
      %v4802 = vunpack.c.l.b16 %v4706
      %v4803 = vunpack.c.l.b16 %v4707
      %v4804 = vunpack.c.l.b16 %v4708
      %v4805 = vunpack.c.l.b16 %v4709
      %v4806 = vunpack.c.l.b16 %v4710
      %v4807 = vunpack.c.l.b16 %v4711
      %v4808 = vunpack.c.l.b16 %v4712
      %v4809 = vunpack.c.l.b16 %v4713
      %v4810 = vunpack.c.l.b16 %v4714
      %v4811 = vunpack.c.l.b16 %v4715
      %v4812 = vunpack.c.l.b16 %v4716
      %v4813 = vunpack.c.l.b16 %v4717
      %v4814 = vunpack.c.l.b16 %v4718
      %v4815 = vunpack.c.l.b16 %v4719
      %v4816 = vpack.c.b16 %v4801, %v4800
      %v4817 = vpack.c.b16 %v4803, %v4802
      %v4818 = vpack.c.b16 %v4805, %v4804
      %v4819 = vpack.c.b16 %v4807, %v4806
      %v4820 = vpack.c.b16 %v4809, %v4808
      %v4821 = vpack.c.b16 %v4811, %v4810
      %v4822 = vpack.c.b16 %v4813, %v4812
      %v4823 = vpack.c.b16 %v4815, %v4814
      %4832 = vmatprep.subr.bf16.mxu0 0
      %4833 = vmatpush1.bf16.msra.mxu0 %v4816
      %4834 = vmatprep.subr.bf16.mxu0 0
      %4835 = vmatpush1.bf16.msra.mxu0 %v4817
      %4836 = vmatprep.subr.bf16.mxu0 0
      %4837 = vmatpush1.bf16.msra.mxu0 %v4818
      %4838 = vmatprep.subr.bf16.mxu0 0
      %4839 = vmatpush1.bf16.msra.mxu0 %v4819
      %4840 = vmatprep.subr.bf16.mxu0 0
      %4841 = vmatpush1.bf16.msra.mxu0 %v4820
      %4842 = vmatprep.subr.bf16.mxu0 0
      %4843 = vmatpush1.bf16.msra.mxu0 %v4821
      %4844 = vmatprep.subr.bf16.mxu0 0
      %4845 = vmatpush1.bf16.msra.mxu0 %v4822
      %4846 = vmatprep.subr.bf16.mxu0 0
      %4847 = vmatpush1.bf16.msra.mxu0 %v4823
      %4848 = vmatprep.subr.bf16.mxu0 0
      %4849 = vmatpush1.bf16.msra.mxu0 0
      %4850 = vmatprep.subr.bf16.mxu0 0
      %4851 = vmatpush1.bf16.msra.mxu0 0
      %4852 = vmatprep.subr.bf16.mxu0 0
      %4853 = vmatpush1.bf16.msra.mxu0 0
      %4854 = vmatprep.subr.bf16.mxu0 0
      %4855 = vmatpush1.bf16.msra.mxu0 0
      %4856 = vmatprep.subr.bf16.mxu0 0
      %4857 = vmatpush1.bf16.msra.mxu0 0
      %4858 = vmatprep.subr.bf16.mxu0 0
      %4859 = vmatpush1.bf16.msra.mxu0 0
      %4860 = vmatprep.subr.bf16.mxu0 0
      %4861 = vmatpush1.bf16.msra.mxu0 0
      %4862 = vmatprep.subr.bf16.mxu0 0
      %4863 = vmatpush1.bf16.msra.mxu0 0
      %4864 = vmatprep.mubr.bf16.mxu0 0
      %4865 = vmatmul.mubr.bf16.gmra.mrb[0].mxu0 %v4752
      %v4866 = vpop.f32.mrb[0].mxu0
      %v4867 = vadd.f32 0.0, %v4866
      %v4868 = vpop.f32.mrb[0].mxu0
      %v4869 = vpop.f32.mrb[0].mxu0
      %v4870 = vadd.f32 0.0, %v4869
      %v4871 = vpop.f32.mrb[0].mxu0
      %4872 = vmatprep.mubr.bf16.mxu0 0
      %4873 = vmatmul.mubr.bf16.gmra.mrb[0].mxu0 %v4753
      %v4874 = vpop.f32.mrb[0].mxu0
      %v4875 = vadd.f32 0.0, %v4874
      %v4876 = vpop.f32.mrb[0].mxu0
      %v4877 = vpop.f32.mrb[0].mxu0
      %v4878 = vadd.f32 0.0, %v4877
      %v4879 = vpop.f32.mrb[0].mxu0
      %4880 = vmatprep.mubr.bf16.mxu0 0
      %4881 = vmatmul.mubr.bf16.gmra.mrb[0].mxu0 %v4754
      %v4882 = vpop.f32.mrb[0].mxu0
      %v4883 = vadd.f32 0.0, %v4882
      %v4884 = vpop.f32.mrb[0].mxu0
      %v4885 = vpop.f32.mrb[0].mxu0
      %v4886 = vadd.f32 0.0, %v4885
      %v4887 = vpop.f32.mrb[0].mxu0
      %4888 = vmatprep.mubr.bf16.mxu0 0
      %4889 = vmatmul.mubr.bf16.gmra.mrb[0].mxu0 %v4755
      %v4890 = vpop.f32.mrb[0].mxu0
      %v4891 = vadd.f32 0.0, %v4890
      %v4892 = vpop.f32.mrb[0].mxu0
      %v4893 = vpop.f32.mrb[0].mxu0
      %v4894 = vadd.f32 0.0, %v4893
      %v4895 = vpop.f32.mrb[0].mxu0
      %4896 = vmatprep.mubr.bf16.mxu0 0
      %4897 = vmatmul.mubr.bf16.gmra.mrb[0].mxu0 %v4756
      %v4898 = vpop.f32.mrb[0].mxu0
      %v4899 = vadd.f32 0.0, %v4898
      %v4900 = vpop.f32.mrb[0].mxu0
      %v4901 = vpop.f32.mrb[0].mxu0
      %v4902 = vadd.f32 0.0, %v4901
      %v4903 = vpop.f32.mrb[0].mxu0
      %4904 = vmatprep.mubr.bf16.mxu0 0
      %4905 = vmatmul.mubr.bf16.gmra.mrb[0].mxu0 %v4757
      %v4906 = vpop.f32.mrb[0].mxu0
      %v4907 = vadd.f32 0.0, %v4906
      %v4908 = vpop.f32.mrb[0].mxu0
      %v4909 = vpop.f32.mrb[0].mxu0
      %v4910 = vadd.f32 0.0, %v4909
      %v4911 = vpop.f32.mrb[0].mxu0
      %4912 = vmatprep.mubr.bf16.mxu0 0
      %4913 = vmatmul.mubr.bf16.gmra.mrb[0].mxu0 %v4758
      %v4914 = vpop.f32.mrb[0].mxu0
      %v4915 = vadd.f32 0.0, %v4914
      %v4916 = vpop.f32.mrb[0].mxu0
      %v4917 = vpop.f32.mrb[0].mxu0
      %v4918 = vadd.f32 0.0, %v4917
      %v4919 = vpop.f32.mrb[0].mxu0
      %4920 = vmatprep.mubr.bf16.mxu0 0
      %4921 = vmatmul.mubr.bf16.gmra.mrb[0].mxu0 %v4759
      %v4922 = vpop.f32.mrb[0].mxu0
      %v4923 = vadd.f32 0.0, %v4922
      %v4924 = vpop.f32.mrb[0].mxu0
      %v4925 = vpop.f32.mrb[0].mxu0
      %v4926 = vadd.f32 0.0, %v4925
      %v4927 = vpop.f32.mrb[0].mxu0
      %4928 = vmatprep.mubr.bf16.mxu0 0
      %4929 = vmatmul.mubr.bf16.gmra.mrb[0].mxu0 %v4760
      %v4930 = vpop.f32.mrb[0].mxu0
      %v4931 = vadd.f32 0.0, %v4930
      %v4932 = vpop.f32.mrb[0].mxu0
      %v4933 = vpop.f32.mrb[0].mxu0
      %v4934 = vadd.f32 0.0, %v4933
      %v4935 = vpop.f32.mrb[0].mxu0
      %4936 = vmatprep.mubr.bf16.mxu0 0
      %4937 = vmatmul.mubr.bf16.gmra.mrb[0].mxu0 %v4761
      %v4938 = vpop.f32.mrb[0].mxu0
      %v4939 = vadd.f32 0.0, %v4938
      %v4940 = vpop.f32.mrb[0].mxu0
      %v4941 = vpop.f32.mrb[0].mxu0
      %v4942 = vadd.f32 0.0, %v4941
      %v4943 = vpop.f32.mrb[0].mxu0
      %4944 = vmatprep.mubr.bf16.mxu0 0
      %4945 = vmatmul.mubr.bf16.gmra.mrb[0].mxu0 %v4762
      %v4946 = vpop.f32.mrb[0].mxu0
      %v4947 = vadd.f32 0.0, %v4946
      %v4948 = vpop.f32.mrb[0].mxu0
      %v4949 = vpop.f32.mrb[0].mxu0
      %v4950 = vadd.f32 0.0, %v4949
      %v4951 = vpop.f32.mrb[0].mxu0
      %4952 = vmatprep.mubr.bf16.mxu0 0
      %4953 = vmatmul.mubr.bf16.gmra.mrb[0].mxu0 %v4763
      %v4954 = vpop.f32.mrb[0].mxu0
      %v4955 = vadd.f32 0.0, %v4954
      %v4956 = vpop.f32.mrb[0].mxu0
      %v4957 = vpop.f32.mrb[0].mxu0
      %v4958 = vadd.f32 0.0, %v4957
      %v4959 = vpop.f32.mrb[0].mxu0
      %4960 = vmatprep.mubr.bf16.mxu0 0
      %4961 = vmatmul.mubr.bf16.gmra.mrb[0].mxu0 %v4764
      %v4962 = vpop.f32.mrb[0].mxu0
      %v4963 = vadd.f32 0.0, %v4962
      %v4964 = vpop.f32.mrb[0].mxu0
      %v4965 = vpop.f32.mrb[0].mxu0
      %v4966 = vadd.f32 0.0, %v4965
      %v4967 = vpop.f32.mrb[0].mxu0
      %4968 = vmatprep.mubr.bf16.mxu0 0
      %4969 = vmatmul.mubr.bf16.gmra.mrb[0].mxu0 %v4765
      %v4970 = vpop.f32.mrb[0].mxu0
      %v4971 = vadd.f32 0.0, %v4970
      %v4972 = vpop.f32.mrb[0].mxu0
      %v4973 = vpop.f32.mrb[0].mxu0
      %v4974 = vadd.f32 0.0, %v4973
      %v4975 = vpop.f32.mrb[0].mxu0
      %4976 = vmatprep.mubr.bf16.mxu0 0
      %4977 = vmatmul.mubr.bf16.gmra.mrb[0].mxu0 %v4766
      %v4978 = vpop.f32.mrb[0].mxu0
      %v4979 = vadd.f32 0.0, %v4978
      %v4980 = vpop.f32.mrb[0].mxu0
      %v4981 = vpop.f32.mrb[0].mxu0
      %v4982 = vadd.f32 0.0, %v4981
      %v4983 = vpop.f32.mrb[0].mxu0
      %4984 = vmatprep.mubr.bf16.mxu0 0
      %4985 = vmatmul.mubr.bf16.gmra.mrb[0].mxu0 %v4767
      %v4986 = vpop.f32.mrb[0].mxu0
      %v4987 = vadd.f32 0.0, %v4986
      %v4988 = vpop.f32.mrb[0].mxu0
      %v4989 = vpop.f32.mrb[0].mxu0
      %v4990 = vadd.f32 0.0, %v4989
      %v4991 = vpop.f32.mrb[0].mxu0
      %4992 = vdwg.mxu0
      %v4993 = vadd.f32 %v4495, %v4867
      %v4994 = vadd.f32 %v4496, %v4870
      %v4995 = vadd.f32 %v4497, %v4875
      %v4996 = vadd.f32 %v4498, %v4878
      %v4997 = vadd.f32 %v4499, %v4883
      %v4998 = vadd.f32 %v4500, %v4886
      %v4999 = vadd.f32 %v4501, %v4891
      %v5000 = vadd.f32 %v4502, %v4894
      %v5001 = vadd.f32 %v4503, %v4899
      %v5002 = vadd.f32 %v4504, %v4902
      %v5003 = vadd.f32 %v4505, %v4907
      %v5004 = vadd.f32 %v4506, %v4910
      %v5005 = vadd.f32 %v4507, %v4915
      %v5006 = vadd.f32 %v4508, %v4918
      %v5007 = vadd.f32 %v4509, %v4923
      %v5008 = vadd.f32 %v4510, %v4926
      %v5009 = vadd.f32 %v4511, %v4931
      %v5010 = vadd.f32 %v4512, %v4934
      %v5011 = vadd.f32 %v4513, %v4939
      %v5012 = vadd.f32 %v4514, %v4942
      %v5013 = vadd.f32 %v4515, %v4947
      %v5014 = vadd.f32 %v4516, %v4950
      %v5015 = vadd.f32 %v4517, %v4955
      %v5016 = vadd.f32 %v4518, %v4958
      %v5017 = vadd.f32 %v4519, %v4963
      %v5018 = vadd.f32 %v4520, %v4966
      %v5019 = vadd.f32 %v4521, %v4971
      %v5020 = vadd.f32 %v4522, %v4974
      %v5021 = vadd.f32 %v4523, %v4979
      %v5022 = vadd.f32 %v4524, %v4982
      %v5023 = vadd.f32 %v4525, %v4987
      %v5024 = vadd.f32 %v4526, %v4990
      %v5025 = vpack.c.bf16 %v4994, %v4993
      %v5026 = vpack.c.bf16 %v4996, %v4995
      %v5027 = vpack.c.bf16 %v4998, %v4997
      %v5028 = vpack.c.bf16 %v5000, %v4999
      %v5029 = vpack.c.bf16 %v5002, %v5001
      %v5030 = vpack.c.bf16 %v5004, %v5003
      %v5031 = vpack.c.bf16 %v5006, %v5005
      %v5032 = vpack.c.bf16 %v5008, %v5007
      %v5033 = vpack.c.bf16 %v5010, %v5009
      %v5034 = vpack.c.bf16 %v5012, %v5011
      %v5035 = vpack.c.bf16 %v5014, %v5013
      %v5036 = vpack.c.bf16 %v5016, %v5015
      %v5037 = vpack.c.bf16 %v5018, %v5017
      %v5038 = vpack.c.bf16 %v5020, %v5019
      %v5039 = vpack.c.bf16 %v5022, %v5021
      %v5040 = vpack.c.bf16 %v5024, %v5023
      %v5057 = vunpack.c.l.b16 %v5025
      %v5058 = vunpack.c.h.b16 %v5025
      %v5059 = vunpack.c.l.b16 %v5026
      %v5060 = vunpack.c.h.b16 %v5026
      %v5061 = vunpack.c.l.b16 %v5027
      %v5062 = vunpack.c.h.b16 %v5027
      %v5063 = vunpack.c.l.b16 %v5028
      %v5064 = vunpack.c.h.b16 %v5028
      %v5065 = vunpack.c.l.b16 %v5029
      %v5066 = vunpack.c.h.b16 %v5029
      %v5067 = vunpack.c.l.b16 %v5030
      %v5068 = vunpack.c.h.b16 %v5030
      %v5069 = vunpack.c.l.b16 %v5031
      %v5070 = vunpack.c.h.b16 %v5031
      %v5071 = vunpack.c.l.b16 %v5032
      %v5072 = vunpack.c.h.b16 %v5032
      %v5073 = vunpack.c.l.b16 %v5033
      %v5074 = vunpack.c.h.b16 %v5033
      %v5075 = vunpack.c.l.b16 %v5034
      %v5076 = vunpack.c.h.b16 %v5034
      %v5077 = vunpack.c.l.b16 %v5035
      %v5078 = vunpack.c.h.b16 %v5035
      %v5079 = vunpack.c.l.b16 %v5036
      %v5080 = vunpack.c.h.b16 %v5036
      %v5081 = vunpack.c.l.b16 %v5037
      %v5082 = vunpack.c.h.b16 %v5037
      %v5083 = vunpack.c.l.b16 %v5038
      %v5084 = vunpack.c.h.b16 %v5038
      %v5085 = vunpack.c.l.b16 %v5039
      %v5086 = vunpack.c.h.b16 %v5039
      %v5087 = vunpack.c.l.b16 %v5040
      %v5088 = vunpack.c.h.b16 %v5040
      %v5089 = vpack.c.b16 %v5057, %v5057
      %v5090 = vpack.c.b16 %v5058, %v5058
      %v5091 = vpack.c.b16 %v5059, %v5059
      %v5092 = vpack.c.b16 %v5060, %v5060
      %v5093 = vpack.c.b16 %v5061, %v5061
      %v5094 = vpack.c.b16 %v5062, %v5062
      %v5095 = vpack.c.b16 %v5063, %v5063
      %v5096 = vpack.c.b16 %v5064, %v5064
      %v5097 = vpack.c.b16 %v5065, %v5065
      %v5098 = vpack.c.b16 %v5066, %v5066
      %v5099 = vpack.c.b16 %v5067, %v5067
      %v5100 = vpack.c.b16 %v5068, %v5068
      %v5101 = vpack.c.b16 %v5069, %v5069
      %v5102 = vpack.c.b16 %v5070, %v5070
      %v5103 = vpack.c.b16 %v5071, %v5071
      %v5104 = vpack.c.b16 %v5072, %v5072
      %v5105 = vpack.c.b16 %v5073, %v5073
      %v5106 = vpack.c.b16 %v5074, %v5074
      %v5107 = vpack.c.b16 %v5075, %v5075
      %v5108 = vpack.c.b16 %v5076, %v5076
      %v5109 = vpack.c.b16 %v5077, %v5077
      %v5110 = vpack.c.b16 %v5078, %v5078
      %v5111 = vpack.c.b16 %v5079, %v5079
      %v5112 = vpack.c.b16 %v5080, %v5080
      %v5113 = vpack.c.b16 %v5081, %v5081
      %v5114 = vpack.c.b16 %v5082, %v5082
      %v5115 = vpack.c.b16 %v5083, %v5083
      %v5116 = vpack.c.b16 %v5084, %v5084
      %v5117 = vpack.c.b16 %v5085, %v5085
      %v5118 = vpack.c.b16 %v5086, %v5086
      %v5119 = vpack.c.b16 %v5087, %v5087
      %v5120 = vpack.c.b16 %v5088, %v5088
      %5153 = vst [vmem:[%s208] sm:$0xf] %v5089
      %5154 = vst [vmem:[%s208 + $0x4] sm:$0xf] %v5090
      %5155 = vst [vmem:[%s208 + $0x8] sm:$0xf] %v5091
      %5156 = vst [vmem:[%s208 + $0xc] sm:$0xf] %v5092
      %5157 = vst [vmem:[%s208 + $0x10] sm:$0xf] %v5093
      %5158 = vst [vmem:[%s208 + $0x14] sm:$0xf] %v5094
      %5159 = vst [vmem:[%s208 + $0x18] sm:$0xf] %v5095
      %5160 = vst [vmem:[%s208 + $0x1c] sm:$0xf] %v5096
      %5161 = vst [vmem:[%s208 + $0x20] sm:$0xf] %v5097
      %5162 = vst [vmem:[%s208 + $0x24] sm:$0xf] %v5098
      %5163 = vst [vmem:[%s208 + $0x28] sm:$0xf] %v5099
      %5164 = vst [vmem:[%s208 + $0x2c] sm:$0xf] %v5100
      %5165 = vst [vmem:[%s208 + $0x30] sm:$0xf] %v5101
      %5166 = vst [vmem:[%s208 + $0x34] sm:$0xf] %v5102
      %5167 = vst [vmem:[%s208 + $0x38] sm:$0xf] %v5103
      %5168 = vst [vmem:[%s208 + $0x3c] sm:$0xf] %v5104
      %5169 = vst [vmem:[%s208 + $0x40] sm:$0xf] %v5105
      %5170 = vst [vmem:[%s208 + $0x44] sm:$0xf] %v5106
      %5171 = vst [vmem:[%s208 + $0x48] sm:$0xf] %v5107
      %5172 = vst [vmem:[%s208 + $0x4c] sm:$0xf] %v5108
      %5173 = vst [vmem:[%s208 + $0x50] sm:$0xf] %v5109
      %5174 = vst [vmem:[%s208 + $0x54] sm:$0xf] %v5110
      %5175 = vst [vmem:[%s208 + $0x58] sm:$0xf] %v5111
      %5176 = vst [vmem:[%s208 + $0x5c] sm:$0xf] %v5112
      %5177 = vst [vmem:[%s208 + $0x60] sm:$0xf] %v5113
      %5178 = vst [vmem:[%s208 + $0x64] sm:$0xf] %v5114
      %5179 = vst [vmem:[%s208 + $0x68] sm:$0xf] %v5115
      %5180 = vst [vmem:[%s208 + $0x6c] sm:$0xf] %v5116
      %5181 = vst [vmem:[%s208 + $0x70] sm:$0xf] %v5117
      %5182 = vst [vmem:[%s208 + $0x74] sm:$0xf] %v5118
      %5183 = vst [vmem:[%s208 + $0x78] sm:$0xf] %v5119
      %5184 = vst [vmem:[%s208 + $0x7c] sm:$0xf] %v5120
      %v5185 = vadd.f32 %v4993, %v4994
      %v5186 = vadd.f32 %v5185, %v4995
      %v5187 = vadd.f32 %v5186, %v4996
      %v5188 = vadd.f32 %v5187, %v4997
      %v5189 = vadd.f32 %v5188, %v4998
      %v5190 = vadd.f32 %v5189, %v4999
      %v5191 = vadd.f32 %v5190, %v5000
      %v5192 = vadd.f32 %v5191, %v5001
      %v5193 = vadd.f32 %v5192, %v5002
      %v5194 = vadd.f32 %v5193, %v5003
      %v5195 = vadd.f32 %v5194, %v5004
      %v5196 = vadd.f32 %v5195, %v5005
      %v5197 = vadd.f32 %v5196, %v5006
      %v5198 = vadd.f32 %v5197, %v5007
      %v5199 = vadd.f32 %v5198, %v5008
      %v5200 = vadd.f32 %v5199, %v5009
      %v5201 = vadd.f32 %v5200, %v5010
      %v5202 = vadd.f32 %v5201, %v5011
      %v5203 = vadd.f32 %v5202, %v5012
      %v5204 = vadd.f32 %v5203, %v5013
      %v5205 = vadd.f32 %v5204, %v5014
      %v5206 = vadd.f32 %v5205, %v5015
      %v5207 = vadd.f32 %v5206, %v5016
      %v5208 = vadd.f32 %v5207, %v5017
      %v5209 = vadd.f32 %v5208, %v5018
      %v5210 = vadd.f32 %v5209, %v5019
      %v5211 = vadd.f32 %v5210, %v5020
      %v5212 = vadd.f32 %v5211, %v5021
      %v5213 = vadd.f32 %v5212, %v5022
      %v5214 = vadd.f32 %v5213, %v5023
      %v5215 = vadd.f32 %v5214, %v5024
      %v5216 = vrot.slane %v5215, 4
      %v5217 = vadd.f32 %v5215, %v5216
      %v5218 = vrot.slane %v5217, 2
      %v5219 = vadd.f32 %v5217, %v5218
      %v5220 = vrot.slane %v5219, 1
      %v5221 = vadd.f32 %v5219, %v5220
      %5222 = vst [vmem:[%s211] sm:$0x1] %v5221
      %v5223 = vmul.f32 %v4993, %v4993
      %v5224 = vmul.f32 %v4994, %v4994
      %v5225 = vmul.f32 %v4995, %v4995
      %v5226 = vmul.f32 %v4996, %v4996
      %v5227 = vmul.f32 %v4997, %v4997
      %v5228 = vmul.f32 %v4998, %v4998
      %v5229 = vmul.f32 %v4999, %v4999
      %v5230 = vmul.f32 %v5000, %v5000
      %v5231 = vmul.f32 %v5001, %v5001
      %v5232 = vmul.f32 %v5002, %v5002
      %v5233 = vmul.f32 %v5003, %v5003
      %v5234 = vmul.f32 %v5004, %v5004
      %v5235 = vmul.f32 %v5005, %v5005
      %v5236 = vmul.f32 %v5006, %v5006
      %v5237 = vmul.f32 %v5007, %v5007
      %v5238 = vmul.f32 %v5008, %v5008
      %v5239 = vmul.f32 %v5009, %v5009
      %v5240 = vmul.f32 %v5010, %v5010
      %v5241 = vmul.f32 %v5011, %v5011
      %v5242 = vmul.f32 %v5012, %v5012
      %v5243 = vmul.f32 %v5013, %v5013
      %v5244 = vmul.f32 %v5014, %v5014
      %v5245 = vmul.f32 %v5015, %v5015
      %v5246 = vmul.f32 %v5016, %v5016
      %v5247 = vmul.f32 %v5017, %v5017
      %v5248 = vmul.f32 %v5018, %v5018
      %v5249 = vmul.f32 %v5019, %v5019
      %v5250 = vmul.f32 %v5020, %v5020
      %v5251 = vmul.f32 %v5021, %v5021
      %v5252 = vmul.f32 %v5022, %v5022
      %v5253 = vmul.f32 %v5023, %v5023
      %v5254 = vmul.f32 %v5024, %v5024
      %v5255 = vadd.f32 %v5223, %v5224
      %v5256 = vadd.f32 %v5255, %v5225
      %v5257 = vadd.f32 %v5256, %v5226
      %v5258 = vadd.f32 %v5257, %v5227
      %v5259 = vadd.f32 %v5258, %v5228
      %v5260 = vadd.f32 %v5259, %v5229
      %v5261 = vadd.f32 %v5260, %v5230
      %v5262 = vadd.f32 %v5261, %v5231
      %v5263 = vadd.f32 %v5262, %v5232
      %v5264 = vadd.f32 %v5263, %v5233
      %v5265 = vadd.f32 %v5264, %v5234
      %v5266 = vadd.f32 %v5265, %v5235
      %v5267 = vadd.f32 %v5266, %v5236
      %v5268 = vadd.f32 %v5267, %v5237
      %v5269 = vadd.f32 %v5268, %v5238
      %v5270 = vadd.f32 %v5269, %v5239
      %v5271 = vadd.f32 %v5270, %v5240
      %v5272 = vadd.f32 %v5271, %v5241
      %v5273 = vadd.f32 %v5272, %v5242
      %v5274 = vadd.f32 %v5273, %v5243
      %v5275 = vadd.f32 %v5274, %v5244
      %v5276 = vadd.f32 %v5275, %v5245
      %v5277 = vadd.f32 %v5276, %v5246
      %v5278 = vadd.f32 %v5277, %v5247
      %v5279 = vadd.f32 %v5278, %v5248
      %v5280 = vadd.f32 %v5279, %v5249
      %v5281 = vadd.f32 %v5280, %v5250
      %v5282 = vadd.f32 %v5281, %v5251
      %v5283 = vadd.f32 %v5282, %v5252
      %v5284 = vadd.f32 %v5283, %v5253
      %v5285 = vadd.f32 %v5284, %v5254
      %v5286 = vrot.slane %v5285, 4
      %v5287 = vadd.f32 %v5285, %v5286
      %v5288 = vrot.slane %v5287, 2
      %v5289 = vadd.f32 %v5287, %v5288
      %v5290 = vrot.slane %v5289, 1
      %v5291 = vadd.f32 %v5289, %v5290
      %5292 = vst [vmem:[%s214] sm:$0x1] %v5291
      %p5293 = scmp.lt.s32.totalorder %s16, 1
      %s5294 = scalar_select %p5293, %s16, 1
      %s5295 = smul.addr %s5294, 32
      %s5296 = smul.addr %s5295, 4
      %s5297 = scalar_lea.vmem %s2, %s5296
      %p5298 = scmp.lt.s32.totalorder %s16, 1
      %s5299 = scalar_select %p5298, %s16, 1
      %s5300 = scalar_lea.vmem %s3, %s5299
      %p5301 = scmp.lt.s32.totalorder %s16, 1
      %s5302 = scalar_select %p5301, %s16, 1
      %s5303 = scalar_lea.vmem %s4, %s5302
      // Predicated region
      $region29: #{resnet_block.2} parent=27 // pred_check
        %p5304 = pneg %p81
      $region30: #{resnet_block.2} parent=27 // pred_check_branch
        %5306 = sbr.rel (%p5304) target = $region32
      $region31: #{resnet_block.2} parent=27 // pred_region
        _
      $region32: #{resnet_block.2} parent=27 // pred_fallthru
        _
      // Predicated region
      $region33: #{resnet_block.2} parent=27 // pred_check
        %p5307 = pneg %p107
      $region34: #{resnet_block.2} parent=27 // pred_check_branch
        %5309 = sbr.rel (%p5307) target = $region36
      $region35: #{resnet_block.2} parent=27 // pred_region
        _
      $region36: #{resnet_block.2} parent=27 // pred_fallthru
        _
      // Predicated region
      $region37: #{resnet_block.2} parent=27 // pred_check
        %p5310 = pneg %p133
      $region38: #{resnet_block.2} parent=27 // pred_check_branch
        %5312 = sbr.rel (%p5310) target = $region40
      $region39: #{resnet_block.2} parent=27 // pred_region
        _
      $region40: #{resnet_block.2} parent=27 // pred_fallthru
        _
    $region28: #{resnet_block.2} parent=5 // pred_fallthru
      _
    %p5313 = scmp.le.s32.totalorder 2, %s11
    // Predicated region
    $region41: #{resnet_block.2} parent=5 // pred_check
      %p5314 = pneg %p5313
    $region42: #{resnet_block.2} parent=5 // pred_check_branch
      %5316 = sbr.rel (%p5314) target = $region44
    $region43: #{resnet_block.2} parent=5 // pred_region
      %s5317 = ssub.s32 %s11, 2
      // Predicated region
      $region45: #{resnet_block.2} parent=43 // pred_check
        %p5318 = pneg %p87
      $region46: #{resnet_block.2} parent=43 // pred_check_branch
        %5320 = sbr.rel (%p5318) target = $region48
      $region47: #{resnet_block.2} parent=43 // pred_region
        %p5321 = scmp.lt.s32.totalorder %s17, 1
        %s5322 = scalar_select %p5321, %s17, 1
        %s5323 = smul.addr %s5322, 32
        %s5324 = smul.addr %s5323, 4
        %s5325 = scalar_lea.vmem %s2, %s5324
      $region48: #{resnet_block.2} parent=43 // pred_fallthru
        _
      // Predicated region
      $region49: #{resnet_block.2} parent=43 // pred_check
        %p5326 = pneg %p113
      $region50: #{resnet_block.2} parent=43 // pred_check_branch
        %5328 = sbr.rel (%p5326) target = $region52
      $region51: #{resnet_block.2} parent=43 // pred_region
        %p5329 = scmp.lt.s32.totalorder %s17, 1
        %s5330 = scalar_select %p5329, %s17, 1
        %s5331 = scalar_lea.vmem %s3, %s5330
      $region52: #{resnet_block.2} parent=43 // pred_fallthru
        _
      // Predicated region
      $region53: #{resnet_block.2} parent=43 // pred_check
        %p5332 = pneg %p139
      $region54: #{resnet_block.2} parent=43 // pred_check_branch
        %5334 = sbr.rel (%p5332) target = $region56
      $region55: #{resnet_block.2} parent=43 // pred_region
        %p5335 = scmp.lt.s32.totalorder %s17, 1
        %s5336 = scalar_select %p5335, %s17, 1
        %s5337 = scalar_lea.vmem %s4, %s5336
      $region56: #{resnet_block.2} parent=43 // pred_fallthru
        _
    $region44: #{resnet_block.2} parent=5 // pred_fallthru
      _
  $region6: #{resnet_block.2} parent=0 // loop_footer
    %s15 = sadd.s32 1, %s11
  $region7: #{resnet_block.2} parent=0 // loop_footer_branch
    %10 = sbr.rel target = $region3
  $region8: #{resnet_block.2} parent=0 // loop_exit
    _

</llo_original>
